<compile_context>
chip_gen: v7x
topology: tpu7x:2x2x1
jax: 0.10.0
libtpu: 0.0.40
codegen_flags: <defaults>
</compile_context>

<pallas_src>
import functools
import math

import jax
import jax.numpy as jnp
from jax.experimental import pallas as pl
from jax.experimental.pallas import tpu as pltpu


def _vmem_limit_bytes():
    """Per-generation scoped-VMEM limit: ~3/4 physical, capped at 100 MiB."""
    try:
        cap = pltpu.get_tpu_info().vmem_capacity_bytes
        return int(min(cap * 3 // 4, 100 * 1024 * 1024))
    except Exception:
        return 48 * 1024 * 1024   # safe on v5e/v6e/v7x


_VMEM_LIMIT = _vmem_limit_bytes()


# ----------------------------------------------------------------------------
# Fused per-layer kernel: RMSNorm -> QKV -> RoPE -> causal attn -> wo ->
# residual -> RMSNorm -> SwiGLU FFN -> residual, all resident in VMEM.
# ----------------------------------------------------------------------------

def _layer_kernel(h_ref, an_ref, wqkv_ref, wo_ref, fn_ref, w13_ref, w2_ref,
                  cos_ref, sin_ref, rot_ref, o_ref, *,
                  eps, scale, n_heads, head_dim, hidden_dim):
    S = h_ref.shape[1]
    HHD = n_heads * head_dim

    x = h_ref[0].astype(jnp.float32)                      # (S, D) residual stream

    # ---- attention sub-block -------------------------------------------------
    xn = x * jax.lax.rsqrt(jnp.mean(x * x, axis=-1, keepdims=True) + eps)
    xn = xn * an_ref[...].astype(jnp.float32)             # RMSNorm (f32)

    # fused QKV projection: bf16 x bf16 -> f32 accumulation on the MXU
    qkv = jnp.dot(xn.astype(jnp.bfloat16), wqkv_ref[...],
                  preferred_element_type=jnp.float32)     # (S, 3*HHD) f32

    cos = cos_ref[...]                                    # (S, head_dim) f32
    sin = sin_ref[...]                                    # (S, head_dim) f32
    rot = rot_ref[...]                                    # (head_dim, head_dim) f32

    row = jax.lax.broadcasted_iota(jnp.int32, (S, S), 0)
    col = jax.lax.broadcasted_iota(jnp.int32, (S, S), 1)
    causal = col <= row

    head_outs = []
    for hh in range(n_heads):                             # static unroll (heads small)
        lo = hh * head_dim
        qh = qkv[:, 0 * HHD + lo:0 * HHD + lo + head_dim]
        kh = qkv[:, 1 * HHD + lo:1 * HHD + lo + head_dim]
        vh = qkv[:, 2 * HHD + lo:2 * HHD + lo + head_dim]

        # Interleaved-pair RoPE (torch.view_as_complex convention), q/k only:
        #   out[2i]   =  x[2i]*cos_i - x[2i+1]*sin_i
        #   out[2i+1] =  x[2i+1]*cos_i + x[2i]*sin_i
        # implemented as x*cos + (x @ rot)*sin with a tiny (hd, hd) matrix.
        qh = qh * cos + jnp.dot(qh, rot, preferred_element_type=jnp.float32) * sin
        kh = kh * cos + jnp.dot(kh, rot, preferred_element_type=jnp.float32) * sin

        qh = qh.astype(jnp.bfloat16)
        kh = kh.astype(jnp.bfloat16)
        vh = vh.astype(jnp.bfloat16)

        s = jax.lax.dot_general(qh, kh, (((1,), (1,)), ((), ())),
                                preferred_element_type=jnp.float32) * scale
        s = jnp.where(causal, s, -jnp.inf)
        m = jnp.max(s, axis=-1, keepdims=True)
        p = jnp.exp(s - m)
        p = p / jnp.sum(p, axis=-1, keepdims=True)        # exact softmax denom
        oh = jnp.dot(p.astype(jnp.bfloat16), vh,
                     preferred_element_type=jnp.float32)  # (S, head_dim) f32
        head_outs.append(oh)

    # one bf16 (S, HHD) @ (HHD, D) output projection; wo stays bf16 in VMEM
    attn = jnp.concatenate(head_outs, axis=-1).astype(jnp.bfloat16)
    h1 = x + jnp.dot(attn, wo_ref[...], preferred_element_type=jnp.float32)

    # ---- feed-forward sub-block ------------------------------------------------
    hn = h1 * jax.lax.rsqrt(jnp.mean(h1 * h1, axis=-1, keepdims=True) + eps)
    hn = hn * fn_ref[...].astype(jnp.float32)             # RMSNorm (f32)

    h13 = jnp.dot(hn.astype(jnp.bfloat16), w13_ref[...],
                  preferred_element_type=jnp.float32)     # (S, 2*hidden) f32
    g = h13[:, :hidden_dim]
    u = h13[:, hidden_dim:]
    act = (g * jax.nn.sigmoid(g)) * u                     # SwiGLU
    ff = jnp.dot(act.astype(jnp.bfloat16), w2_ref[...],
                 preferred_element_type=jnp.float32)      # (S, D) f32

    o_ref[0] = (h1 + ff).astype(o_ref.dtype)


def transformer_layer(h, layer, cos, sin, rot, cfg):
    """h: (B, S, D) f32 -> (B, S, D) f32, one fused kernel per layer."""
    B, S, D = h.shape
    H, HD = cfg.n_heads, cfg.head_dim
    HHD = H * HD
    HID = cfg.hidden_dim
    kern = functools.partial(
        _layer_kernel, eps=cfg.norm_eps, scale=1.0 / math.sqrt(HD),
        n_heads=H, head_dim=HD, hidden_dim=HID)
    full = lambda b: (0, 0)
    return pl.pallas_call(
        kern,
        out_shape=jax.ShapeDtypeStruct((B, S, D), h.dtype),
        grid=(B,),
        in_specs=[
            pl.BlockSpec((1, S, D), lambda b: (b, 0, 0)),       # residual stream
            pl.BlockSpec((1, D), full),                          # attention_norm
            pl.BlockSpec((D, 3 * HHD), full),                    # wq|wk|wv fused (bf16)
            pl.BlockSpec((HHD, D), full),                        # wo (bf16)
            pl.BlockSpec((1, D), full),                          # ffn_norm
            pl.BlockSpec((D, 2 * HID), full),                    # w1|w3 fused (bf16)
            pl.BlockSpec((HID, D), full),                        # w2 (bf16)
            pl.BlockSpec((S, HD), full),                         # RoPE cos (pair-dup)
            pl.BlockSpec((S, HD), full),                         # RoPE sin (pair-dup)
            pl.BlockSpec((HD, HD), full),                        # per-head pair rotation
        ],
        out_specs=pl.BlockSpec((1, S, D), lambda b: (b, 0, 0)),
        compiler_params=pltpu.CompilerParams(
            dimension_semantics=("parallel",),
            vmem_limit_bytes=_VMEM_LIMIT),
    )(h, layer["attention_norm"], layer["wqkv"], layer["wo"],
      layer["ffn_norm"], layer["w13"], layer["w2"], cos, sin, rot)


# ----------------------------------------------------------------------------
# Fused final norm + output projection, tiled over vocab (lane-dense outputs)
# ----------------------------------------------------------------------------

def _final_kernel(h_ref, nw_ref, wout_ref, o_ref, *, eps):
    x = h_ref[...].astype(jnp.float32)
    xn = x * jax.lax.rsqrt(jnp.mean(x * x, axis=-1, keepdims=True) + eps)
    xn = xn * nw_ref[...].astype(jnp.float32)
    o_ref[...] = jnp.dot(xn.astype(jnp.bfloat16), wout_ref[...],
                         preferred_element_type=jnp.float32).astype(o_ref.dtype)


def final_norm_logits(h2d, norm_w, wout, eps):
    """h2d: (M, D) f32, norm_w: (1, D) f32, wout: (D, V) bf16 -> (M, V) f32."""
    M, D = h2d.shape
    V = wout.shape[1]
    tv = 128 if V % 128 == 0 else V          # lane-dense vocab tiles
    return pl.pallas_call(
        functools.partial(_final_kernel, eps=eps),
        out_shape=jax.ShapeDtypeStruct((M, V), jnp.float32),
        grid=(V // tv,),
        in_specs=[pl.BlockSpec((M, D), lambda j: (0, 0)),
                  pl.BlockSpec((1, D), lambda j: (0, 0)),
                  pl.BlockSpec((D, tv), lambda j: (0, j))],
        out_specs=pl.BlockSpec((M, tv), lambda j: (0, j)),
        compiler_params=pltpu.CompilerParams(
            dimension_semantics=("parallel",),
            vmem_limit_bytes=_VMEM_LIMIT),
    )(h2d, norm_w, wout)


# ----------------------------------------------------------------------------
# Host-side (trace-time) constants: RoPE tables + per-head pair rotation
# ----------------------------------------------------------------------------

def precompute_rope_tables(head_dim, seq_len, theta=10000.0):
    """cos/sin: (seq_len, head_dim), each frequency duplicated over its
    (real, imag) pair; applied to q and k only."""
    half = head_dim // 2
    freqs = 1.0 / theta ** (
        jnp.arange(0, head_dim, 2, dtype=jnp.float32)[:half] / head_dim)
    t = jnp.arange(seq_len, dtype=jnp.float32)
    ang = jnp.outer(t, freqs)                                  # (S, head_dim//2)
    cos = jnp.repeat(jnp.cos(ang), 2, axis=-1)                 # (S, head_dim)
    sin = jnp.repeat(jnp.sin(ang), 2, axis=-1)
    return cos, sin


def build_pair_rotation(head_dim):
    """(head_dim, head_dim) P with (x @ P)[:, 2i] = -x[:, 2i+1] and
    (x @ P)[:, 2i+1] = x[:, 2i]  (torch.view_as_complex pair convention)."""
    p = jnp.zeros((head_dim, head_dim), jnp.float32)
    idx = jnp.arange(0, head_dim, 2)
    p = p.at[idx + 1, idx].set(-1.0)
    p = p.at[idx, idx + 1].set(1.0)
    return p


# ----------------------------------------------------------------------------
# Model: config, params, forward
# ----------------------------------------------------------------------------

class Config:
    dim = 128
    n_layers = 2
    n_heads = 4
    n_kv_heads = 4            # == n_heads (GQA not implemented; see TODO)
    vocab_size = 256
    multiple_of = 128
    ffn_dim_multiplier = 8 / 3
    norm_eps = 1e-5
    max_seq_len = 16
    rope_theta = 10000.0

    @property
    def head_dim(self):
        return self.dim // self.n_heads

    @property
    def hidden_dim(self):
        hd = int(self.ffn_dim_multiplier * self.dim)
        return self.multiple_of * ((hd + self.multiple_of - 1) // self.multiple_of)


def init_params(cfg, key):
    def dense(k, shape, dtype=jnp.bfloat16):
        return (0.02 * jax.random.normal(k, shape, dtype=jnp.float32)).astype(dtype)

    keys = iter(jax.random.split(key, 2 + cfg.n_layers * 4))
    HHD = cfg.n_heads * cfg.head_dim
    params = {
        "tok_embeddings": dense(next(keys), (cfg.vocab_size, cfg.dim), jnp.float32),
        "norm": jnp.ones((1, cfg.dim), jnp.float32),
        # output linear stored pre-transposed (dim, vocab) == W.T, bf16
        "output": dense(next(keys), (cfg.dim, cfg.vocab_size)),
        "layers": [],
    }
    for _ in range(cfg.n_layers):
        params["layers"].append({
            "wqkv": dense(next(keys), (cfg.dim, 3 * HHD)),              # wq|wk|wv fused
            "wo":   dense(next(keys), (HHD, cfg.dim)),
            "w13":  dense(next(keys), (cfg.dim, 2 * cfg.hidden_dim)),   # w1|w3 fused
            "w2":   dense(next(keys), (cfg.hidden_dim, cfg.dim)),
            "attention_norm": jnp.ones((1, cfg.dim), jnp.float32),
            "ffn_norm": jnp.ones((1, cfg.dim), jnp.float32),
        })
    return params


def transformer_forward(params, input_ids, cfg):
    B, S = input_ids.shape
    D = cfg.dim
    assert S <= cfg.max_seq_len, "sequence longer than precomputed RoPE tables"

    # token embedding lookup (plain-JAX glue)
    h = jnp.take(params["tok_embeddings"], input_ids, axis=0)     # (B, S, D) f32

    cos, sin = precompute_rope_tables(cfg.head_dim, cfg.max_seq_len, cfg.rope_theta)
    cos, sin = cos[:S], sin[:S]
    rot = build_pair_rotation(cfg.head_dim)

    for layer in params["layers"]:
        h = transformer_layer(h, layer, cos, sin, rot, cfg)       # fused layer kernel

    logits = final_norm_logits(h.reshape(B * S, D), params["norm"],
                               params["output"], cfg.norm_eps)
    return logits.reshape(B, S, cfg.vocab_size)


if __name__ == "__main__":
    cfg = Config()
    key = jax.random.PRNGKey(0)
    pkey, ikey = jax.random.split(key)

    params = init_params(cfg, pkey)
    input_ids = jax.random.randint(ikey, (2, cfg.max_seq_len), 0, cfg.vocab_size,
                                   dtype=jnp.int32)

    fwd = jax.jit(functools.partial(transformer_forward, cfg=cfg))
    logits = fwd(params, input_ids)
    logits = jax.block_until_ready(logits)

    assert logits.shape == (2, cfg.max_seq_len, cfg.vocab_size)
    assert bool(jnp.all(jnp.isfinite(logits)))
    print("KERNEL_OK")
</pallas_src>

<mosaic_0001>
module attributes {stable_mosaic.version = 11 : i64} {
  func.func @_final_kernel(%arg0: i32, %arg1: memref<32x128xf32, #tpu.memory_space<vmem>>, %arg2: memref<1x128xf32, #tpu.memory_space<vmem>>, %arg3: memref<128x128xbf16, #tpu.memory_space<vmem>>, %arg4: memref<32x128xf32, #tpu.memory_space<vmem>>) attributes {dimension_semantics = [#tpu.dimension_semantics<parallel>], iteration_bounds = array<i64: 2>, scalar_prefetch = 0 : i64, scratch_operands = 0 : i64, tpu.core_type = #tpu.core_type<tc>, window_params = [{pipeline_mode = #tpu.pipeline_mode<synchronous>, transform_indices = @transform_0, window_bounds = array<i64: 32, 128>}, {pipeline_mode = #tpu.pipeline_mode<synchronous>, transform_indices = @transform_1, window_bounds = array<i64: 1, 128>}, {transform_indices = @transform_2, window_bounds = array<i64: 128, 128>}, {transform_indices = @transform_3, window_bounds = array<i64: 32, 128>}]} {
    %c0 = arith.constant 0 : index
    %c0_0 = arith.constant 0 : index
    %0 = vector.load %arg1[%c0, %c0_0] : memref<32x128xf32, #tpu.memory_space<vmem>>, vector<32x128xf32>
    %1 = arith.mulf %0, %0 : vector<32x128xf32>
    %cst = arith.constant dense<0.000000e+00> : vector<32xf32>
    %2 = vector.multi_reduction <add>, %1, %cst [1] : vector<32x128xf32> to vector<32xf32>
    %3 = vector.shape_cast %2 : vector<32xf32> to vector<32x1xf32>
    %cst_1 = arith.constant 1.280000e+02 : f32
    %4 = vector.broadcast %cst_1 : f32 to vector<32x1xf32>
    %5 = arith.divf %3, %4 : vector<32x1xf32>
    %cst_2 = arith.constant 9.99999974E-6 : f32
    %6 = vector.broadcast %cst_2 : f32 to vector<32x1xf32>
    %7 = arith.addf %5, %6 : vector<32x1xf32>
    %8 = math.rsqrt %7 : vector<32x1xf32>
    %9 = vector.broadcast %8 : vector<32x1xf32> to vector<32x128xf32>
    %10 = arith.mulf %0, %9 : vector<32x128xf32>
    %c0_3 = arith.constant 0 : index
    %c0_4 = arith.constant 0 : index
    %11 = vector.load %arg2[%c0_3, %c0_4] : memref<1x128xf32, #tpu.memory_space<vmem>>, vector<1x128xf32>
    %12 = vector.broadcast %11 : vector<1x128xf32> to vector<32x128xf32>
    %13 = arith.mulf %10, %12 : vector<32x128xf32>
    %14 = arith.truncf %13 : vector<32x128xf32> to vector<32x128xbf16>
    %c0_5 = arith.constant 0 : index
    %c0_6 = arith.constant 0 : index
    %15 = vector.load %arg3[%c0_5, %c0_6] : memref<128x128xbf16, #tpu.memory_space<vmem>>, vector<128x128xbf16>
    %cst_7 = arith.constant dense<0.000000e+00> : vector<32x128xf32>
    %16 = tpu.matmul %14, %15, %cst_7 {dimension_numbers = #tpu.dot_dimension_numbers<[1], [0], [0], [1], [0, 0, 1, 1], [], []>} : vector<32x128xbf16>, vector<128x128xbf16>, vector<32x128xf32> -> vector<32x128xf32>
    %c0_8 = arith.constant 0 : index
    %c0_9 = arith.constant 0 : index
    %17 = vector.load %arg4[%c0_8, %c0_9] : memref<32x128xf32, #tpu.memory_space<vmem>>, vector<32x128xf32>
    tpu.vector_store %arg4[%c0_8, %c0_9], %16 {strides = array<i32>} : memref<32x128xf32, #tpu.memory_space<vmem>>, vector<32x128xf32>,
    return
  }
  func.func @transform_0(%arg0: i32) -> (i32, i32) {
    %c0_i32 = arith.constant 0 : i32
    %c0_i32_0 = arith.constant 0 : i32
    %c0_i32_1 = arith.constant 0 : i32
    return %c0_i32, %c0_i32_0 : i32, i32
  }
  func.func @transform_1(%arg0: i32) -> (i32, i32) {
    %c0_i32 = arith.constant 0 : i32
    %c0_i32_0 = arith.constant 0 : i32
    %c0_i32_1 = arith.constant 0 : i32
    return %c0_i32, %c0_i32_0 : i32, i32
  }
  func.func @transform_2(%arg0: i32) -> (i32, i32) {
    %c0_i32 = arith.constant 0 : i32
    %c0_i32_0 = arith.constant 0 : i32
    return %c0_i32, %arg0 : i32, i32
  }
  func.func @transform_3(%arg0: i32) -> (i32, i32) {
    %c0_i32 = arith.constant 0 : i32
    %c0_i32_0 = arith.constant 0 : i32
    return %c0_i32, %arg0 : i32, i32
  }
}

module attributes {stable_mosaic.version = 11 : i64} {
  func.func @_layer_kernel(%arg0: i32, %arg1: memref<1x16x128xf32, #tpu.memory_space<vmem>>, %arg2: memref<1x128xf32, #tpu.memory_space<vmem>>, %arg3: memref<128x384xbf16, #tpu.memory_space<vmem>>, %arg4: memref<128x128xbf16, #tpu.memory_space<vmem>>, %arg5: memref<1x128xf32, #tpu.memory_space<vmem>>, %arg6: memref<128x768xbf16, #tpu.memory_space<vmem>>, %arg7: memref<384x128xbf16, #tpu.memory_space<vmem>>, %arg8: memref<16x32xf32, #tpu.memory_space<vmem>>, %arg9: memref<16x32xf32, #tpu.memory_space<vmem>>, %arg10: memref<32x32xf32, #tpu.memory_space<vmem>>, %arg11: memref<1x16x128xf32, #tpu.memory_space<vmem>>) attributes {dimension_semantics = [#tpu.dimension_semantics<parallel>], iteration_bounds = array<i64: 2>, scalar_prefetch = 0 : i64, scratch_operands = 0 : i64, tpu.core_type = #tpu.core_type<tc>, window_params = [{transform_indices = @transform_0, window_bounds = array<i64: 1, 16, 128>}, {pipeline_mode = #tpu.pipeline_mode<synchronous>, transform_indices = @transform_1, window_bounds = array<i64: 1, 128>}, {pipeline_mode = #tpu.pipeline_mode<synchronous>, transform_indices = @transform_2, window_bounds = array<i64: 128, 384>}, {pipeline_mode = #tpu.pipeline_mode<synchronous>, transform_indices = @transform_3, window_bounds = array<i64: 128, 128>}, {pipeline_mode = #tpu.pipeline_mode<synchronous>, transform_indices = @transform_4, window_bounds = array<i64: 1, 128>}, {pipeline_mode = #tpu.pipeline_mode<synchronous>, transform_indices = @transform_5, window_bounds = array<i64: 128, 768>}, {pipeline_mode = #tpu.pipeline_mode<synchronous>, transform_indices = @transform_6, window_bounds = array<i64: 384, 128>}, {pipeline_mode = #tpu.pipeline_mode<synchronous>, transform_indices = @transform_7, window_bounds = array<i64: 16, 32>}, {pipeline_mode = #tpu.pipeline_mode<synchronous>, transform_indices = @transform_8, window_bounds = array<i64: 16, 32>}, {pipeline_mode = #tpu.pipeline_mode<synchronous>, transform_indices = @transform_9, window_bounds = array<i64: 32, 32>}, {transform_indices = @transform_10, window_bounds = array<i64: 1, 16, 128>}]} {
    %c0 = arith.constant 0 : index
    %c0_0 = arith.constant 0 : index
    %c0_1 = arith.constant 0 : index
    %0 = vector.load %arg1[%c0, %c0_0, %c0_1] : memref<1x16x128xf32, #tpu.memory_space<vmem>>, vector<1x16x128xf32>
    %1 = vector.shape_cast %0 : vector<1x16x128xf32> to vector<16x128xf32>
    %2 = arith.mulf %1, %1 : vector<16x128xf32>
    %cst = arith.constant dense<0.000000e+00> : vector<16xf32>
    %3 = vector.multi_reduction <add>, %2, %cst [1] : vector<16x128xf32> to vector<16xf32>
    %4 = vector.shape_cast %3 : vector<16xf32> to vector<16x1xf32>
    %cst_2 = arith.constant 1.280000e+02 : f32
    %5 = vector.broadcast %cst_2 : f32 to vector<16x1xf32>
    %6 = arith.divf %4, %5 : vector<16x1xf32>
    %cst_3 = arith.constant 9.99999974E-6 : f32
    %7 = vector.broadcast %cst_3 : f32 to vector<16x1xf32>
    %8 = arith.addf %6, %7 : vector<16x1xf32>
    %9 = math.rsqrt %8 : vector<16x1xf32>
    %10 = vector.broadcast %9 : vector<16x1xf32> to vector<16x128xf32>
    %11 = arith.mulf %1, %10 : vector<16x128xf32>
    %c0_4 = arith.constant 0 : index
    %c0_5 = arith.constant 0 : index
    %12 = vector.load %arg2[%c0_4, %c0_5] : memref<1x128xf32, #tpu.memory_space<vmem>>, vector<1x128xf32>
    %13 = vector.broadcast %12 : vector<1x128xf32> to vector<16x128xf32>
    %14 = arith.mulf %11, %13 : vector<16x128xf32>
    %15 = arith.truncf %14 : vector<16x128xf32> to vector<16x128xbf16>
    %c0_6 = arith.constant 0 : index
    %c0_7 = arith.constant 0 : index
    %16 = vector.load %arg3[%c0_6, %c0_7] : memref<128x384xbf16, #tpu.memory_space<vmem>>, vector<128x384xbf16>
    %cst_8 = arith.constant dense<0.000000e+00> : vector<16x384xf32>
    %17 = tpu.matmul %15, %16, %cst_8 {dimension_numbers = #tpu.dot_dimension_numbers<[1], [0], [0], [1], [0, 0, 1, 1], [], []>} : vector<16x128xbf16>, vector<128x384xbf16>, vector<16x384xf32> -> vector<16x384xf32>
    %c0_9 = arith.constant 0 : index
    %c0_10 = arith.constant 0 : index
    %18 = vector.load %arg8[%c0_9, %c0_10] : memref<16x32xf32, #tpu.memory_space<vmem>>, vector<16x32xf32>
    %c0_11 = arith.constant 0 : index
    %c0_12 = arith.constant 0 : index
    %19 = vector.load %arg9[%c0_11, %c0_12] : memref<16x32xf32, #tpu.memory_space<vmem>>, vector<16x32xf32>
    %c0_13 = arith.constant 0 : index
    %c0_14 = arith.constant 0 : index
    %20 = vector.load %arg10[%c0_13, %c0_14] : memref<32x32xf32, #tpu.memory_space<vmem>>, vector<32x32xf32>
    %21 = tpu.iota {dimensions = array<i32: 0>} : vector<16x16xi32>
    %22 = tpu.iota {dimensions = array<i32: 1>} : vector<16x16xi32>
    %23 = arith.cmpi sle, %22, %21 : vector<16x16xi32>
    %24 = vector.extract_strided_slice %17 {offsets = [0, 0], sizes = [16, 32], strides = [1, 1]} : vector<16x384xf32> to vector<16x32xf32>
    %25 = vector.extract_strided_slice %17 {offsets = [0, 128], sizes = [16, 32], strides = [1, 1]} : vector<16x384xf32> to vector<16x32xf32>
    %26 = vector.extract_strided_slice %17 {offsets = [0, 256], sizes = [16, 32], strides = [1, 1]} : vector<16x384xf32> to vector<16x32xf32>
    %27 = arith.mulf %24, %18 : vector<16x32xf32>
    %cst_15 = arith.constant dense<0.000000e+00> : vector<16x32xf32>
    %28 = tpu.matmul %24, %20, %cst_15 {dimension_numbers = #tpu.dot_dimension_numbers<[1], [0], [0], [1], [0, 0, 1, 1], [], []>} : vector<16x32xf32>, vector<32x32xf32>, vector<16x32xf32> -> vector<16x32xf32>
    %29 = arith.mulf %28, %19 : vector<16x32xf32>
    %30 = arith.addf %27, %29 : vector<16x32xf32>
    %31 = arith.mulf %25, %18 : vector<16x32xf32>
    %cst_16 = arith.constant dense<0.000000e+00> : vector<16x32xf32>
    %32 = tpu.matmul %25, %20, %cst_16 {dimension_numbers = #tpu.dot_dimension_numbers<[1], [0], [0], [1], [0, 0, 1, 1], [], []>} : vector<16x32xf32>, vector<32x32xf32>, vector<16x32xf32> -> vector<16x32xf32>
    %33 = arith.mulf %32, %19 : vector<16x32xf32>
    %34 = arith.addf %31, %33 : vector<16x32xf32>
    %35 = arith.truncf %30 : vector<16x32xf32> to vector<16x32xbf16>
    %36 = arith.truncf %34 : vector<16x32xf32> to vector<16x32xbf16>
    %37 = arith.truncf %26 : vector<16x32xf32> to vector<16x32xbf16>
    %cst_17 = arith.constant dense<0.000000e+00> : vector<16x16xf32>
    %38 = tpu.matmul %35, %36, %cst_17 {dimension_numbers = #tpu.dot_dimension_numbers<[1], [1], [0], [0], [0, 0, 1, 0], [], []>} : vector<16x32xbf16>, vector<16x32xbf16>, vector<16x16xf32> -> vector<16x16xf32>
    %cst_18 = arith.constant 0.176776692 : f32
    %39 = vector.broadcast %cst_18 : f32 to vector<16x16xf32>
    %40 = arith.mulf %38, %39 : vector<16x16xf32>
    %cst_19 = arith.constant 0xFF800000 : f32
    %41 = vector.broadcast %cst_19 : f32 to vector<16x16xf32>
    %42 = arith.select %23, %40, %41 : vector<16x16xi1>, vector<16x16xf32>
    %cst_20 = arith.constant dense<0xFF800000> : vector<16xf32>
    %43 = vector.multi_reduction <maximumf>, %42, %cst_20 [1] : vector<16x16xf32> to vector<16xf32>
    %44 = vector.shape_cast %43 : vector<16xf32> to vector<16x1xf32>
    %45 = vector.broadcast %44 : vector<16x1xf32> to vector<16x16xf32>
    %46 = arith.subf %42, %45 : vector<16x16xf32>
    %47 = math.exp %46 : vector<16x16xf32>
    %cst_21 = arith.constant dense<0.000000e+00> : vector<16xf32>
    %48 = vector.multi_reduction <add>, %47, %cst_21 [1] : vector<16x16xf32> to vector<16xf32>
    %49 = vector.shape_cast %48 : vector<16xf32> to vector<16x1xf32>
    %50 = vector.broadcast %49 : vector<16x1xf32> to vector<16x16xf32>
    %51 = arith.divf %47, %50 : vector<16x16xf32>
    %52 = arith.truncf %51 : vector<16x16xf32> to vector<16x16xbf16>
    %cst_22 = arith.constant dense<0.000000e+00> : vector<16x32xf32>
    %53 = tpu.matmul %52, %37, %cst_22 {dimension_numbers = #tpu.dot_dimension_numbers<[1], [0], [0], [1], [0, 0, 1, 1], [], []>} : vector<16x16xbf16>, vector<16x32xbf16>, vector<16x32xf32> -> vector<16x32xf32>
    %54 = vector.extract_strided_slice %17 {offsets = [0, 32], sizes = [16, 32], strides = [1, 1]} : vector<16x384xf32> to vector<16x32xf32>
    %55 = vector.extract_strided_slice %17 {offsets = [0, 160], sizes = [16, 32], strides = [1, 1]} : vector<16x384xf32> to vector<16x32xf32>
    %56 = vector.extract_strided_slice %17 {offsets = [0, 288], sizes = [16, 32], strides = [1, 1]} : vector<16x384xf32> to vector<16x32xf32>
    %57 = arith.mulf %54, %18 : vector<16x32xf32>
    %cst_23 = arith.constant dense<0.000000e+00> : vector<16x32xf32>
    %58 = tpu.matmul %54, %20, %cst_23 {dimension_numbers = #tpu.dot_dimension_numbers<[1], [0], [0], [1], [0, 0, 1, 1], [], []>} : vector<16x32xf32>, vector<32x32xf32>, vector<16x32xf32> -> vector<16x32xf32>
    %59 = arith.mulf %58, %19 : vector<16x32xf32>
    %60 = arith.addf %57, %59 : vector<16x32xf32>
    %61 = arith.mulf %55, %18 : vector<16x32xf32>
    %cst_24 = arith.constant dense<0.000000e+00> : vector<16x32xf32>
    %62 = tpu.matmul %55, %20, %cst_24 {dimension_numbers = #tpu.dot_dimension_numbers<[1], [0], [0], [1], [0, 0, 1, 1], [], []>} : vector<16x32xf32>, vector<32x32xf32>, vector<16x32xf32> -> vector<16x32xf32>
    %63 = arith.mulf %62, %19 : vector<16x32xf32>
    %64 = arith.addf %61, %63 : vector<16x32xf32>
    %65 = arith.truncf %60 : vector<16x32xf32> to vector<16x32xbf16>
    %66 = arith.truncf %64 : vector<16x32xf32> to vector<16x32xbf16>
    %67 = arith.truncf %56 : vector<16x32xf32> to vector<16x32xbf16>
    %cst_25 = arith.constant dense<0.000000e+00> : vector<16x16xf32>
    %68 = tpu.matmul %65, %66, %cst_25 {dimension_numbers = #tpu.dot_dimension_numbers<[1], [1], [0], [0], [0, 0, 1, 0], [], []>} : vector<16x32xbf16>, vector<16x32xbf16>, vector<16x16xf32> -> vector<16x16xf32>
    %cst_26 = arith.constant 0.176776692 : f32
    %69 = vector.broadcast %cst_26 : f32 to vector<16x16xf32>
    %70 = arith.mulf %68, %69 : vector<16x16xf32>
    %cst_27 = arith.constant 0xFF800000 : f32
    %71 = vector.broadcast %cst_27 : f32 to vector<16x16xf32>
    %72 = arith.select %23, %70, %71 : vector<16x16xi1>, vector<16x16xf32>
    %cst_28 = arith.constant dense<0xFF800000> : vector<16xf32>
    %73 = vector.multi_reduction <maximumf>, %72, %cst_28 [1] : vector<16x16xf32> to vector<16xf32>
    %74 = vector.shape_cast %73 : vector<16xf32> to vector<16x1xf32>
    %75 = vector.broadcast %74 : vector<16x1xf32> to vector<16x16xf32>
    %76 = arith.subf %72, %75 : vector<16x16xf32>
    %77 = math.exp %76 : vector<16x16xf32>
    %cst_29 = arith.constant dense<0.000000e+00> : vector<16xf32>
    %78 = vector.multi_reduction <add>, %77, %cst_29 [1] : vector<16x16xf32> to vector<16xf32>
    %79 = vector.shape_cast %78 : vector<16xf32> to vector<16x1xf32>
    %80 = vector.broadcast %79 : vector<16x1xf32> to vector<16x16xf32>
    %81 = arith.divf %77, %80 : vector<16x16xf32>
    %82 = arith.truncf %81 : vector<16x16xf32> to vector<16x16xbf16>
    %cst_30 = arith.constant dense<0.000000e+00> : vector<16x32xf32>
    %83 = tpu.matmul %82, %67, %cst_30 {dimension_numbers = #tpu.dot_dimension_numbers<[1], [0], [0], [1], [0, 0, 1, 1], [], []>} : vector<16x16xbf16>, vector<16x32xbf16>, vector<16x32xf32> -> vector<16x32xf32>
    %84 = vector.extract_strided_slice %17 {offsets = [0, 64], sizes = [16, 32], strides = [1, 1]} : vector<16x384xf32> to vector<16x32xf32>
    %85 = vector.extract_strided_slice %17 {offsets = [0, 192], sizes = [16, 32], strides = [1, 1]} : vector<16x384xf32> to vector<16x32xf32>
    %86 = vector.extract_strided_slice %17 {offsets = [0, 320], sizes = [16, 32], strides = [1, 1]} : vector<16x384xf32> to vector<16x32xf32>
    %87 = arith.mulf %84, %18 : vector<16x32xf32>
    %cst_31 = arith.constant dense<0.000000e+00> : vector<16x32xf32>
    %88 = tpu.matmul %84, %20, %cst_31 {dimension_numbers = #tpu.dot_dimension_numbers<[1], [0], [0], [1], [0, 0, 1, 1], [], []>} : vector<16x32xf32>, vector<32x32xf32>, vector<16x32xf32> -> vector<16x32xf32>
    %89 = arith.mulf %88, %19 : vector<16x32xf32>
    %90 = arith.addf %87, %89 : vector<16x32xf32>
    %91 = arith.mulf %85, %18 : vector<16x32xf32>
    %cst_32 = arith.constant dense<0.000000e+00> : vector<16x32xf32>
    %92 = tpu.matmul %85, %20, %cst_32 {dimension_numbers = #tpu.dot_dimension_numbers<[1], [0], [0], [1], [0, 0, 1, 1], [], []>} : vector<16x32xf32>, vector<32x32xf32>, vector<16x32xf32> -> vector<16x32xf32>
    %93 = arith.mulf %92, %19 : vector<16x32xf32>
    %94 = arith.addf %91, %93 : vector<16x32xf32>
    %95 = arith.truncf %90 : vector<16x32xf32> to vector<16x32xbf16>
    %96 = arith.truncf %94 : vector<16x32xf32> to vector<16x32xbf16>
    %97 = arith.truncf %86 : vector<16x32xf32> to vector<16x32xbf16>
    %cst_33 = arith.constant dense<0.000000e+00> : vector<16x16xf32>
    %98 = tpu.matmul %95, %96, %cst_33 {dimension_numbers = #tpu.dot_dimension_numbers<[1], [1], [0], [0], [0, 0, 1, 0], [], []>} : vector<16x32xbf16>, vector<16x32xbf16>, vector<16x16xf32> -> vector<16x16xf32>
    %cst_34 = arith.constant 0.176776692 : f32
    %99 = vector.broadcast %cst_34 : f32 to vector<16x16xf32>
    %100 = arith.mulf %98, %99 : vector<16x16xf32>
    %cst_35 = arith.constant 0xFF800000 : f32
    %101 = vector.broadcast %cst_35 : f32 to vector<16x16xf32>
    %102 = arith.select %23, %100, %101 : vector<16x16xi1>, vector<16x16xf32>
    %cst_36 = arith.constant dense<0xFF800000> : vector<16xf32>
    %103 = vector.multi_reduction <maximumf>, %102, %cst_36 [1] : vector<16x16xf32> to vector<16xf32>
    %104 = vector.shape_cast %103 : vector<16xf32> to vector<16x1xf32>
    %105 = vector.broadcast %104 : vector<16x1xf32> to vector<16x16xf32>
    %106 = arith.subf %102, %105 : vector<16x16xf32>
    %107 = math.exp %106 : vector<16x16xf32>
    %cst_37 = arith.constant dense<0.000000e+00> : vector<16xf32>
    %108 = vector.multi_reduction <add>, %107, %cst_37 [1] : vector<16x16xf32> to vector<16xf32>
    %109 = vector.shape_cast %108 : vector<16xf32> to vector<16x1xf32>
    %110 = vector.broadcast %109 : vector<16x1xf32> to vector<16x16xf32>
    %111 = arith.divf %107, %110 : vector<16x16xf32>
    %112 = arith.truncf %111 : vector<16x16xf32> to vector<16x16xbf16>
    %cst_38 = arith.constant dense<0.000000e+00> : vector<16x32xf32>
    %113 = tpu.matmul %112, %97, %cst_38 {dimension_numbers = #tpu.dot_dimension_numbers<[1], [0], [0], [1], [0, 0, 1, 1], [], []>} : vector<16x16xbf16>, vector<16x32xbf16>, vector<16x32xf32> -> vector<16x32xf32>
    %114 = vector.extract_strided_slice %17 {offsets = [0, 96], sizes = [16, 32], strides = [1, 1]} : vector<16x384xf32> to vector<16x32xf32>
    %115 = vector.extract_strided_slice %17 {offsets = [0, 224], sizes = [16, 32], strides = [1, 1]} : vector<16x384xf32> to vector<16x32xf32>
    %116 = vector.extract_strided_slice %17 {offsets = [0, 352], sizes = [16, 32], strides = [1, 1]} : vector<16x384xf32> to vector<16x32xf32>
    %117 = arith.mulf %114, %18 : vector<16x32xf32>
    %cst_39 = arith.constant dense<0.000000e+00> : vector<16x32xf32>
    %118 = tpu.matmul %114, %20, %cst_39 {dimension_numbers = #tpu.dot_dimension_numbers<[1], [0], [0], [1], [0, 0, 1, 1], [], []>} : vector<16x32xf32>, vector<32x32xf32>, vector<16x32xf32> -> vector<16x32xf32>
    %119 = arith.mulf %118, %19 : vector<16x32xf32>
    %120 = arith.addf %117, %119 : vector<16x32xf32>
    %121 = arith.mulf %115, %18 : vector<16x32xf32>
    %cst_40 = arith.constant dense<0.000000e+00> : vector<16x32xf32>
    %122 = tpu.matmul %115, %20, %cst_40 {dimension_numbers = #tpu.dot_dimension_numbers<[1], [0], [0], [1], [0, 0, 1, 1], [], []>} : vector<16x32xf32>, vector<32x32xf32>, vector<16x32xf32> -> vector<16x32xf32>
    %123 = arith.mulf %122, %19 : vector<16x32xf32>
    %124 = arith.addf %121, %123 : vector<16x32xf32>
    %125 = arith.truncf %120 : vector<16x32xf32> to vector<16x32xbf16>
    %126 = arith.truncf %124 : vector<16x32xf32> to vector<16x32xbf16>
    %127 = arith.truncf %116 : vector<16x32xf32> to vector<16x32xbf16>
    %cst_41 = arith.constant dense<0.000000e+00> : vector<16x16xf32>
    %128 = tpu.matmul %125, %126, %cst_41 {dimension_numbers = #tpu.dot_dimension_numbers<[1], [1], [0], [0], [0, 0, 1, 0], [], []>} : vector<16x32xbf16>, vector<16x32xbf16>, vector<16x16xf32> -> vector<16x16xf32>
    %cst_42 = arith.constant 0.176776692 : f32
    %129 = vector.broadcast %cst_42 : f32 to vector<16x16xf32>
    %130 = arith.mulf %128, %129 : vector<16x16xf32>
    %cst_43 = arith.constant 0xFF800000 : f32
    %131 = vector.broadcast %cst_43 : f32 to vector<16x16xf32>
    %132 = arith.select %23, %130, %131 : vector<16x16xi1>, vector<16x16xf32>
    %cst_44 = arith.constant dense<0xFF800000> : vector<16xf32>
    %133 = vector.multi_reduction <maximumf>, %132, %cst_44 [1] : vector<16x16xf32> to vector<16xf32>
    %134 = vector.shape_cast %133 : vector<16xf32> to vector<16x1xf32>
    %135 = vector.broadcast %134 : vector<16x1xf32> to vector<16x16xf32>
    %136 = arith.subf %132, %135 : vector<16x16xf32>
    %137 = math.exp %136 : vector<16x16xf32>
    %cst_45 = arith.constant dense<0.000000e+00> : vector<16xf32>
    %138 = vector.multi_reduction <add>, %137, %cst_45 [1] : vector<16x16xf32> to vector<16xf32>
    %139 = vector.shape_cast %138 : vector<16xf32> to vector<16x1xf32>
    %140 = vector.broadcast %139 : vector<16x1xf32> to vector<16x16xf32>
    %141 = arith.divf %137, %140 : vector<16x16xf32>
    %142 = arith.truncf %141 : vector<16x16xf32> to vector<16x16xbf16>
    %cst_46 = arith.constant dense<0.000000e+00> : vector<16x32xf32>
    %143 = tpu.matmul %142, %127, %cst_46 {dimension_numbers = #tpu.dot_dimension_numbers<[1], [0], [0], [1], [0, 0, 1, 1], [], []>} : vector<16x16xbf16>, vector<16x32xbf16>, vector<16x32xf32> -> vector<16x32xf32>
    %144 = tpu.concatenate %53, %83, %113, %143 in 1 : vector<16x32xf32>, vector<16x32xf32>, vector<16x32xf32>, vector<16x32xf32> -> vector<16x128xf32>
    %145 = arith.truncf %144 : vector<16x128xf32> to vector<16x128xbf16>
    %c0_47 = arith.constant 0 : index
    %c0_48 = arith.constant 0 : index
    %146 = vector.load %arg4[%c0_47, %c0_48] : memref<128x128xbf16, #tpu.memory_space<vmem>>, vector<128x128xbf16>
    %cst_49 = arith.constant dense<0.000000e+00> : vector<16x128xf32>
    %147 = tpu.matmul %145, %146, %cst_49 {dimension_numbers = #tpu.dot_dimension_numbers<[1], [0], [0], [1], [0, 0, 1, 1], [], []>} : vector<16x128xbf16>, vector<128x128xbf16>, vector<16x128xf32> -> vector<16x128xf32>
    %148 = arith.addf %1, %147 : vector<16x128xf32>
    %149 = arith.mulf %148, %148 : vector<16x128xf32>
    %cst_50 = arith.constant dense<0.000000e+00> : vector<16xf32>
    %150 = vector.multi_reduction <add>, %149, %cst_50 [1] : vector<16x128xf32> to vector<16xf32>
    %151 = vector.shape_cast %150 : vector<16xf32> to vector<16x1xf32>
    %cst_51 = arith.constant 1.280000e+02 : f32
    %152 = vector.broadcast %cst_51 : f32 to vector<16x1xf32>
    %153 = arith.divf %151, %152 : vector<16x1xf32>
    %cst_52 = arith.constant 9.99999974E-6 : f32
    %154 = vector.broadcast %cst_52 : f32 to vector<16x1xf32>
    %155 = arith.addf %153, %154 : vector<16x1xf32>
    %156 = math.rsqrt %155 : vector<16x1xf32>
    %157 = vector.broadcast %156 : vector<16x1xf32> to vector<16x128xf32>
    %158 = arith.mulf %148, %157 : vector<16x128xf32>
    %c0_53 = arith.constant 0 : index
    %c0_54 = arith.constant 0 : index
    %159 = vector.load %arg5[%c0_53, %c0_54] : memref<1x128xf32, #tpu.memory_space<vmem>>, vector<1x128xf32>
    %160 = vector.broadcast %159 : vector<1x128xf32> to vector<16x128xf32>
    %161 = arith.mulf %158, %160 : vector<16x128xf32>
    %162 = arith.truncf %161 : vector<16x128xf32> to vector<16x128xbf16>
    %c0_55 = arith.constant 0 : index
    %c0_56 = arith.constant 0 : index
    %163 = vector.load %arg6[%c0_55, %c0_56] : memref<128x768xbf16, #tpu.memory_space<vmem>>, vector<128x768xbf16>
    %cst_57 = arith.constant dense<0.000000e+00> : vector<16x768xf32>
    %164 = tpu.matmul %162, %163, %cst_57 {dimension_numbers = #tpu.dot_dimension_numbers<[1], [0], [0], [1], [0, 0, 1, 1], [], []>} : vector<16x128xbf16>, vector<128x768xbf16>, vector<16x768xf32> -> vector<16x768xf32>
    %165 = vector.extract_strided_slice %164 {offsets = [0, 0], sizes = [16, 384], strides = [1, 1]} : vector<16x768xf32> to vector<16x384xf32>
    %166 = vector.extract_strided_slice %164 {offsets = [0, 384], sizes = [16, 384], strides = [1, 1]} : vector<16x768xf32> to vector<16x384xf32>
    %167 = arith.negf %165 : vector<16x384xf32>
    %168 = math.exp %167 : vector<16x384xf32>
    %cst_58 = arith.constant 1.000000e+00 : f32
    %169 = vector.broadcast %cst_58 : f32 to vector<16x384xf32>
    %170 = arith.addf %169, %168 : vector<16x384xf32>
    %171 = arith.divf %169, %170 : vector<16x384xf32>
    %172 = arith.mulf %165, %171 : vector<16x384xf32>
    %173 = arith.mulf %172, %166 : vector<16x384xf32>
    %174 = arith.truncf %173 : vector<16x384xf32> to vector<16x384xbf16>
    %c0_59 = arith.constant 0 : index
    %c0_60 = arith.constant 0 : index
    %175 = vector.load %arg7[%c0_59, %c0_60] : memref<384x128xbf16, #tpu.memory_space<vmem>>, vector<384x128xbf16>
    %cst_61 = arith.constant dense<0.000000e+00> : vector<16x128xf32>
    %176 = tpu.matmul %174, %175, %cst_61 {dimension_numbers = #tpu.dot_dimension_numbers<[1], [0], [0], [1], [0, 0, 1, 1], [], []>} : vector<16x384xbf16>, vector<384x128xbf16>, vector<16x128xf32> -> vector<16x128xf32>
    %177 = arith.addf %148, %176 : vector<16x128xf32>
    %c0_62 = arith.constant 0 : index
    %c0_63 = arith.constant 0 : index
    %c0_64 = arith.constant 0 : index
    %178 = vector.load %arg11[%c0_62, %c0_63, %c0_64] : memref<1x16x128xf32, #tpu.memory_space<vmem>>, vector<1x16x128xf32>
    %179 = vector.shape_cast %178 : vector<1x16x128xf32> to vector<16x128xf32>
    %180 = vector.shape_cast %177 : vector<16x128xf32> to vector<1x16x128xf32>
    tpu.vector_store %arg11[%c0_62, %c0_63, %c0_64], %180 {strides = array<i32>} : memref<1x16x128xf32, #tpu.memory_space<vmem>>, vector<1x16x128xf32>,
    return
  }
  func.func @transform_0(%arg0: i32) -> (i32, i32, i32) {
    %c0_i32 = arith.constant 0 : i32
    %c0_i32_0 = arith.constant 0 : i32
    %c0_i32_1 = arith.constant 0 : i32
    return %arg0, %c0_i32, %c0_i32_0 : i32, i32, i32
  }
  func.func @transform_1(%arg0: i32) -> (i32, i32) {
    %c0_i32 = arith.constant 0 : i32
    %c0_i32_0 = arith.constant 0 : i32
    %c0_i32_1 = arith.constant 0 : i32
    return %c0_i32, %c0_i32_0 : i32, i32
  }
  func.func @transform_2(%arg0: i32) -> (i32, i32) {
    %c0_i32 = arith.constant 0 : i32
    %c0_i32_0 = arith.constant 0 : i32
    %c0_i32_1 = arith.constant 0 : i32
    return %c0_i32, %c0_i32_0 : i32, i32
  }
  func.func @transform_3(%arg0: i32) -> (i32, i32) {
    %c0_i32 = arith.constant 0 : i32
    %c0_i32_0 = arith.constant 0 : i32
    %c0_i32_1 = arith.constant 0 : i32
    return %c0_i32, %c0_i32_0 : i32, i32
  }
  func.func @transform_4(%arg0: i32) -> (i32, i32) {
    %c0_i32 = arith.constant 0 : i32
    %c0_i32_0 = arith.constant 0 : i32
    %c0_i32_1 = arith.constant 0 : i32
    return %c0_i32, %c0_i32_0 : i32, i32
  }
  func.func @transform_5(%arg0: i32) -> (i32, i32) {
    %c0_i32 = arith.constant 0 : i32
    %c0_i32_0 = arith.constant 0 : i32
    %c0_i32_1 = arith.constant 0 : i32
    return %c0_i32, %c0_i32_0 : i32, i32
  }
  func.func @transform_6(%arg0: i32) -> (i32, i32) {
    %c0_i32 = arith.constant 0 : i32
    %c0_i32_0 = arith.constant 0 : i32
    %c0_i32_1 = arith.constant 0 : i32
    return %c0_i32, %c0_i32_0 : i32, i32
  }
  func.func @transform_7(%arg0: i32) -> (i32, i32) {
    %c0_i32 = arith.constant 0 : i32
    %c0_i32_0 = arith.constant 0 : i32
    %c0_i32_1 = arith.constant 0 : i32
    return %c0_i32, %c0_i32_0 : i32, i32
  }
  func.func @transform_8(%arg0: i32) -> (i32, i32) {
    %c0_i32 = arith.constant 0 : i32
    %c0_i32_0 = arith.constant 0 : i32
    %c0_i32_1 = arith.constant 0 : i32
    return %c0_i32, %c0_i32_0 : i32, i32
  }
  func.func @transform_9(%arg0: i32) -> (i32, i32) {
    %c0_i32 = arith.constant 0 : i32
    %c0_i32_0 = arith.constant 0 : i32
    %c0_i32_1 = arith.constant 0 : i32
    return %c0_i32, %c0_i32_0 : i32, i32
  }
  func.func @transform_10(%arg0: i32) -> (i32, i32, i32) {
    %c0_i32 = arith.constant 0 : i32
    %c0_i32_0 = arith.constant 0 : i32
    %c0_i32_1 = arith.constant 0 : i32
    return %arg0, %c0_i32, %c0_i32_0 : i32, i32, i32
  }
}

</mosaic_0001>

<llo_original>
// kernel: transformer_forward.5
$region0: #{transformer_forward.5}
  #allocation0 [shape = 'u32[]', space=smem, size = 0x4, offset = 0x4, fixed_abs, tag = 'smem constant byte address 0x4 - core index']
  #allocation1 [shape = 'u32[144,128]{1,0:T(1,128)}', space=vmem, size = 0x12000, scoped, tag = 'internal scratch']
  %s0 = inlined_call_operand.vmem [shape: f32[32,128], index: 0, kind: input, shape index: {}]
  %s1 = inlined_call_operand.vmem [shape: f32[1,128], index: 1, kind: input, shape index: {}]
  %s2 = inlined_call_operand.vmem [shape: bf16[128,256], index: 2, kind: input, shape index: {}]
  %s3 = inlined_call_operand.hbm [shape: f32[32,256], index: 3, kind: output, shape index: {}]
  %s4 = sld [smem:[#allocation0]]
  $region86: #{transformer_forward.5} parent=0
    _
  %s6 = ssub.s32 1, %s4
  %s7 = scalar_select 0, %s6, %s4
  $region1: #{transformer_forward.5} parent=0
    #allocation2 [shape = 'u8[65536]{0}', space=vmem, size = 0x10000, scoped, tag = 'input window, operand 2']
    #allocation3 [shape = 'u8[32768]{0}', space=vmem, size = 0x8000, scoped, tag = 'output window, operand 0']
    #allocation4 [shape = 's32[2]{0}', space=sflag, size = 0x8, scoped, tag = 'scoped memory for transformer_forward.5']
    %8 = vsyncpa [#allocation4], 0
    %s9 = scalar_lea.sflag [#allocation4], 1
    %10 = vsyncpa %s9, 0
    loop: start=0, step=1, limit=4
    $region2: #{transformer_forward.5} parent=1 // loop_pre_header
      _
    $region3: #{transformer_forward.5} parent=1 // loop_header
      %s12 = sphi 0, %s16
      %p13 = scmp.ge.s32.totalorder %s12, 4
      %s20 = sphi 0, %s20
      %s22 = sphi 0, %s20
      %s23 = sphi 0, %s22
      %s37 = sphi 0, %s23
      %s41 = sphi 0, %s41
      %s43 = sphi 0, %s41
      %s44 = sphi 0, %s43
      %s58 = sphi 0, %s44
      %s64 = sphi 0, %s66
      %s67 = sphi 0, %s64
      %s68 = sphi 0, %s67
      %s84 = sphi 0, %s68
      %s90 = sphi 0, %s92
      %s93 = sphi 0, %s90
      %s94 = sphi 0, %s93
      %s110 = sphi 0, %s94
    $region4: #{transformer_forward.5} parent=1 // loop_header_branch
      %15 = sbr.rel (%p13) target = $region8
    $region5: #{transformer_forward.5} parent=1 // loop_body
      %s17 = ssub.s32 %s12, 1
      %s18 = ssub.s32 %s12, 2
      %s19 = sadd.s32 %s12, 1
      %s21 = sadd.s32 %s20, 1
      %p24 = scmp.eq.s32.totalorder %s12, 1
      %p25 = scmp.ne.s32.totalorder %s20, %s22
      %p26 = scmp.eq.s32.totalorder %s12, 0
      %p27 = por %p25, %p26
      %p28 = scmp.ne.s32.totalorder %s20, %s22
      %p29 = scmp.eq.s32.totalorder %s17, 1
      %p30 = por %p28, %p29
      %p31 = scmp.ne.s32.totalorder %s22, %s23
      %p32 = scmp.eq.s32.totalorder %s17, 0
      %p33 = por %p31, %p32
      %p34 = scmp.ne.s32.totalorder %s22, %s23
      %p35 = scmp.eq.s32.totalorder %s18, 1
      %p36 = por %p34, %p35
      %p38 = scmp.ne.s32.totalorder %s23, %s37
      %p39 = scmp.eq.s32.totalorder %s18, 0
      %p40 = por %p38, %p39
      %s42 = sadd.s32 %s41, 1
      %p45 = scmp.eq.s32.totalorder %s12, 1
      %p46 = scmp.ne.s32.totalorder %s41, %s43
      %p47 = scmp.eq.s32.totalorder %s12, 0
      %p48 = por %p46, %p47
      %p49 = scmp.ne.s32.totalorder %s41, %s43
      %p50 = scmp.eq.s32.totalorder %s17, 1
      %p51 = por %p49, %p50
      %p52 = scmp.ne.s32.totalorder %s43, %s44
      %p53 = scmp.eq.s32.totalorder %s17, 0
      %p54 = por %p52, %p53
      %p55 = scmp.ne.s32.totalorder %s43, %s44
      %p56 = scmp.eq.s32.totalorder %s18, 1
      %p57 = por %p55, %p56
      %p59 = scmp.ne.s32.totalorder %s44, %s58
      %p60 = scmp.eq.s32.totalorder %s18, 0
      %p61 = por %p59, %p60
      %s62 = ssub.s32 %s12, %s19
      %p63 = scmp.eq.s32.totalorder %s62, 0
      %s65 = sadd.s32 %s64, 1
      %s66 = scalar_select %p63, %s64, %s65
      %p69 = pneg %p63
      %p70 = scmp.eq.s32.totalorder %s12, 1
      %p71 = por %p69, %p70
      %p72 = scmp.ne.s32.totalorder %s64, %s67
      %p73 = scmp.eq.s32.totalorder %s12, 0
      %p74 = por %p72, %p73
      %p75 = scmp.ne.s32.totalorder %s64, %s67
      %p76 = scmp.eq.s32.totalorder %s17, 1
      %p77 = por %p75, %p76
      %p78 = scmp.ne.s32.totalorder %s67, %s68
      %p79 = scmp.eq.s32.totalorder %s17, 0
      %p80 = por %p78, %p79
      %p81 = scmp.ne.s32.totalorder %s67, %s68
      %p82 = scmp.eq.s32.totalorder %s18, 1
      %p83 = por %p81, %p82
      %p85 = scmp.ne.s32.totalorder %s68, %s84
      %p86 = scmp.eq.s32.totalorder %s18, 0
      %p87 = por %p85, %p86
      %s88 = ssub.s32 %s12, %s19
      %p89 = scmp.eq.s32.totalorder %s88, 0
      %s91 = sadd.s32 %s90, 1
      %s92 = scalar_select %p89, %s90, %s91
      %p95 = pneg %p89
      %p96 = scmp.eq.s32.totalorder %s12, 1
      %p97 = por %p95, %p96
      %p98 = scmp.ne.s32.totalorder %s90, %s93
      %p99 = scmp.eq.s32.totalorder %s12, 0
      %p100 = por %p98, %p99
      %p101 = scmp.ne.s32.totalorder %s90, %s93
      %p102 = scmp.eq.s32.totalorder %s17, 1
      %p103 = por %p101, %p102
      %p104 = scmp.ne.s32.totalorder %s93, %s94
      %p105 = scmp.eq.s32.totalorder %s17, 0
      %p106 = por %p104, %p105
      %p107 = scmp.ne.s32.totalorder %s93, %s94
      %p108 = scmp.eq.s32.totalorder %s18, 1
      %p109 = por %p107, %p108
      %p111 = scmp.ne.s32.totalorder %s94, %s110
      %p112 = scmp.eq.s32.totalorder %s18, 0
      %p113 = por %p111, %p112
      %p114 = scmp.le.s32.totalorder 1, %s12
      %p115 = scmp.lt.s32.totalorder %s12, 3
      %p116 = pnand %p114, %p115
      %p117 = pneg %p116
      // Predicated region
      $region9: #{transformer_forward.5} parent=5 // pred_check
        _
      $region10: #{transformer_forward.5} parent=5 // pred_check_branch
        %119 = sbr.rel (%p116) target = $region12
      $region11: #{transformer_forward.5} parent=5 // pred_region
        %s120 = ssub.s32 %s12, 1
        // Predicated region
        $region13: #{transformer_forward.5} parent=11 // pred_check
          %p121 = pneg %p33
        $region14: #{transformer_forward.5} parent=11 // pred_check_branch
          %123 = sbr.rel (%p121) target = $region16
        $region15: #{transformer_forward.5} parent=11 // pred_region
          _
        $region16: #{transformer_forward.5} parent=11 // pred_fallthru
          _
        // Predicated region
        $region17: #{transformer_forward.5} parent=11 // pred_check
          %p124 = pneg %p54
        $region18: #{transformer_forward.5} parent=11 // pred_check_branch
          %126 = sbr.rel (%p124) target = $region20
        $region19: #{transformer_forward.5} parent=11 // pred_region
          _
        $region20: #{transformer_forward.5} parent=11 // pred_fallthru
          _
      $region12: #{transformer_forward.5} parent=5 // pred_fallthru
        _
      %p127 = scmp.lt.s32.totalorder %s12, 2
      // Predicated region
      $region21: #{transformer_forward.5} parent=5 // pred_check
        %p128 = pneg %p127
      $region22: #{transformer_forward.5} parent=5 // pred_check_branch
        %130 = sbr.rel (%p128) target = $region24
      $region23: #{transformer_forward.5} parent=5 // pred_region
        // Predicated region
        $region25: #{transformer_forward.5} parent=23 // pred_check
          %p131 = pneg %p74
        $region26: #{transformer_forward.5} parent=23 // pred_check_branch
          %133 = sbr.rel (%p131) target = $region28
        $region27: #{transformer_forward.5} parent=23 // pred_region
          %s134 = sand.u32 %s64, 1
          %s135 = sand.u32 %s64, 1
          %s136 = smul.addr %s135, 64
          %s137 = scalar_lea.vmem [#allocation2], %s136
          %s138 = smul.addr %s12, 4
          %s139 = scalar_lea.vmem %s2, %s138
          // Predicated region
          $region29: #{transformer_forward.5} parent=27 // pred_check
            _
          $region30: #{transformer_forward.5} parent=27 // pred_check_branch
            %141 = sbr.rel (0) target = $region32
          $region31: #{transformer_forward.5} parent=27 // pred_region
            // Predicated region
            $region33: #{transformer_forward.5} parent=31 // pred_check
              _
            $region34: #{transformer_forward.5} parent=31 // pred_check_branch
              %143 = sbr.rel target = $region36
            $region35: #{transformer_forward.5} parent=31 // pred_region
              // Predicated region
              $region48: #{transformer_forward.5} parent=35 // pred_check
                _
              $region49: #{transformer_forward.5} parent=35 // pred_check_branch
                %188 = sbr.rel (0) target = $region51
              $region50: #{transformer_forward.5} parent=35 // pred_region
                loop: start=0, step=1, limit=1
                $region52: #{transformer_forward.5} parent=50 // loop_pre_header
                  _
                $region53: #{transformer_forward.5} parent=50 // loop_header
                  %s190 = sphi 0, %s194
                  %p191 = scmp.ge.s32.totalorder %s190, 1
                  %s195 = sphi %s139, %s139
                  %s196 = sphi %s137, %s137
                $region54: #{transformer_forward.5} parent=50 // loop_header_branch
                  %193 = sbr.rel (%p191) target = $region58
                $region55: #{transformer_forward.5} parent=50 // loop_body
                  _
                $region56: #{transformer_forward.5} parent=50 // loop_footer
                  %s194 = sadd.s32 1, %s190
                $region57: #{transformer_forward.5} parent=50 // loop_footer_branch
                  %189 = sbr.rel target = $region53
                $region58: #{transformer_forward.5} parent=50 // loop_exit
                  _
                loop: start=0, step=1, limit=1
                $region59: #{transformer_forward.5} parent=50 // loop_pre_header
                  _
                $region60: #{transformer_forward.5} parent=50 // loop_header
                  %s199 = sphi 0, %s203
                  %p200 = scmp.ge.s32.totalorder %s199, 1
                  %s204 = sphi %s139, %s139
                  %s205 = sphi %s137, %s137
                $region61: #{transformer_forward.5} parent=50 // loop_header_branch
                  %202 = sbr.rel (%p200) target = $region65
                $region62: #{transformer_forward.5} parent=50 // loop_body
                  %v206 = vld [vmem:[%s204] sm:$0xf]
                  %207 = vst [vmem:[%s205] sm:$0xf] %v206
                  %v208 = vld [vmem:[%s204 + $0x8] sm:$0xf]
                  %209 = vst [vmem:[%s205 + $0x4] sm:$0xf] %v208
                  %v210 = vld [vmem:[%s204 + $0x10] sm:$0xf]
                  %211 = vst [vmem:[%s205 + $0x8] sm:$0xf] %v210
                  %v212 = vld [vmem:[%s204 + $0x18] sm:$0xf]
                  %213 = vst [vmem:[%s205 + $0xc] sm:$0xf] %v212
                  %v214 = vld [vmem:[%s204 + $0x20] sm:$0xf]
                  %215 = vst [vmem:[%s205 + $0x10] sm:$0xf] %v214
                  %v216 = vld [vmem:[%s204 + $0x28] sm:$0xf]
                  %217 = vst [vmem:[%s205 + $0x14] sm:$0xf] %v216
                  %v218 = vld [vmem:[%s204 + $0x30] sm:$0xf]
                  %219 = vst [vmem:[%s205 + $0x18] sm:$0xf] %v218
                  %v220 = vld [vmem:[%s204 + $0x38] sm:$0xf]
                  %221 = vst [vmem:[%s205 + $0x1c] sm:$0xf] %v220
                  %v222 = vld [vmem:[%s204 + $0x40] sm:$0xf]
                  %223 = vst [vmem:[%s205 + $0x20] sm:$0xf] %v222
                  %v224 = vld [vmem:[%s204 + $0x48] sm:$0xf]
                  %225 = vst [vmem:[%s205 + $0x24] sm:$0xf] %v224
                  %v226 = vld [vmem:[%s204 + $0x50] sm:$0xf]
                  %227 = vst [vmem:[%s205 + $0x28] sm:$0xf] %v226
                  %v228 = vld [vmem:[%s204 + $0x58] sm:$0xf]
                  %229 = vst [vmem:[%s205 + $0x2c] sm:$0xf] %v228
                  %v230 = vld [vmem:[%s204 + $0x60] sm:$0xf]
                  %231 = vst [vmem:[%s205 + $0x30] sm:$0xf] %v230
                  %v232 = vld [vmem:[%s204 + $0x68] sm:$0xf]
                  %233 = vst [vmem:[%s205 + $0x34] sm:$0xf] %v232
                  %v234 = vld [vmem:[%s204 + $0x70] sm:$0xf]
                  %235 = vst [vmem:[%s205 + $0x38] sm:$0xf] %v234
                  %v236 = vld [vmem:[%s204 + $0x78] sm:$0xf]
                  %237 = vst [vmem:[%s205 + $0x3c] sm:$0xf] %v236
                $region63: #{transformer_forward.5} parent=50 // loop_footer
                  %s203 = sadd.s32 1, %s199
                $region64: #{transformer_forward.5} parent=50 // loop_footer_branch
                  %198 = sbr.rel target = $region60
                $region65: #{transformer_forward.5} parent=50 // loop_exit
                  _
              $region51: #{transformer_forward.5} parent=35 // pred_fallthru
                _
            $region36: #{transformer_forward.5} parent=31 // pred_fallthru
              _
            // Predicated region
            $region37: #{transformer_forward.5} parent=31 // pred_check
              _
            $region38: #{transformer_forward.5} parent=31 // pred_check_branch
              %145 = sbr.rel (0) target = $region40
            $region39: #{transformer_forward.5} parent=31 // pred_region
              loop: start=0, step=1, limit=1
              $region41: #{transformer_forward.5} parent=39 // loop_pre_header
                _
              $region42: #{transformer_forward.5} parent=39 // loop_header
                %s148 = sphi 0, %s152
                %p149 = scmp.ge.s32.totalorder %s148, 1
                %s153 = sphi %s139, %s139
                %s154 = sphi %s137, %s137
              $region43: #{transformer_forward.5} parent=39 // loop_header_branch
                %151 = sbr.rel (%p149) target = $region47
              $region44: #{transformer_forward.5} parent=39 // loop_body
                %v155 = vld [vmem:[%s153] sm:$0xf]
                %156 = vst [vmem:[%s154] sm:$0xf] %v155
                %v157 = vld [vmem:[%s153 + $0x8] sm:$0xf]
                %158 = vst [vmem:[%s154 + $0x4] sm:$0xf] %v157
                %v159 = vld [vmem:[%s153 + $0x10] sm:$0xf]
                %160 = vst [vmem:[%s154 + $0x8] sm:$0xf] %v159
                %v161 = vld [vmem:[%s153 + $0x18] sm:$0xf]
                %162 = vst [vmem:[%s154 + $0xc] sm:$0xf] %v161
                %v163 = vld [vmem:[%s153 + $0x20] sm:$0xf]
                %164 = vst [vmem:[%s154 + $0x10] sm:$0xf] %v163
                %v165 = vld [vmem:[%s153 + $0x28] sm:$0xf]
                %166 = vst [vmem:[%s154 + $0x14] sm:$0xf] %v165
                %v167 = vld [vmem:[%s153 + $0x30] sm:$0xf]
                %168 = vst [vmem:[%s154 + $0x18] sm:$0xf] %v167
                %v169 = vld [vmem:[%s153 + $0x38] sm:$0xf]
                %170 = vst [vmem:[%s154 + $0x1c] sm:$0xf] %v169
                %v171 = vld [vmem:[%s153 + $0x40] sm:$0xf]
                %172 = vst [vmem:[%s154 + $0x20] sm:$0xf] %v171
                %v173 = vld [vmem:[%s153 + $0x48] sm:$0xf]
                %174 = vst [vmem:[%s154 + $0x24] sm:$0xf] %v173
                %v175 = vld [vmem:[%s153 + $0x50] sm:$0xf]
                %176 = vst [vmem:[%s154 + $0x28] sm:$0xf] %v175
                %v177 = vld [vmem:[%s153 + $0x58] sm:$0xf]
                %178 = vst [vmem:[%s154 + $0x2c] sm:$0xf] %v177
                %v179 = vld [vmem:[%s153 + $0x60] sm:$0xf]
                %180 = vst [vmem:[%s154 + $0x30] sm:$0xf] %v179
                %v181 = vld [vmem:[%s153 + $0x68] sm:$0xf]
                %182 = vst [vmem:[%s154 + $0x34] sm:$0xf] %v181
                %v183 = vld [vmem:[%s153 + $0x70] sm:$0xf]
                %184 = vst [vmem:[%s154 + $0x38] sm:$0xf] %v183
                %v185 = vld [vmem:[%s153 + $0x78] sm:$0xf]
                %186 = vst [vmem:[%s154 + $0x3c] sm:$0xf] %v185
              $region45: #{transformer_forward.5} parent=39 // loop_footer
                %s152 = sadd.s32 1, %s148
              $region46: #{transformer_forward.5} parent=39 // loop_footer_branch
                %147 = sbr.rel target = $region42
              $region47: #{transformer_forward.5} parent=39 // loop_exit
                _
            $region40: #{transformer_forward.5} parent=31 // pred_fallthru
              _
          $region32: #{transformer_forward.5} parent=27 // pred_fallthru
            _
          %238 = vnop
        $region28: #{transformer_forward.5} parent=23 // pred_fallthru
          _
      $region24: #{transformer_forward.5} parent=5 // pred_fallthru
        _
      %p239 = scmp.le.s32.totalorder 1, %s12
      %p240 = scmp.lt.s32.totalorder %s12, 3
      %p241 = pnand %p239, %p240
      %p242 = pneg %p241
      // Predicated region
      $region66: #{transformer_forward.5} parent=5 // pred_check
        _
      $region67: #{transformer_forward.5} parent=5 // pred_check_branch
        %244 = sbr.rel (%p241) target = $region69
      $region68: #{transformer_forward.5} parent=5 // pred_region
        %s245 = ssub.s32 %s12, 1
        %s246 = sand.u32 %s67, 1
        %s247 = sand.u32 %s67, 1
        %s248 = smul.addr %s247, 64
        %s249 = scalar_lea.vmem [#allocation2], %s248
        // Predicated region
        $region70: #{transformer_forward.5} parent=68 // pred_check
          %p250 = pneg %p80
        $region71: #{transformer_forward.5} parent=68 // pred_check_branch
          %252 = sbr.rel (%p250) target = $region73
        $region72: #{transformer_forward.5} parent=68 // pred_region
          _
        $region73: #{transformer_forward.5} parent=68 // pred_fallthru
          _
        %p253 = pneg %p33
        %p254 = pneg %p30
        %p255 = pneg %p54
        %p256 = pneg %p51
        %s257 = sand.u32 %s67, 1
        %s258 = sand.u32 %s67, 1
        %s259 = smul.addr %s258, 64
        %s260 = scalar_lea.vmem [#allocation2], %s259
        %p261 = pneg %p80
        %p262 = pneg %p77
        %p263 = pneg %p106
        %p264 = pneg %p103
        %s265 = sand.u32 %s93, 1
        %s266 = scalar_lea.sflag [#allocation4], %s265
        %s267 = sand.u32 %s93, 1
        %s268 = smul.addr %s267, 32
        %s269 = scalar_lea.vmem [#allocation3], %s268
        %v271 = vld [vmem:[%s0] sm:$0xff]
        %v272 = vld [vmem:[%s0 + $0x8] sm:$0xff]
        %v273 = vld [vmem:[%s0 + $0x10] sm:$0xff]
        %v274 = vld [vmem:[%s0 + $0x18] sm:$0xff]
        %v275 = vmul.f32 %v271, %v271
        %v276 = vmul.f32 %v272, %v272
        %v277 = vmul.f32 %v273, %v273
        %v278 = vmul.f32 %v274, %v274
        %279 = vadd.xlane.f32.xlu0 %v275
        %v280 = vpop.xlane.xlu0 %279
        %281 = vadd.xlane.f32.xlu0 %v276
        %v282 = vpop.xlane.xlu0 %281
        %283 = vadd.xlane.f32.xlu0 %v277
        %v284 = vpop.xlane.xlu0 %283
        %285 = vadd.xlane.f32.xlu0 %v278
        %v286 = vpop.xlane.xlu0 %285
        %v287 = vrcp.pop 128.0
        %v288 = vmul.f32 %v280, %v287
        %v289 = vmul.f32 %v282, %v287
        %v290 = vmul.f32 %v284, %v287
        %v291 = vmul.f32 %v286, %v287
        %v292 = vadd.f32 %v288, 1e-05
        %v293 = vadd.f32 %v289, 1e-05
        %v294 = vadd.f32 %v290, 1e-05
        %v295 = vadd.f32 %v291, 1e-05
        %v296 = vrsqrt.pop %v292
        %v297 = vrsqrt.pop %v293
        %v298 = vrsqrt.pop %v294
        %v299 = vrsqrt.pop %v295
        %v300 = vmul.f32 %v271, %v296
        %v301 = vmul.f32 %v272, %v297
        %v302 = vmul.f32 %v273, %v298
        %v303 = vmul.f32 %v274, %v299
        %v304 = vld [vmem:[%s1] sm:$0x1]
        %v306 = vlaneseq
        %v307 = vshrl.u32 %v306, 7
        %v308 = vsub.s32 0, %v307
        %v309 = vrot.slane %v304, %v308
        %v311 = vmul.f32 %v300, %v309
        %v312 = vmul.f32 %v301, %v309
        %v313 = vmul.f32 %v302, %v309
        %v314 = vmul.f32 %v303, %v309
        %v315 = vpack.c.bf16 %v312, %v311
        %v316 = vpack.c.bf16 %v314, %v313
        %v317 = vld [vmem:[%s249] sm:$0xf]
        %v318 = vld [vmem:[%s249 + $0x4] sm:$0xf]
        %v319 = vld [vmem:[%s249 + $0x8] sm:$0xf]
        %v320 = vld [vmem:[%s249 + $0xc] sm:$0xf]
        %v321 = vld [vmem:[%s249 + $0x10] sm:$0xf]
        %v322 = vld [vmem:[%s249 + $0x14] sm:$0xf]
        %v323 = vld [vmem:[%s249 + $0x18] sm:$0xf]
        %v324 = vld [vmem:[%s249 + $0x1c] sm:$0xf]
        %v325 = vld [vmem:[%s249 + $0x20] sm:$0xf]
        %v326 = vld [vmem:[%s249 + $0x24] sm:$0xf]
        %v327 = vld [vmem:[%s249 + $0x28] sm:$0xf]
        %v328 = vld [vmem:[%s249 + $0x2c] sm:$0xf]
        %v329 = vld [vmem:[%s249 + $0x30] sm:$0xf]
        %v330 = vld [vmem:[%s249 + $0x34] sm:$0xf]
        %v331 = vld [vmem:[%s249 + $0x38] sm:$0xf]
        %v332 = vld [vmem:[%s249 + $0x3c] sm:$0xf]
        %v349 = vunpack.c.l.b16 %v317
        %v350 = vunpack.c.l.b16 %v318
        %v351 = vunpack.c.l.b16 %v319
        %v352 = vunpack.c.l.b16 %v320
        %v353 = vunpack.c.l.b16 %v321
        %v354 = vunpack.c.l.b16 %v322
        %v355 = vunpack.c.l.b16 %v323
        %v356 = vunpack.c.l.b16 %v324
        %v357 = vunpack.c.l.b16 %v325
        %v358 = vunpack.c.l.b16 %v326
        %v359 = vunpack.c.l.b16 %v327
        %v360 = vunpack.c.l.b16 %v328
        %v361 = vunpack.c.l.b16 %v329
        %v362 = vunpack.c.l.b16 %v330
        %v363 = vunpack.c.l.b16 %v331
        %v364 = vunpack.c.l.b16 %v332
        %v365 = vpack.c.b16 %v350, %v349
        %v366 = vpack.c.b16 %v352, %v351
        %v367 = vpack.c.b16 %v354, %v353
        %v368 = vpack.c.b16 %v356, %v355
        %v369 = vpack.c.b16 %v358, %v357
        %v370 = vpack.c.b16 %v360, %v359
        %v371 = vpack.c.b16 %v362, %v361
        %v372 = vpack.c.b16 %v364, %v363
        %381 = vmatprep.subr.bf16.mxu0 0
        %382 = vmatpush1.bf16.msra.mxu0 %v365
        %383 = vmatprep.subr.bf16.mxu0 0
        %384 = vmatpush1.bf16.msra.mxu0 %v366
        %385 = vmatprep.subr.bf16.mxu0 0
        %386 = vmatpush1.bf16.msra.mxu0 %v367
        %387 = vmatprep.subr.bf16.mxu0 0
        %388 = vmatpush1.bf16.msra.mxu0 %v368
        %389 = vmatprep.subr.bf16.mxu0 0
        %390 = vmatpush1.bf16.msra.mxu0 %v369
        %391 = vmatprep.subr.bf16.mxu0 0
        %392 = vmatpush1.bf16.msra.mxu0 %v370
        %393 = vmatprep.subr.bf16.mxu0 0
        %394 = vmatpush1.bf16.msra.mxu0 %v371
        %395 = vmatprep.subr.bf16.mxu0 0
        %396 = vmatpush1.bf16.msra.mxu0 %v372
        %397 = vmatprep.subr.bf16.mxu0 0
        %398 = vmatpush1.bf16.msra.mxu0 0
        %399 = vmatprep.subr.bf16.mxu0 0
        %400 = vmatpush1.bf16.msra.mxu0 0
        %401 = vmatprep.subr.bf16.mxu0 0
        %402 = vmatpush1.bf16.msra.mxu0 0
        %403 = vmatprep.subr.bf16.mxu0 0
        %404 = vmatpush1.bf16.msra.mxu0 0
        %405 = vmatprep.subr.bf16.mxu0 0
        %406 = vmatpush1.bf16.msra.mxu0 0
        %407 = vmatprep.subr.bf16.mxu0 0
        %408 = vmatpush1.bf16.msra.mxu0 0
        %409 = vmatprep.subr.bf16.mxu0 0
        %410 = vmatpush1.bf16.msra.mxu0 0
        %411 = vmatprep.subr.bf16.mxu0 0
        %412 = vmatpush1.bf16.msra.mxu0 0
        %413 = vmatprep.mubr.bf16.mxu0 0
        %414 = vmatmul.mubr.bf16.gmra.mrb[0].mxu0 %v315
        %v415 = vpop.f32.mrb[0].mxu0
        %v416 = vadd.f32 0.0, %v415
        %v417 = vpop.f32.mrb[0].mxu0
        %v418 = vpop.f32.mrb[0].mxu0
        %v419 = vadd.f32 0.0, %v418
        %v420 = vpop.f32.mrb[0].mxu0
        %421 = vmatprep.mubr.bf16.mxu0 0
        %422 = vmatmul.mubr.bf16.gmra.mrb[0].mxu0 %v316
        %v423 = vpop.f32.mrb[0].mxu0
        %v424 = vadd.f32 0.0, %v423
        %v425 = vpop.f32.mrb[0].mxu0
        %v426 = vpop.f32.mrb[0].mxu0
        %v427 = vadd.f32 0.0, %v426
        %v428 = vpop.f32.mrb[0].mxu0
        %429 = vdwg.mxu0
        %430 = vst [vmem:[%s269] sm:$0xff] %v416
        %431 = vst [vmem:[%s269 + $0x8] sm:$0xff] %v419
        %432 = vst [vmem:[%s269 + $0x10] sm:$0xff] %v424
        %433 = vst [vmem:[%s269 + $0x18] sm:$0xff] %v427
        %s434 = sand.u32 %s93, 1
        %s435 = scalar_lea.sflag [#allocation4], %s434
        %s436 = sand.u32 %s93, 1
        %s437 = smul.addr %s436, 32
        %s438 = scalar_lea.vmem [#allocation3], %s437
        // Predicated region
        $region74: #{transformer_forward.5} parent=68 // pred_check
          %p439 = pneg %p103
        $region75: #{transformer_forward.5} parent=68 // pred_check_branch
          %441 = sbr.rel (%p439) target = $region77
        $region76: #{transformer_forward.5} parent=68 // pred_region
          %s443 = ssub.s32 512, 512
          %444 = vsyncadd %s435, %s443
          %s445 = smul.addr %s17, 128
          %s446 = scalar_lea.hbm %s3, %s445
          %s447 = sshll.u32 %s438, 4
          %s448 = int_to_ptr.vmem [resolvable:$true] %s447
          %453 = dma.vmem_to_hbm [thread:$0]  %s448, 512, %s446, %s435, 128, 256, 8
        $region77: #{transformer_forward.5} parent=68 // pred_fallthru
          _
      $region69: #{transformer_forward.5} parent=5 // pred_fallthru
        _
      %p454 = scmp.le.s32.totalorder 2, %s12
      // Predicated region
      $region78: #{transformer_forward.5} parent=5 // pred_check
        %p455 = pneg %p454
      $region79: #{transformer_forward.5} parent=5 // pred_check_branch
        %457 = sbr.rel (%p455) target = $region81
      $region80: #{transformer_forward.5} parent=5 // pred_region
        %s458 = ssub.s32 %s12, 2
        // Predicated region
        $region82: #{transformer_forward.5} parent=80 // pred_check
          %p459 = pneg %p109
        $region83: #{transformer_forward.5} parent=80 // pred_check_branch
          %461 = sbr.rel (%p459) target = $region85
        $region84: #{transformer_forward.5} parent=80 // pred_region
          %s462 = sand.u32 %s94, 1
          %s463 = scalar_lea.sflag [#allocation4], %s462
          %s464 = sand.u32 %s94, 1
          %s465 = smul.addr %s464, 32
          %s466 = scalar_lea.vmem [#allocation3], %s465
          %467 = dma.done %s463, 512
        $region85: #{transformer_forward.5} parent=80 // pred_fallthru
          _
      $region81: #{transformer_forward.5} parent=5 // pred_fallthru
        _
    $region6: #{transformer_forward.5} parent=1 // loop_footer
      %s16 = sadd.s32 1, %s12
    $region7: #{transformer_forward.5} parent=1 // loop_footer_branch
      %11 = sbr.rel target = $region3
    $region8: #{transformer_forward.5} parent=1 // loop_exit
      _
    %468 = vsyncpa [#allocation4], 1
    %s469 = scalar_lea.sflag [#allocation4], 1
    %470 = vsyncpa %s469, 1

// kernel: transformer_forward.3
$region0: #{transformer_forward.3}
  #allocation0 [shape = 'u32[]', space=smem, size = 0x4, offset = 0x4, fixed_abs, tag = 'smem constant byte address 0x4 - core index']
  #allocation1 [shape = 'u32[144,128]{1,0:T(1,128)}', space=vmem, size = 0x12000, scoped, tag = 'internal scratch']
  %s0 = inlined_call_operand.vmem [shape: f32[2,16,128], index: 0, kind: input, shape index: {}]
  %s1 = inlined_call_operand.vmem [shape: f32[1,128], index: 1, kind: input, shape index: {}]
  %s2 = inlined_call_operand.vmem [shape: bf16[128,384], index: 2, kind: input, shape index: {}]
  %s3 = inlined_call_operand.vmem [shape: bf16[128,128], index: 3, kind: input, shape index: {}]
  %s4 = inlined_call_operand.vmem [shape: f32[1,128], index: 4, kind: input, shape index: {}]
  %s5 = inlined_call_operand.vmem [shape: bf16[128,768], index: 5, kind: input, shape index: {}]
  %s6 = inlined_call_operand.vmem [shape: bf16[384,128], index: 6, kind: input, shape index: {}]
  %s7 = inlined_call_operand.vmem [shape: f32[16,32], index: 7, kind: input, shape index: {}]
  %s8 = inlined_call_operand.vmem [shape: f32[16,32], index: 8, kind: input, shape index: {}]
  %s9 = inlined_call_operand.vmem [shape: f32[32,32], index: 9, kind: input, shape index: {}]
  %s10 = inlined_call_operand.vmem [shape: f32[2,16,128], index: 10, kind: output, shape index: {}]
  %s11 = sld [smem:[#allocation0]]
  $region73: #{transformer_forward.3} parent=0
    _
  %s13 = ssub.s32 1, %s11
  %s14 = scalar_select 0, %s13, %s11
  loop: start=0, step=1, limit=4
  $region2: #{transformer_forward.3} parent=0 // loop_pre_header
    _
  $region3: #{transformer_forward.3} parent=0 // loop_header
    %s16 = sphi 0, %s20
    %p17 = scmp.ge.s32.totalorder %s16, 4
    %s26 = sphi 0, %s28
    %s29 = sphi 0, %s26
    %s30 = sphi 0, %s29
    %s46 = sphi 0, %s30
    %s50 = sphi 0, %s50
    %s52 = sphi 0, %s50
    %s53 = sphi 0, %s52
    %s67 = sphi 0, %s53
    %s71 = sphi 0, %s71
    %s73 = sphi 0, %s71
    %s74 = sphi 0, %s73
    %s88 = sphi 0, %s74
    %s92 = sphi 0, %s92
    %s94 = sphi 0, %s92
    %s95 = sphi 0, %s94
    %s109 = sphi 0, %s95
    %s113 = sphi 0, %s113
    %s115 = sphi 0, %s113
    %s116 = sphi 0, %s115
    %s130 = sphi 0, %s116
    %s134 = sphi 0, %s134
    %s136 = sphi 0, %s134
    %s137 = sphi 0, %s136
    %s151 = sphi 0, %s137
    %s155 = sphi 0, %s155
    %s157 = sphi 0, %s155
    %s158 = sphi 0, %s157
    %s172 = sphi 0, %s158
    %s176 = sphi 0, %s176
    %s178 = sphi 0, %s176
    %s179 = sphi 0, %s178
    %s193 = sphi 0, %s179
    %s197 = sphi 0, %s197
    %s199 = sphi 0, %s197
    %s200 = sphi 0, %s199
    %s214 = sphi 0, %s200
    %s218 = sphi 0, %s218
    %s220 = sphi 0, %s218
    %s221 = sphi 0, %s220
    %s235 = sphi 0, %s221
    %s241 = sphi 0, %s243
    %s244 = sphi 0, %s241
    %s245 = sphi 0, %s244
    %s261 = sphi 0, %s245
  $region4: #{transformer_forward.3} parent=0 // loop_header_branch
    %19 = sbr.rel (%p17) target = $region8
  $region5: #{transformer_forward.3} parent=0 // loop_body
    %s21 = ssub.s32 %s16, 1
    %s22 = ssub.s32 %s16, 2
    %s23 = sadd.s32 %s16, 1
    %s24 = ssub.s32 %s16, %s23
    %p25 = scmp.eq.s32.totalorder %s24, 0
    %s27 = sadd.s32 %s26, 1
    %s28 = scalar_select %p25, %s26, %s27
    %p31 = pneg %p25
    %p32 = scmp.eq.s32.totalorder %s16, 1
    %p33 = por %p31, %p32
    %p34 = scmp.ne.s32.totalorder %s26, %s29
    %p35 = scmp.eq.s32.totalorder %s16, 0
    %p36 = por %p34, %p35
    %p37 = scmp.ne.s32.totalorder %s26, %s29
    %p38 = scmp.eq.s32.totalorder %s21, 1
    %p39 = por %p37, %p38
    %p40 = scmp.ne.s32.totalorder %s29, %s30
    %p41 = scmp.eq.s32.totalorder %s21, 0
    %p42 = por %p40, %p41
    %p43 = scmp.ne.s32.totalorder %s29, %s30
    %p44 = scmp.eq.s32.totalorder %s22, 1
    %p45 = por %p43, %p44
    %p47 = scmp.ne.s32.totalorder %s30, %s46
    %p48 = scmp.eq.s32.totalorder %s22, 0
    %p49 = por %p47, %p48
    %s51 = sadd.s32 %s50, 1
    %p54 = scmp.eq.s32.totalorder %s16, 1
    %p55 = scmp.ne.s32.totalorder %s50, %s52
    %p56 = scmp.eq.s32.totalorder %s16, 0
    %p57 = por %p55, %p56
    %p58 = scmp.ne.s32.totalorder %s50, %s52
    %p59 = scmp.eq.s32.totalorder %s21, 1
    %p60 = por %p58, %p59
    %p61 = scmp.ne.s32.totalorder %s52, %s53
    %p62 = scmp.eq.s32.totalorder %s21, 0
    %p63 = por %p61, %p62
    %p64 = scmp.ne.s32.totalorder %s52, %s53
    %p65 = scmp.eq.s32.totalorder %s22, 1
    %p66 = por %p64, %p65
    %p68 = scmp.ne.s32.totalorder %s53, %s67
    %p69 = scmp.eq.s32.totalorder %s22, 0
    %p70 = por %p68, %p69
    %s72 = sadd.s32 %s71, 1
    %p75 = scmp.eq.s32.totalorder %s16, 1
    %p76 = scmp.ne.s32.totalorder %s71, %s73
    %p77 = scmp.eq.s32.totalorder %s16, 0
    %p78 = por %p76, %p77
    %p79 = scmp.ne.s32.totalorder %s71, %s73
    %p80 = scmp.eq.s32.totalorder %s21, 1
    %p81 = por %p79, %p80
    %p82 = scmp.ne.s32.totalorder %s73, %s74
    %p83 = scmp.eq.s32.totalorder %s21, 0
    %p84 = por %p82, %p83
    %p85 = scmp.ne.s32.totalorder %s73, %s74
    %p86 = scmp.eq.s32.totalorder %s22, 1
    %p87 = por %p85, %p86
    %p89 = scmp.ne.s32.totalorder %s74, %s88
    %p90 = scmp.eq.s32.totalorder %s22, 0
    %p91 = por %p89, %p90
    %s93 = sadd.s32 %s92, 1
    %p96 = scmp.eq.s32.totalorder %s16, 1
    %p97 = scmp.ne.s32.totalorder %s92, %s94
    %p98 = scmp.eq.s32.totalorder %s16, 0
    %p99 = por %p97, %p98
    %p100 = scmp.ne.s32.totalorder %s92, %s94
    %p101 = scmp.eq.s32.totalorder %s21, 1
    %p102 = por %p100, %p101
    %p103 = scmp.ne.s32.totalorder %s94, %s95
    %p104 = scmp.eq.s32.totalorder %s21, 0
    %p105 = por %p103, %p104
    %p106 = scmp.ne.s32.totalorder %s94, %s95
    %p107 = scmp.eq.s32.totalorder %s22, 1
    %p108 = por %p106, %p107
    %p110 = scmp.ne.s32.totalorder %s95, %s109
    %p111 = scmp.eq.s32.totalorder %s22, 0
    %p112 = por %p110, %p111
    %s114 = sadd.s32 %s113, 1
    %p117 = scmp.eq.s32.totalorder %s16, 1
    %p118 = scmp.ne.s32.totalorder %s113, %s115
    %p119 = scmp.eq.s32.totalorder %s16, 0
    %p120 = por %p118, %p119
    %p121 = scmp.ne.s32.totalorder %s113, %s115
    %p122 = scmp.eq.s32.totalorder %s21, 1
    %p123 = por %p121, %p122
    %p124 = scmp.ne.s32.totalorder %s115, %s116
    %p125 = scmp.eq.s32.totalorder %s21, 0
    %p126 = por %p124, %p125
    %p127 = scmp.ne.s32.totalorder %s115, %s116
    %p128 = scmp.eq.s32.totalorder %s22, 1
    %p129 = por %p127, %p128
    %p131 = scmp.ne.s32.totalorder %s116, %s130
    %p132 = scmp.eq.s32.totalorder %s22, 0
    %p133 = por %p131, %p132
    %s135 = sadd.s32 %s134, 1
    %p138 = scmp.eq.s32.totalorder %s16, 1
    %p139 = scmp.ne.s32.totalorder %s134, %s136
    %p140 = scmp.eq.s32.totalorder %s16, 0
    %p141 = por %p139, %p140
    %p142 = scmp.ne.s32.totalorder %s134, %s136
    %p143 = scmp.eq.s32.totalorder %s21, 1
    %p144 = por %p142, %p143
    %p145 = scmp.ne.s32.totalorder %s136, %s137
    %p146 = scmp.eq.s32.totalorder %s21, 0
    %p147 = por %p145, %p146
    %p148 = scmp.ne.s32.totalorder %s136, %s137
    %p149 = scmp.eq.s32.totalorder %s22, 1
    %p150 = por %p148, %p149
    %p152 = scmp.ne.s32.totalorder %s137, %s151
    %p153 = scmp.eq.s32.totalorder %s22, 0
    %p154 = por %p152, %p153
    %s156 = sadd.s32 %s155, 1
    %p159 = scmp.eq.s32.totalorder %s16, 1
    %p160 = scmp.ne.s32.totalorder %s155, %s157
    %p161 = scmp.eq.s32.totalorder %s16, 0
    %p162 = por %p160, %p161
    %p163 = scmp.ne.s32.totalorder %s155, %s157
    %p164 = scmp.eq.s32.totalorder %s21, 1
    %p165 = por %p163, %p164
    %p166 = scmp.ne.s32.totalorder %s157, %s158
    %p167 = scmp.eq.s32.totalorder %s21, 0
    %p168 = por %p166, %p167
    %p169 = scmp.ne.s32.totalorder %s157, %s158
    %p170 = scmp.eq.s32.totalorder %s22, 1
    %p171 = por %p169, %p170
    %p173 = scmp.ne.s32.totalorder %s158, %s172
    %p174 = scmp.eq.s32.totalorder %s22, 0
    %p175 = por %p173, %p174
    %s177 = sadd.s32 %s176, 1
    %p180 = scmp.eq.s32.totalorder %s16, 1
    %p181 = scmp.ne.s32.totalorder %s176, %s178
    %p182 = scmp.eq.s32.totalorder %s16, 0
    %p183 = por %p181, %p182
    %p184 = scmp.ne.s32.totalorder %s176, %s178
    %p185 = scmp.eq.s32.totalorder %s21, 1
    %p186 = por %p184, %p185
    %p187 = scmp.ne.s32.totalorder %s178, %s179
    %p188 = scmp.eq.s32.totalorder %s21, 0
    %p189 = por %p187, %p188
    %p190 = scmp.ne.s32.totalorder %s178, %s179
    %p191 = scmp.eq.s32.totalorder %s22, 1
    %p192 = por %p190, %p191
    %p194 = scmp.ne.s32.totalorder %s179, %s193
    %p195 = scmp.eq.s32.totalorder %s22, 0
    %p196 = por %p194, %p195
    %s198 = sadd.s32 %s197, 1
    %p201 = scmp.eq.s32.totalorder %s16, 1
    %p202 = scmp.ne.s32.totalorder %s197, %s199
    %p203 = scmp.eq.s32.totalorder %s16, 0
    %p204 = por %p202, %p203
    %p205 = scmp.ne.s32.totalorder %s197, %s199
    %p206 = scmp.eq.s32.totalorder %s21, 1
    %p207 = por %p205, %p206
    %p208 = scmp.ne.s32.totalorder %s199, %s200
    %p209 = scmp.eq.s32.totalorder %s21, 0
    %p210 = por %p208, %p209
    %p211 = scmp.ne.s32.totalorder %s199, %s200
    %p212 = scmp.eq.s32.totalorder %s22, 1
    %p213 = por %p211, %p212
    %p215 = scmp.ne.s32.totalorder %s200, %s214
    %p216 = scmp.eq.s32.totalorder %s22, 0
    %p217 = por %p215, %p216
    %s219 = sadd.s32 %s218, 1
    %p222 = scmp.eq.s32.totalorder %s16, 1
    %p223 = scmp.ne.s32.totalorder %s218, %s220
    %p224 = scmp.eq.s32.totalorder %s16, 0
    %p225 = por %p223, %p224
    %p226 = scmp.ne.s32.totalorder %s218, %s220
    %p227 = scmp.eq.s32.totalorder %s21, 1
    %p228 = por %p226, %p227
    %p229 = scmp.ne.s32.totalorder %s220, %s221
    %p230 = scmp.eq.s32.totalorder %s21, 0
    %p231 = por %p229, %p230
    %p232 = scmp.ne.s32.totalorder %s220, %s221
    %p233 = scmp.eq.s32.totalorder %s22, 1
    %p234 = por %p232, %p233
    %p236 = scmp.ne.s32.totalorder %s221, %s235
    %p237 = scmp.eq.s32.totalorder %s22, 0
    %p238 = por %p236, %p237
    %s239 = ssub.s32 %s16, %s23
    %p240 = scmp.eq.s32.totalorder %s239, 0
    %s242 = sadd.s32 %s241, 1
    %s243 = scalar_select %p240, %s241, %s242
    %p246 = pneg %p240
    %p247 = scmp.eq.s32.totalorder %s16, 1
    %p248 = por %p246, %p247
    %p249 = scmp.ne.s32.totalorder %s241, %s244
    %p250 = scmp.eq.s32.totalorder %s16, 0
    %p251 = por %p249, %p250
    %p252 = scmp.ne.s32.totalorder %s241, %s244
    %p253 = scmp.eq.s32.totalorder %s21, 1
    %p254 = por %p252, %p253
    %p255 = scmp.ne.s32.totalorder %s244, %s245
    %p256 = scmp.eq.s32.totalorder %s21, 0
    %p257 = por %p255, %p256
    %p258 = scmp.ne.s32.totalorder %s244, %s245
    %p259 = scmp.eq.s32.totalorder %s22, 1
    %p260 = por %p258, %p259
    %p262 = scmp.ne.s32.totalorder %s245, %s261
    %p263 = scmp.eq.s32.totalorder %s22, 0
    %p264 = por %p262, %p263
    %p265 = scmp.le.s32.totalorder 1, %s16
    %p266 = scmp.lt.s32.totalorder %s16, 3
    %p267 = pnand %p265, %p266
    %p268 = pneg %p267
    // Predicated region
    $region9: #{transformer_forward.3} parent=5 // pred_check
      _
    $region10: #{transformer_forward.3} parent=5 // pred_check_branch
      %270 = sbr.rel (%p267) target = $region12
    $region11: #{transformer_forward.3} parent=5 // pred_region
      %s271 = ssub.s32 %s16, 1
      // Predicated region
      $region13: #{transformer_forward.3} parent=11 // pred_check
        %p272 = pneg %p63
      $region14: #{transformer_forward.3} parent=11 // pred_check_branch
        %274 = sbr.rel (%p272) target = $region16
      $region15: #{transformer_forward.3} parent=11 // pred_region
        _
      $region16: #{transformer_forward.3} parent=11 // pred_fallthru
        _
      // Predicated region
      $region17: #{transformer_forward.3} parent=11 // pred_check
        %p275 = pneg %p84
      $region18: #{transformer_forward.3} parent=11 // pred_check_branch
        %277 = sbr.rel (%p275) target = $region20
      $region19: #{transformer_forward.3} parent=11 // pred_region
        _
      $region20: #{transformer_forward.3} parent=11 // pred_fallthru
        _
      // Predicated region
      $region21: #{transformer_forward.3} parent=11 // pred_check
        %p278 = pneg %p105
      $region22: #{transformer_forward.3} parent=11 // pred_check_branch
        %280 = sbr.rel (%p278) target = $region24
      $region23: #{transformer_forward.3} parent=11 // pred_region
        _
      $region24: #{transformer_forward.3} parent=11 // pred_fallthru
        _
      // Predicated region
      $region25: #{transformer_forward.3} parent=11 // pred_check
        %p281 = pneg %p126
      $region26: #{transformer_forward.3} parent=11 // pred_check_branch
        %283 = sbr.rel (%p281) target = $region28
      $region27: #{transformer_forward.3} parent=11 // pred_region
        _
      $region28: #{transformer_forward.3} parent=11 // pred_fallthru
        _
      // Predicated region
      $region29: #{transformer_forward.3} parent=11 // pred_check
        %p284 = pneg %p147
      $region30: #{transformer_forward.3} parent=11 // pred_check_branch
        %286 = sbr.rel (%p284) target = $region32
      $region31: #{transformer_forward.3} parent=11 // pred_region
        _
      $region32: #{transformer_forward.3} parent=11 // pred_fallthru
        _
      // Predicated region
      $region33: #{transformer_forward.3} parent=11 // pred_check
        %p287 = pneg %p168
      $region34: #{transformer_forward.3} parent=11 // pred_check_branch
        %289 = sbr.rel (%p287) target = $region36
      $region35: #{transformer_forward.3} parent=11 // pred_region
        _
      $region36: #{transformer_forward.3} parent=11 // pred_fallthru
        _
      // Predicated region
      $region37: #{transformer_forward.3} parent=11 // pred_check
        %p290 = pneg %p189
      $region38: #{transformer_forward.3} parent=11 // pred_check_branch
        %292 = sbr.rel (%p290) target = $region40
      $region39: #{transformer_forward.3} parent=11 // pred_region
        _
      $region40: #{transformer_forward.3} parent=11 // pred_fallthru
        _
      // Predicated region
      $region41: #{transformer_forward.3} parent=11 // pred_check
        %p293 = pneg %p210
      $region42: #{transformer_forward.3} parent=11 // pred_check_branch
        %295 = sbr.rel (%p293) target = $region44
      $region43: #{transformer_forward.3} parent=11 // pred_region
        _
      $region44: #{transformer_forward.3} parent=11 // pred_fallthru
        _
      // Predicated region
      $region45: #{transformer_forward.3} parent=11 // pred_check
        %p296 = pneg %p231
      $region46: #{transformer_forward.3} parent=11 // pred_check_branch
        %298 = sbr.rel (%p296) target = $region48
      $region47: #{transformer_forward.3} parent=11 // pred_region
        _
      $region48: #{transformer_forward.3} parent=11 // pred_fallthru
        _
    $region12: #{transformer_forward.3} parent=5 // pred_fallthru
      _
    %p299 = scmp.lt.s32.totalorder %s16, 2
    // Predicated region
    $region49: #{transformer_forward.3} parent=5 // pred_check
      %p300 = pneg %p299
    $region50: #{transformer_forward.3} parent=5 // pred_check_branch
      %302 = sbr.rel (%p300) target = $region52
    $region51: #{transformer_forward.3} parent=5 // pred_region
      // Predicated region
      $region53: #{transformer_forward.3} parent=51 // pred_check
        %p303 = pneg %p36
      $region54: #{transformer_forward.3} parent=51 // pred_check_branch
        %305 = sbr.rel (%p303) target = $region56
      $region55: #{transformer_forward.3} parent=51 // pred_region
        %p306 = scmp.lt.s32.totalorder %s16, 1
        %s307 = scalar_select %p306, %s16, 1
        %s308 = smul.addr %s307, 2
        %s309 = smul.addr %s308, 8
        %s310 = scalar_lea.vmem %s0, %s309
      $region56: #{transformer_forward.3} parent=51 // pred_fallthru
        _
    $region52: #{transformer_forward.3} parent=5 // pred_fallthru
      _
    %p311 = scmp.le.s32.totalorder 1, %s16
    %p312 = scmp.lt.s32.totalorder %s16, 3
    %p313 = pnand %p311, %p312
    %p314 = pneg %p313
    // Predicated region
    $region57: #{transformer_forward.3} parent=5 // pred_check
      _
    $region58: #{transformer_forward.3} parent=5 // pred_check_branch
      %316 = sbr.rel (%p313) target = $region60
    $region59: #{transformer_forward.3} parent=5 // pred_region
      %s317 = ssub.s32 %s16, 1
      %p318 = scmp.lt.s32.totalorder %s21, 1
      %s319 = scalar_select %p318, %s21, 1
      %s320 = smul.addr %s319, 2
      %s321 = smul.addr %s320, 8
      %s322 = scalar_lea.vmem %s0, %s321
      %p323 = pneg %p42
      %p324 = pneg %p39
      %p325 = pneg %p63
      %p326 = pneg %p60
      %p327 = pneg %p84
      %p328 = pneg %p81
      %p329 = pneg %p105
      %p330 = pneg %p102
      %p331 = pneg %p126
      %p332 = pneg %p123
      %p333 = pneg %p147
      %p334 = pneg %p144
      %p335 = pneg %p168
      %p336 = pneg %p165
      %p337 = pneg %p189
      %p338 = pneg %p186
      %p339 = pneg %p210
      %p340 = pneg %p207
      %p341 = pneg %p231
      %p342 = pneg %p228
      %p343 = pneg %p257
      %p344 = pneg %p254
      %p345 = scmp.lt.s32.totalorder %s21, 1
      %s346 = scalar_select %p345, %s21, 1
      %s347 = smul.addr %s346, 2
      %s348 = smul.addr %s347, 8
      %s349 = scalar_lea.vmem %s10, %s348
      %p350 = scmp.lt.s32.totalorder %s21, 1
      %s351 = scalar_select %p350, %s21, 1
      %s352 = smul.addr %s351, 2
      %s353 = smul.addr %s352, 8
      %s354 = scalar_lea.vmem %s0, %s353
      %p355 = scmp.lt.s32.totalorder %s21, 1
      %s356 = scalar_select %p355, %s21, 1
      %s357 = smul.addr %s356, 2
      %s358 = smul.addr %s357, 8
      %s359 = scalar_lea.vmem %s10, %s358
      %v361 = vld [vmem:[%s354] sm:$0xff]
      %v362 = vld [vmem:[%s354 + $0x8] sm:$0xff]
      %v363 = vmul.f32 %v361, %v361
      %v364 = vmul.f32 %v362, %v362
      %365 = vadd.xlane.f32.xlu0 %v363
      %v366 = vpop.xlane.xlu0 %365
      %367 = vadd.xlane.f32.xlu0 %v364
      %v368 = vpop.xlane.xlu0 %367
      %v369 = vrcp.pop 128.0
      %v370 = vmul.f32 %v366, %v369
      %v371 = vmul.f32 %v368, %v369
      %v372 = vadd.f32 %v370, 1e-05
      %v373 = vadd.f32 %v371, 1e-05
      %v374 = vrsqrt.pop %v372
      %v375 = vrsqrt.pop %v373
      %v376 = vmul.f32 %v361, %v374
      %v377 = vmul.f32 %v362, %v375
      %v378 = vld [vmem:[%s1] sm:$0x1]
      %v380 = vlaneseq
      %v381 = vshrl.u32 %v380, 7
      %v382 = vsub.s32 0, %v381
      %v383 = vrot.slane %v378, %v382
      %v385 = vmul.f32 %v376, %v383
      %v386 = vmul.f32 %v377, %v383
      %v387 = vpack.c.bf16 %v386, %v385
      %v388 = vld [vmem:[%s2] sm:$0xff]
      %v389 = vld [vmem:[%s2 + $0x8] sm:$0xf]
      %v390 = vld [vmem:[%s2 + $0xc] sm:$0xff]
      %v391 = vld [vmem:[%s2 + $0x14] sm:$0xf]
      %v392 = vld [vmem:[%s2 + $0x18] sm:$0xff]
      %v393 = vld [vmem:[%s2 + $0x20] sm:$0xf]
      %v394 = vld [vmem:[%s2 + $0x24] sm:$0xff]
      %v395 = vld [vmem:[%s2 + $0x2c] sm:$0xf]
      %v396 = vld [vmem:[%s2 + $0x30] sm:$0xff]
      %v397 = vld [vmem:[%s2 + $0x38] sm:$0xf]
      %v398 = vld [vmem:[%s2 + $0x3c] sm:$0xff]
      %v399 = vld [vmem:[%s2 + $0x44] sm:$0xf]
      %v400 = vld [vmem:[%s2 + $0x48] sm:$0xff]
      %v401 = vld [vmem:[%s2 + $0x50] sm:$0xf]
      %v402 = vld [vmem:[%s2 + $0x54] sm:$0xff]
      %v403 = vld [vmem:[%s2 + $0x5c] sm:$0xf]
      %v404 = vld [vmem:[%s2 + $0x60] sm:$0xff]
      %v405 = vld [vmem:[%s2 + $0x68] sm:$0xf]
      %v406 = vld [vmem:[%s2 + $0x6c] sm:$0xff]
      %v407 = vld [vmem:[%s2 + $0x74] sm:$0xf]
      %v408 = vld [vmem:[%s2 + $0x78] sm:$0xff]
      %v409 = vld [vmem:[%s2 + $0x80] sm:$0xf]
      %v410 = vld [vmem:[%s2 + $0x84] sm:$0xff]
      %v411 = vld [vmem:[%s2 + $0x8c] sm:$0xf]
      %v412 = vld [vmem:[%s2 + $0x90] sm:$0xff]
      %v413 = vld [vmem:[%s2 + $0x98] sm:$0xf]
      %v414 = vld [vmem:[%s2 + $0x9c] sm:$0xff]
      %v415 = vld [vmem:[%s2 + $0xa4] sm:$0xf]
      %v416 = vld [vmem:[%s2 + $0xa8] sm:$0xff]
      %v417 = vld [vmem:[%s2 + $0xb0] sm:$0xf]
      %v418 = vld [vmem:[%s2 + $0xb4] sm:$0xff]
      %v419 = vld [vmem:[%s2 + $0xbc] sm:$0xf]
      %v452 = vunpack.c.l.b16 %v388
      %v453 = vunpack.c.h.b16 %v388
      %v454 = vunpack.c.l.b16 %v389
      %v455 = vunpack.c.l.b16 %v390
      %v456 = vunpack.c.h.b16 %v390
      %v457 = vunpack.c.l.b16 %v391
      %v458 = vunpack.c.l.b16 %v392
      %v459 = vunpack.c.h.b16 %v392
      %v460 = vunpack.c.l.b16 %v393
      %v461 = vunpack.c.l.b16 %v394
      %v462 = vunpack.c.h.b16 %v394
      %v463 = vunpack.c.l.b16 %v395
      %v464 = vunpack.c.l.b16 %v396
      %v465 = vunpack.c.h.b16 %v396
      %v466 = vunpack.c.l.b16 %v397
      %v467 = vunpack.c.l.b16 %v398
      %v468 = vunpack.c.h.b16 %v398
      %v469 = vunpack.c.l.b16 %v399
      %v470 = vunpack.c.l.b16 %v400
      %v471 = vunpack.c.h.b16 %v400
      %v472 = vunpack.c.l.b16 %v401
      %v473 = vunpack.c.l.b16 %v402
      %v474 = vunpack.c.h.b16 %v402
      %v475 = vunpack.c.l.b16 %v403
      %v476 = vunpack.c.l.b16 %v404
      %v477 = vunpack.c.h.b16 %v404
      %v478 = vunpack.c.l.b16 %v405
      %v479 = vunpack.c.l.b16 %v406
      %v480 = vunpack.c.h.b16 %v406
      %v481 = vunpack.c.l.b16 %v407
      %v482 = vunpack.c.l.b16 %v408
      %v483 = vunpack.c.h.b16 %v408
      %v484 = vunpack.c.l.b16 %v409
      %v485 = vunpack.c.l.b16 %v410
      %v486 = vunpack.c.h.b16 %v410
      %v487 = vunpack.c.l.b16 %v411
      %v488 = vunpack.c.l.b16 %v412
      %v489 = vunpack.c.h.b16 %v412
      %v490 = vunpack.c.l.b16 %v413
      %v491 = vunpack.c.l.b16 %v414
      %v492 = vunpack.c.h.b16 %v414
      %v493 = vunpack.c.l.b16 %v415
      %v494 = vunpack.c.l.b16 %v416
      %v495 = vunpack.c.h.b16 %v416
      %v496 = vunpack.c.l.b16 %v417
      %v497 = vunpack.c.l.b16 %v418
      %v498 = vunpack.c.h.b16 %v418
      %v499 = vunpack.c.l.b16 %v419
      %v500 = vpack.c.b16 %v455, %v452
      %v501 = vpack.c.b16 %v456, %v453
      %v502 = vpack.c.b16 %v457, %v454
      %v503 = vpack.c.b16 %v461, %v458
      %v504 = vpack.c.b16 %v462, %v459
      %v505 = vpack.c.b16 %v463, %v460
      %v506 = vpack.c.b16 %v467, %v464
      %v507 = vpack.c.b16 %v468, %v465
      %v508 = vpack.c.b16 %v469, %v466
      %v509 = vpack.c.b16 %v473, %v470
      %v510 = vpack.c.b16 %v474, %v471
      %v511 = vpack.c.b16 %v475, %v472
      %v512 = vpack.c.b16 %v479, %v476
      %v513 = vpack.c.b16 %v480, %v477
      %v514 = vpack.c.b16 %v481, %v478
      %v515 = vpack.c.b16 %v485, %v482
      %v516 = vpack.c.b16 %v486, %v483
      %v517 = vpack.c.b16 %v487, %v484
      %v518 = vpack.c.b16 %v491, %v488
      %v519 = vpack.c.b16 %v492, %v489
      %v520 = vpack.c.b16 %v493, %v490
      %v521 = vpack.c.b16 %v497, %v494
      %v522 = vpack.c.b16 %v498, %v495
      %v523 = vpack.c.b16 %v499, %v496
      %548 = vmatprep.subr.bf16.mxu0 %v501
      %549 = vmatpush1.bf16.msra.mxu0 %v500
      %550 = vmatprep.subr.bf16.mxu0 %v504
      %551 = vmatpush1.bf16.msra.mxu0 %v503
      %552 = vmatprep.subr.bf16.mxu0 %v507
      %553 = vmatpush1.bf16.msra.mxu0 %v506
      %554 = vmatprep.subr.bf16.mxu0 %v510
      %555 = vmatpush1.bf16.msra.mxu0 %v509
      %556 = vmatprep.subr.bf16.mxu0 %v513
      %557 = vmatpush1.bf16.msra.mxu0 %v512
      %558 = vmatprep.subr.bf16.mxu0 %v516
      %559 = vmatpush1.bf16.msra.mxu0 %v515
      %560 = vmatprep.subr.bf16.mxu0 %v519
      %561 = vmatpush1.bf16.msra.mxu0 %v518
      %562 = vmatprep.subr.bf16.mxu0 %v522
      %563 = vmatpush1.bf16.msra.mxu0 %v521
      %564 = vmatprep.subr.bf16.mxu0 0
      %565 = vmatpush1.bf16.msra.mxu0 0
      %566 = vmatprep.subr.bf16.mxu0 0
      %567 = vmatpush1.bf16.msra.mxu0 0
      %568 = vmatprep.subr.bf16.mxu0 0
      %569 = vmatpush1.bf16.msra.mxu0 0
      %570 = vmatprep.subr.bf16.mxu0 0
      %571 = vmatpush1.bf16.msra.mxu0 0
      %572 = vmatprep.subr.bf16.mxu0 0
      %573 = vmatpush1.bf16.msra.mxu0 0
      %574 = vmatprep.subr.bf16.mxu0 0
      %575 = vmatpush1.bf16.msra.mxu0 0
      %576 = vmatprep.subr.bf16.mxu0 0
      %577 = vmatpush1.bf16.msra.mxu0 0
      %578 = vmatprep.subr.bf16.mxu0 0
      %579 = vmatpush1.bf16.msra.mxu0 0
      %580 = vmatprep.mubr.bf16.mxu0 0
      %581 = vmatmul.mubr.bf16.gmra.mrb[0].mxu0 %v387
      %v582 = vpop.f32.mrb[0].mxu0
      %v583 = vadd.f32 0.0, %v582
      %v584 = vpop.f32.mrb[0].mxu0
      %v585 = vadd.f32 0.0, %v584
      %v586 = vpop.f32.mrb[0].mxu0
      %v587 = vadd.f32 0.0, %v586
      %v588 = vpop.f32.mrb[0].mxu0
      %v589 = vadd.f32 0.0, %v588
      %590 = vdwg.mxu0
      %591 = vmatprep.subr.bf16.mxu0 0
      %592 = vmatpush1.bf16.msra.mxu0 %v502
      %593 = vmatprep.subr.bf16.mxu0 0
      %594 = vmatpush1.bf16.msra.mxu0 %v505
      %595 = vmatprep.subr.bf16.mxu0 0
      %596 = vmatpush1.bf16.msra.mxu0 %v508
      %597 = vmatprep.subr.bf16.mxu0 0
      %598 = vmatpush1.bf16.msra.mxu0 %v511
      %599 = vmatprep.subr.bf16.mxu0 0
      %600 = vmatpush1.bf16.msra.mxu0 %v514
      %601 = vmatprep.subr.bf16.mxu0 0
      %602 = vmatpush1.bf16.msra.mxu0 %v517
      %603 = vmatprep.subr.bf16.mxu0 0
      %604 = vmatpush1.bf16.msra.mxu0 %v520
      %605 = vmatprep.subr.bf16.mxu0 0
      %606 = vmatpush1.bf16.msra.mxu0 %v523
      %607 = vmatprep.subr.bf16.mxu0 0
      %608 = vmatpush1.bf16.msra.mxu0 0
      %609 = vmatprep.subr.bf16.mxu0 0
      %610 = vmatpush1.bf16.msra.mxu0 0
      %611 = vmatprep.subr.bf16.mxu0 0
      %612 = vmatpush1.bf16.msra.mxu0 0
      %613 = vmatprep.subr.bf16.mxu0 0
      %614 = vmatpush1.bf16.msra.mxu0 0
      %615 = vmatprep.subr.bf16.mxu0 0
      %616 = vmatpush1.bf16.msra.mxu0 0
      %617 = vmatprep.subr.bf16.mxu0 0
      %618 = vmatpush1.bf16.msra.mxu0 0
      %619 = vmatprep.subr.bf16.mxu0 0
      %620 = vmatpush1.bf16.msra.mxu0 0
      %621 = vmatprep.subr.bf16.mxu0 0
      %622 = vmatpush1.bf16.msra.mxu0 0
      %623 = vmatprep.mubr.bf16.mxu0 0
      %624 = vmatmul.mubr.bf16.gmra.mrb[0].mxu0 %v387
      %v625 = vpop.f32.mrb[0].mxu0
      %v626 = vadd.f32 0.0, %v625
      %v627 = vpop.f32.mrb[0].mxu0
      %v628 = vpop.f32.mrb[0].mxu0
      %v629 = vadd.f32 0.0, %v628
      %v630 = vpop.f32.mrb[0].mxu0
      %631 = vdwg.mxu0
      %v632 = vld [vmem:[%s7] sm:$0xff]
      %v633 = vld [vmem:[%s7 + $0x8] sm:$0xff]
      %v634 = vld [vmem:[%s8] sm:$0xff]
      %v635 = vld [vmem:[%s8 + $0x8] sm:$0xff]
      %v636 = vld [vmem:[%s9] sm:$0xff]
      %v637 = vld [vmem:[%s9 + $0x8] sm:$0xff]
      %v638 = vld [vmem:[%s9 + $0x10] sm:$0xff]
      %v639 = vld [vmem:[%s9 + $0x18] sm:$0xff]
      %v640 = vlaneseq
      %v641 = vshrl.u32 %v640, 7
      %v642 = vadd.s32 %v641, 8
      %v643 = vlaneseq
      %v644 = vand.u32 %v643, 127
      %vm645 = vcmp.le.s32.totalorder %v644, %v641
      %vm646 = vcmp.le.s32.totalorder %v644, %v642
      %v647 = vmul.f32 %v583, %v632
      %v648 = vmul.f32 %v587, %v633
      %vm649 = vcmask 261120
      %v651 = vsel %vm649, %v583, 0
      %v654 = vsel %vm649, %v587, 0
      %656 = vmatprep.subr.mxu0 0.0
      %657 = vmatpush1.msra.mxu0 %v636
      %658 = vmatprep.subr.mxu0 0.0
      %659 = vmatpush1.msra.mxu0 %v637
      %660 = vmatprep.subr.mxu0 0.0
      %661 = vmatpush1.msra.mxu0 %v638
      %662 = vmatprep.subr.mxu0 0.0
      %663 = vmatpush1.msra.mxu0 %v639
      %664 = vmatprep.subr.mxu0 0.0
      %665 = vmatpush1.msra.mxu0 0.0
      %666 = vmatprep.subr.mxu0 0.0
      %667 = vmatpush1.msra.mxu0 0.0
      %668 = vmatprep.subr.mxu0 0.0
      %669 = vmatpush1.msra.mxu0 0.0
      %670 = vmatprep.subr.mxu0 0.0
      %671 = vmatpush1.msra.mxu0 0.0
      %672 = vmatprep.subr.mxu0 0.0
      %673 = vmatpush1.msra.mxu0 0.0
      %674 = vmatprep.subr.mxu0 0.0
      %675 = vmatpush1.msra.mxu0 0.0
      %676 = vmatprep.subr.mxu0 0.0
      %677 = vmatpush1.msra.mxu0 0.0
      %678 = vmatprep.subr.mxu0 0.0
      %679 = vmatpush1.msra.mxu0 0.0
      %680 = vmatprep.subr.mxu0 0.0
      %681 = vmatpush1.msra.mxu0 0.0
      %682 = vmatprep.subr.mxu0 0.0
      %683 = vmatpush1.msra.mxu0 0.0
      %684 = vmatprep.subr.mxu0 0.0
      %685 = vmatpush1.msra.mxu0 0.0
      %686 = vmatprep.subr.mxu0 0.0
      %687 = vmatpush1.msra.mxu0 0.0
      %688 = vmatprep.subr.mxu0 0.0
      %689 = vmatpush1.msra.mxu0 0.0
      %690 = vmatprep.subr.mxu0 0.0
      %691 = vmatpush1.msra.mxu0 0.0
      %692 = vmatprep.subr.mxu0 0.0
      %693 = vmatpush1.msra.mxu0 0.0
      %694 = vmatprep.subr.mxu0 0.0
      %695 = vmatpush1.msra.mxu0 0.0
      %696 = vmatprep.subr.mxu0 0.0
      %697 = vmatpush1.msra.mxu0 0.0
      %698 = vmatprep.subr.mxu0 0.0
      %699 = vmatpush1.msra.mxu0 0.0
      %700 = vmatprep.subr.mxu0 0.0
      %701 = vmatpush1.msra.mxu0 0.0
      %702 = vmatprep.subr.mxu0 0.0
      %703 = vmatpush1.msra.mxu0 0.0
      %704 = vmatprep.subr.mxu0 0.0
      %705 = vmatpush1.msra.mxu0 0.0
      %706 = vmatprep.subr.mxu0 0.0
      %707 = vmatpush1.msra.mxu0 0.0
      %708 = vmatprep.subr.mxu0 0.0
      %709 = vmatpush1.msra.mxu0 0.0
      %710 = vmatprep.subr.mxu0 0.0
      %711 = vmatpush1.msra.mxu0 0.0
      %712 = vmatprep.subr.mxu0 0.0
      %713 = vmatpush1.msra.mxu0 0.0
      %714 = vmatprep.subr.mxu0 0.0
      %715 = vmatpush1.msra.mxu0 0.0
      %716 = vmatprep.subr.mxu0 0.0
      %717 = vmatpush1.msra.mxu0 0.0
      %718 = vmatprep.subr.mxu0 0.0
      %719 = vmatpush1.msra.mxu0 0.0
      %720 = vmatprep.mubr.f32.mxu0 0.0
      %721 = vmatmul.mubr.f32.gmra.mrb[0].mxu0 %v651
      %v722 = vpop.f32.mrb[0].mxu0
      %v723 = vadd.f32 0.0, %v722
      %v724 = vpop.f32.mrb[0].mxu0
      %725 = vmatprep.mubr.f32.mxu0 0.0
      %726 = vmatmul.mubr.f32.gmra.mrb[0].mxu0 %v654
      %v727 = vpop.f32.mrb[0].mxu0
      %v728 = vadd.f32 0.0, %v727
      %v729 = vpop.f32.mrb[0].mxu0
      %730 = vdwg.mxu0
      %v731 = vmul.f32 %v723, %v634
      %v732 = vmul.f32 %v728, %v635
      %v733 = vadd.f32 %v647, %v731
      %v734 = vadd.f32 %v648, %v732
      %v735 = vmul.f32 %v585, %v632
      %v736 = vmul.f32 %v589, %v633
      %v738 = vsel %vm649, %v585, 0
      %v741 = vsel %vm649, %v589, 0
      %743 = vmatprep.subr.mxu0 0.0
      %744 = vmatpush1.msra.mxu0 %v636
      %745 = vmatprep.subr.mxu0 0.0
      %746 = vmatpush1.msra.mxu0 %v637
      %747 = vmatprep.subr.mxu0 0.0
      %748 = vmatpush1.msra.mxu0 %v638
      %749 = vmatprep.subr.mxu0 0.0
      %750 = vmatpush1.msra.mxu0 %v639
      %751 = vmatprep.subr.mxu0 0.0
      %752 = vmatpush1.msra.mxu0 0.0
      %753 = vmatprep.subr.mxu0 0.0
      %754 = vmatpush1.msra.mxu0 0.0
      %755 = vmatprep.subr.mxu0 0.0
      %756 = vmatpush1.msra.mxu0 0.0
      %757 = vmatprep.subr.mxu0 0.0
      %758 = vmatpush1.msra.mxu0 0.0
      %759 = vmatprep.subr.mxu0 0.0
      %760 = vmatpush1.msra.mxu0 0.0
      %761 = vmatprep.subr.mxu0 0.0
      %762 = vmatpush1.msra.mxu0 0.0
      %763 = vmatprep.subr.mxu0 0.0
      %764 = vmatpush1.msra.mxu0 0.0
      %765 = vmatprep.subr.mxu0 0.0
      %766 = vmatpush1.msra.mxu0 0.0
      %767 = vmatprep.subr.mxu0 0.0
      %768 = vmatpush1.msra.mxu0 0.0
      %769 = vmatprep.subr.mxu0 0.0
      %770 = vmatpush1.msra.mxu0 0.0
      %771 = vmatprep.subr.mxu0 0.0
      %772 = vmatpush1.msra.mxu0 0.0
      %773 = vmatprep.subr.mxu0 0.0
      %774 = vmatpush1.msra.mxu0 0.0
      %775 = vmatprep.subr.mxu0 0.0
      %776 = vmatpush1.msra.mxu0 0.0
      %777 = vmatprep.subr.mxu0 0.0
      %778 = vmatpush1.msra.mxu0 0.0
      %779 = vmatprep.subr.mxu0 0.0
      %780 = vmatpush1.msra.mxu0 0.0
      %781 = vmatprep.subr.mxu0 0.0
      %782 = vmatpush1.msra.mxu0 0.0
      %783 = vmatprep.subr.mxu0 0.0
      %784 = vmatpush1.msra.mxu0 0.0
      %785 = vmatprep.subr.mxu0 0.0
      %786 = vmatpush1.msra.mxu0 0.0
      %787 = vmatprep.subr.mxu0 0.0
      %788 = vmatpush1.msra.mxu0 0.0
      %789 = vmatprep.subr.mxu0 0.0
      %790 = vmatpush1.msra.mxu0 0.0
      %791 = vmatprep.subr.mxu0 0.0
      %792 = vmatpush1.msra.mxu0 0.0
      %793 = vmatprep.subr.mxu0 0.0
      %794 = vmatpush1.msra.mxu0 0.0
      %795 = vmatprep.subr.mxu0 0.0
      %796 = vmatpush1.msra.mxu0 0.0
      %797 = vmatprep.subr.mxu0 0.0
      %798 = vmatpush1.msra.mxu0 0.0
      %799 = vmatprep.subr.mxu0 0.0
      %800 = vmatpush1.msra.mxu0 0.0
      %801 = vmatprep.subr.mxu0 0.0
      %802 = vmatpush1.msra.mxu0 0.0
      %803 = vmatprep.subr.mxu0 0.0
      %804 = vmatpush1.msra.mxu0 0.0
      %805 = vmatprep.subr.mxu0 0.0
      %806 = vmatpush1.msra.mxu0 0.0
      %807 = vmatprep.mubr.f32.mxu0 0.0
      %808 = vmatmul.mubr.f32.gmra.mrb[0].mxu0 %v738
      %v809 = vpop.f32.mrb[0].mxu0
      %v810 = vadd.f32 0.0, %v809
      %v811 = vpop.f32.mrb[0].mxu0
      %812 = vmatprep.mubr.f32.mxu0 0.0
      %813 = vmatmul.mubr.f32.gmra.mrb[0].mxu0 %v741
      %v814 = vpop.f32.mrb[0].mxu0
      %v815 = vadd.f32 0.0, %v814
      %v816 = vpop.f32.mrb[0].mxu0
      %817 = vdwg.mxu0
      %v818 = vmul.f32 %v810, %v634
      %v819 = vmul.f32 %v815, %v635
      %v820 = vadd.f32 %v735, %v818
      %v821 = vadd.f32 %v736, %v819
      %v822 = vpack.c.bf16 %v734, %v733
      %v823 = vpack.c.bf16 %v821, %v820
      %v824 = vpack.c.bf16 %v629, %v626
      %v826 = vsel %vm649, %v822, 0
      %v829 = vsel %vm649, %v823, 0
      %831 = vmatprep.subr.bf16.mxu0 0
      %832 = vmatpush1.bf16.xpose.msra.mxu0 %v829
      %833 = vmatprep.subr.bf16.mxu0 0
      %834 = vmatpush1.bf16.xpose.msra.mxu0 0
      %835 = vmatprep.subr.bf16.mxu0 0
      %836 = vmatpush1.bf16.xpose.msra.mxu0 0
      %837 = vmatprep.subr.bf16.mxu0 0
      %838 = vmatpush1.bf16.xpose.msra.mxu0 0
      %839 = vmatprep.subr.bf16.mxu0 0
      %840 = vmatpush1.bf16.xpose.msra.mxu0 0
      %841 = vmatprep.subr.bf16.mxu0 0
      %842 = vmatpush1.bf16.xpose.msra.mxu0 0
      %843 = vmatprep.subr.bf16.mxu0 0
      %844 = vmatpush1.bf16.xpose.msra.mxu0 0
      %845 = vmatprep.subr.bf16.mxu0 0
      %846 = vmatpush1.bf16.xpose.msra.mxu0 0
      %847 = vmatprep.subr.bf16.mxu0 0
      %848 = vmatpush1.bf16.xpose.msra.mxu0 0
      %849 = vmatprep.subr.bf16.mxu0 0
      %850 = vmatpush1.bf16.xpose.msra.mxu0 0
      %851 = vmatprep.subr.bf16.mxu0 0
      %852 = vmatpush1.bf16.xpose.msra.mxu0 0
      %853 = vmatprep.subr.bf16.mxu0 0
      %854 = vmatpush1.bf16.xpose.msra.mxu0 0
      %855 = vmatprep.subr.bf16.mxu0 0
      %856 = vmatpush1.bf16.xpose.msra.mxu0 0
      %857 = vmatprep.subr.bf16.mxu0 0
      %858 = vmatpush1.bf16.xpose.msra.mxu0 0
      %859 = vmatprep.subr.bf16.mxu0 0
      %860 = vmatpush1.bf16.xpose.msra.mxu0 0
      %861 = vmatprep.subr.bf16.mxu0 0
      %862 = vmatpush1.bf16.xpose.msra.mxu0 0
      %863 = vmatprep.mubr.bf16.mxu0 0
      %864 = vmatmul.mubr.bf16.gmra.mrb[0].mxu0 %v826
      %v865 = vpop.f32.mrb[0].mxu0
      %v866 = vadd.f32 0.0, %v865
      %v867 = vpop.f32.mrb[0].mxu0
      %v868 = vpop.f32.mrb[0].mxu0
      %v869 = vadd.f32 0.0, %v868
      %v870 = vpop.f32.mrb[0].mxu0
      %871 = vdwg.mxu0
      %v872 = vmul.f32 %v866, 0.17677669
      %v873 = vmul.f32 %v869, 0.17677669
      %v874 = vsel %vm645, %v872, -inf
      %v875 = vsel %vm646, %v873, -inf
      %vm876 = vcmask 130048
      %v877 = vsel %vm876, %v874, -inf
      %878 = vmax.xlane.f32.xlu0 %v877
      %v879 = vpop.xlane.xlu0 %878
      %v880 = vsel %vm876, %v875, -inf
      %881 = vmax.xlane.f32.xlu0 %v880
      %v882 = vpop.xlane.xlu0 %881
      %v883 = vsub.f32 %v874, %v879
      %v884 = vsub.f32 %v875, %v882
      %v885 = vmul.f32 %v883, 1.442695
      %v886 = vpow.pop %v885
      %v887 = vmul.f32 %v884, 1.442695
      %v888 = vpow.pop %v887
      %v889 = vsel %vm876, %v886, 0.0
      %890 = vadd.xlane.f32.xlu0 %v889
      %v891 = vpop.xlane.xlu0 %890
      %v892 = vsel %vm876, %v888, 0.0
      %893 = vadd.xlane.f32.xlu0 %v892
      %v894 = vpop.xlane.xlu0 %893
      %v895 = vrcp.pop %v891
      %v896 = vmul.f32 %v886, %v895
      %v897 = vrcp.pop %v894
      %v898 = vmul.f32 %v888, %v897
      %v899 = vpack.c.bf16 %v898, %v896
      %v901 = vsel %vm876, %v899, 0
      %903 = vmatprep.subr.bf16.mxu0 0
      %904 = vmatpush1.bf16.msra.mxu0 %v824
      %905 = vmatprep.subr.bf16.mxu0 0
      %906 = vmatpush1.bf16.msra.mxu0 0
      %907 = vmatprep.subr.bf16.mxu0 0
      %908 = vmatpush1.bf16.msra.mxu0 0
      %909 = vmatprep.subr.bf16.mxu0 0
      %910 = vmatpush1.bf16.msra.mxu0 0
      %911 = vmatprep.subr.bf16.mxu0 0
      %912 = vmatpush1.bf16.msra.mxu0 0
      %913 = vmatprep.subr.bf16.mxu0 0
      %914 = vmatpush1.bf16.msra.mxu0 0
      %915 = vmatprep.subr.bf16.mxu0 0
      %916 = vmatpush1.bf16.msra.mxu0 0
      %917 = vmatprep.subr.bf16.mxu0 0
      %918 = vmatpush1.bf16.msra.mxu0 0
      %919 = vmatprep.subr.bf16.mxu0 0
      %920 = vmatpush1.bf16.msra.mxu0 0
      %921 = vmatprep.subr.bf16.mxu0 0
      %922 = vmatpush1.bf16.msra.mxu0 0
      %923 = vmatprep.subr.bf16.mxu0 0
      %924 = vmatpush1.bf16.msra.mxu0 0
      %925 = vmatprep.subr.bf16.mxu0 0
      %926 = vmatpush1.bf16.msra.mxu0 0
      %927 = vmatprep.subr.bf16.mxu0 0
      %928 = vmatpush1.bf16.msra.mxu0 0
      %929 = vmatprep.subr.bf16.mxu0 0
      %930 = vmatpush1.bf16.msra.mxu0 0
      %931 = vmatprep.subr.bf16.mxu0 0
      %932 = vmatpush1.bf16.msra.mxu0 0
      %933 = vmatprep.subr.bf16.mxu0 0
      %934 = vmatpush1.bf16.msra.mxu0 0
      %935 = vmatprep.mubr.bf16.mxu0 0
      %936 = vmatmul.mubr.bf16.gmra.mrb[0].mxu0 %v901
      %v937 = vpop.f32.mrb[0].mxu0
      %v938 = vadd.f32 0.0, %v937
      %v939 = vpop.f32.mrb[0].mxu0
      %v940 = vpop.f32.mrb[0].mxu0
      %v941 = vadd.f32 0.0, %v940
      %v942 = vpop.f32.mrb[0].mxu0
      %943 = vdwg.mxu0
      %946 = vrot.lane.b32.xlu0 %v632, 32
      %v947 = vpop.permute.xlu0 %946
      %948 = vrot.lane.b32.xlu0 %v633, 32
      %v949 = vpop.permute.xlu0 %948
      %v952 = vmul.f32 %v583, %v947
      %v953 = vmul.f32 %v587, %v949
      %954 = vrot.lane.b32.xlu0 %v583, 96
      %v955 = vpop.permute.xlu0 %954
      %956 = vrot.lane.b32.xlu0 %v587, 96
      %v957 = vpop.permute.xlu0 %956
      %v958 = vsel %vm649, %v955, 0
      %v960 = vsel %vm649, %v957, 0
      %962 = vmatprep.subr.mxu0 0.0
      %963 = vmatpush1.msra.mxu0 %v636
      %964 = vmatprep.subr.mxu0 0.0
      %965 = vmatpush1.msra.mxu0 %v637
      %966 = vmatprep.subr.mxu0 0.0
      %967 = vmatpush1.msra.mxu0 %v638
      %968 = vmatprep.subr.mxu0 0.0
      %969 = vmatpush1.msra.mxu0 %v639
      %970 = vmatprep.subr.mxu0 0.0
      %971 = vmatpush1.msra.mxu0 0.0
      %972 = vmatprep.subr.mxu0 0.0
      %973 = vmatpush1.msra.mxu0 0.0
      %974 = vmatprep.subr.mxu0 0.0
      %975 = vmatpush1.msra.mxu0 0.0
      %976 = vmatprep.subr.mxu0 0.0
      %977 = vmatpush1.msra.mxu0 0.0
      %978 = vmatprep.subr.mxu0 0.0
      %979 = vmatpush1.msra.mxu0 0.0
      %980 = vmatprep.subr.mxu0 0.0
      %981 = vmatpush1.msra.mxu0 0.0
      %982 = vmatprep.subr.mxu0 0.0
      %983 = vmatpush1.msra.mxu0 0.0
      %984 = vmatprep.subr.mxu0 0.0
      %985 = vmatpush1.msra.mxu0 0.0
      %986 = vmatprep.subr.mxu0 0.0
      %987 = vmatpush1.msra.mxu0 0.0
      %988 = vmatprep.subr.mxu0 0.0
      %989 = vmatpush1.msra.mxu0 0.0
      %990 = vmatprep.subr.mxu0 0.0
      %991 = vmatpush1.msra.mxu0 0.0
      %992 = vmatprep.subr.mxu0 0.0
      %993 = vmatpush1.msra.mxu0 0.0
      %994 = vmatprep.subr.mxu0 0.0
      %995 = vmatpush1.msra.mxu0 0.0
      %996 = vmatprep.subr.mxu0 0.0
      %997 = vmatpush1.msra.mxu0 0.0
      %998 = vmatprep.subr.mxu0 0.0
      %999 = vmatpush1.msra.mxu0 0.0
      %1000 = vmatprep.subr.mxu0 0.0
      %1001 = vmatpush1.msra.mxu0 0.0
      %1002 = vmatprep.subr.mxu0 0.0
      %1003 = vmatpush1.msra.mxu0 0.0
      %1004 = vmatprep.subr.mxu0 0.0
      %1005 = vmatpush1.msra.mxu0 0.0
      %1006 = vmatprep.subr.mxu0 0.0
      %1007 = vmatpush1.msra.mxu0 0.0
      %1008 = vmatprep.subr.mxu0 0.0
      %1009 = vmatpush1.msra.mxu0 0.0
      %1010 = vmatprep.subr.mxu0 0.0
      %1011 = vmatpush1.msra.mxu0 0.0
      %1012 = vmatprep.subr.mxu0 0.0
      %1013 = vmatpush1.msra.mxu0 0.0
      %1014 = vmatprep.subr.mxu0 0.0
      %1015 = vmatpush1.msra.mxu0 0.0
      %1016 = vmatprep.subr.mxu0 0.0
      %1017 = vmatpush1.msra.mxu0 0.0
      %1018 = vmatprep.subr.mxu0 0.0
      %1019 = vmatpush1.msra.mxu0 0.0
      %1020 = vmatprep.subr.mxu0 0.0
      %1021 = vmatpush1.msra.mxu0 0.0
      %1022 = vmatprep.subr.mxu0 0.0
      %1023 = vmatpush1.msra.mxu0 0.0
      %1024 = vmatprep.subr.mxu0 0.0
      %1025 = vmatpush1.msra.mxu0 0.0
      %1026 = vmatprep.mubr.f32.mxu0 0.0
      %1027 = vmatmul.mubr.f32.gmra.mrb[0].mxu0 %v958
      %v1028 = vpop.f32.mrb[0].mxu0
      %v1029 = vadd.f32 0.0, %v1028
      %v1030 = vpop.f32.mrb[0].mxu0
      %1031 = vmatprep.mubr.f32.mxu0 0.0
      %1032 = vmatmul.mubr.f32.gmra.mrb[0].mxu0 %v960
      %v1033 = vpop.f32.mrb[0].mxu0
      %v1034 = vadd.f32 0.0, %v1033
      %v1035 = vpop.f32.mrb[0].mxu0
      %1036 = vdwg.mxu0
      %v1037 = vmul.f32 %v1029, %v634
      %v1038 = vmul.f32 %v1034, %v635
      %1041 = vrot.lane.b32.xlu0 %v1037, 32
      %v1042 = vpop.permute.xlu0 %1041
      %1043 = vrot.lane.b32.xlu0 %v1038, 32
      %v1044 = vpop.permute.xlu0 %1043
      %v1047 = vadd.f32 %v952, %v1042
      %v1048 = vadd.f32 %v953, %v1044
      %v1049 = vmul.f32 %v585, %v947
      %v1050 = vmul.f32 %v589, %v949
      %1051 = vrot.lane.b32.xlu0 %v585, 96
      %v1052 = vpop.permute.xlu0 %1051
      %1053 = vrot.lane.b32.xlu0 %v589, 96
      %v1054 = vpop.permute.xlu0 %1053
      %v1055 = vsel %vm649, %v1052, 0
      %v1057 = vsel %vm649, %v1054, 0
      %1059 = vmatprep.subr.mxu0 0.0
      %1060 = vmatpush1.msra.mxu0 %v636
      %1061 = vmatprep.subr.mxu0 0.0
      %1062 = vmatpush1.msra.mxu0 %v637
      %1063 = vmatprep.subr.mxu0 0.0
      %1064 = vmatpush1.msra.mxu0 %v638
      %1065 = vmatprep.subr.mxu0 0.0
      %1066 = vmatpush1.msra.mxu0 %v639
      %1067 = vmatprep.subr.mxu0 0.0
      %1068 = vmatpush1.msra.mxu0 0.0
      %1069 = vmatprep.subr.mxu0 0.0
      %1070 = vmatpush1.msra.mxu0 0.0
      %1071 = vmatprep.subr.mxu0 0.0
      %1072 = vmatpush1.msra.mxu0 0.0
      %1073 = vmatprep.subr.mxu0 0.0
      %1074 = vmatpush1.msra.mxu0 0.0
      %1075 = vmatprep.subr.mxu0 0.0
      %1076 = vmatpush1.msra.mxu0 0.0
      %1077 = vmatprep.subr.mxu0 0.0
      %1078 = vmatpush1.msra.mxu0 0.0
      %1079 = vmatprep.subr.mxu0 0.0
      %1080 = vmatpush1.msra.mxu0 0.0
      %1081 = vmatprep.subr.mxu0 0.0
      %1082 = vmatpush1.msra.mxu0 0.0
      %1083 = vmatprep.subr.mxu0 0.0
      %1084 = vmatpush1.msra.mxu0 0.0
      %1085 = vmatprep.subr.mxu0 0.0
      %1086 = vmatpush1.msra.mxu0 0.0
      %1087 = vmatprep.subr.mxu0 0.0
      %1088 = vmatpush1.msra.mxu0 0.0
      %1089 = vmatprep.subr.mxu0 0.0
      %1090 = vmatpush1.msra.mxu0 0.0
      %1091 = vmatprep.subr.mxu0 0.0
      %1092 = vmatpush1.msra.mxu0 0.0
      %1093 = vmatprep.subr.mxu0 0.0
      %1094 = vmatpush1.msra.mxu0 0.0
      %1095 = vmatprep.subr.mxu0 0.0
      %1096 = vmatpush1.msra.mxu0 0.0
      %1097 = vmatprep.subr.mxu0 0.0
      %1098 = vmatpush1.msra.mxu0 0.0
      %1099 = vmatprep.subr.mxu0 0.0
      %1100 = vmatpush1.msra.mxu0 0.0
      %1101 = vmatprep.subr.mxu0 0.0
      %1102 = vmatpush1.msra.mxu0 0.0
      %1103 = vmatprep.subr.mxu0 0.0
      %1104 = vmatpush1.msra.mxu0 0.0
      %1105 = vmatprep.subr.mxu0 0.0
      %1106 = vmatpush1.msra.mxu0 0.0
      %1107 = vmatprep.subr.mxu0 0.0
      %1108 = vmatpush1.msra.mxu0 0.0
      %1109 = vmatprep.subr.mxu0 0.0
      %1110 = vmatpush1.msra.mxu0 0.0
      %1111 = vmatprep.subr.mxu0 0.0
      %1112 = vmatpush1.msra.mxu0 0.0
      %1113 = vmatprep.subr.mxu0 0.0
      %1114 = vmatpush1.msra.mxu0 0.0
      %1115 = vmatprep.subr.mxu0 0.0
      %1116 = vmatpush1.msra.mxu0 0.0
      %1117 = vmatprep.subr.mxu0 0.0
      %1118 = vmatpush1.msra.mxu0 0.0
      %1119 = vmatprep.subr.mxu0 0.0
      %1120 = vmatpush1.msra.mxu0 0.0
      %1121 = vmatprep.subr.mxu0 0.0
      %1122 = vmatpush1.msra.mxu0 0.0
      %1123 = vmatprep.mubr.f32.mxu0 0.0
      %1124 = vmatmul.mubr.f32.gmra.mrb[0].mxu0 %v1055
      %v1125 = vpop.f32.mrb[0].mxu0
      %v1126 = vadd.f32 0.0, %v1125
      %v1127 = vpop.f32.mrb[0].mxu0
      %1128 = vmatprep.mubr.f32.mxu0 0.0
      %1129 = vmatmul.mubr.f32.gmra.mrb[0].mxu0 %v1057
      %v1130 = vpop.f32.mrb[0].mxu0
      %v1131 = vadd.f32 0.0, %v1130
      %v1132 = vpop.f32.mrb[0].mxu0
      %1133 = vdwg.mxu0
      %v1134 = vmul.f32 %v1126, %v634
      %v1135 = vmul.f32 %v1131, %v635
      %1138 = vrot.lane.b32.xlu0 %v1134, 32
      %v1139 = vpop.permute.xlu0 %1138
      %1140 = vrot.lane.b32.xlu0 %v1135, 32
      %v1141 = vpop.permute.xlu0 %1140
      %v1144 = vadd.f32 %v1049, %v1139
      %v1145 = vadd.f32 %v1050, %v1141
      %v1146 = vpack.c.bf16 %v1048, %v1047
      %v1147 = vpack.c.bf16 %v1145, %v1144
      %1149 = vrot.lane.b32.xlu0 %v1146, 96
      %v1150 = vpop.permute.xlu0 %1149
      %1152 = vrot.lane.b32.xlu0 %v1147, 96
      %v1153 = vpop.permute.xlu0 %1152
      %v1155 = vsel %vm649, %v1150, 0
      %v1158 = vsel %vm649, %v1153, 0
      %1160 = vmatprep.subr.bf16.mxu0 0
      %1161 = vmatpush1.bf16.xpose.msra.mxu0 %v1158
      %1162 = vmatprep.subr.bf16.mxu0 0
      %1163 = vmatpush1.bf16.xpose.msra.mxu0 0
      %1164 = vmatprep.subr.bf16.mxu0 0
      %1165 = vmatpush1.bf16.xpose.msra.mxu0 0
      %1166 = vmatprep.subr.bf16.mxu0 0
      %1167 = vmatpush1.bf16.xpose.msra.mxu0 0
      %1168 = vmatprep.subr.bf16.mxu0 0
      %1169 = vmatpush1.bf16.xpose.msra.mxu0 0
      %1170 = vmatprep.subr.bf16.mxu0 0
      %1171 = vmatpush1.bf16.xpose.msra.mxu0 0
      %1172 = vmatprep.subr.bf16.mxu0 0
      %1173 = vmatpush1.bf16.xpose.msra.mxu0 0
      %1174 = vmatprep.subr.bf16.mxu0 0
      %1175 = vmatpush1.bf16.xpose.msra.mxu0 0
      %1176 = vmatprep.subr.bf16.mxu0 0
      %1177 = vmatpush1.bf16.xpose.msra.mxu0 0
      %1178 = vmatprep.subr.bf16.mxu0 0
      %1179 = vmatpush1.bf16.xpose.msra.mxu0 0
      %1180 = vmatprep.subr.bf16.mxu0 0
      %1181 = vmatpush1.bf16.xpose.msra.mxu0 0
      %1182 = vmatprep.subr.bf16.mxu0 0
      %1183 = vmatpush1.bf16.xpose.msra.mxu0 0
      %1184 = vmatprep.subr.bf16.mxu0 0
      %1185 = vmatpush1.bf16.xpose.msra.mxu0 0
      %1186 = vmatprep.subr.bf16.mxu0 0
      %1187 = vmatpush1.bf16.xpose.msra.mxu0 0
      %1188 = vmatprep.subr.bf16.mxu0 0
      %1189 = vmatpush1.bf16.xpose.msra.mxu0 0
      %1190 = vmatprep.subr.bf16.mxu0 0
      %1191 = vmatpush1.bf16.xpose.msra.mxu0 0
      %1192 = vmatprep.mubr.bf16.mxu0 0
      %1193 = vmatmul.mubr.bf16.gmra.mrb[0].mxu0 %v1155
      %v1194 = vpop.f32.mrb[0].mxu0
      %v1195 = vadd.f32 0.0, %v1194
      %v1196 = vpop.f32.mrb[0].mxu0
      %v1197 = vpop.f32.mrb[0].mxu0
      %v1198 = vadd.f32 0.0, %v1197
      %v1199 = vpop.f32.mrb[0].mxu0
      %1200 = vdwg.mxu0
      %v1201 = vmul.f32 %v1195, 0.17677669
      %v1202 = vmul.f32 %v1198, 0.17677669
      %v1203 = vsel %vm645, %v1201, -inf
      %v1204 = vsel %vm646, %v1202, -inf
      %v1205 = vsel %vm876, %v1203, -inf
      %1206 = vmax.xlane.f32.xlu0 %v1205
      %v1207 = vpop.xlane.xlu0 %1206
      %v1208 = vsel %vm876, %v1204, -inf
      %1209 = vmax.xlane.f32.xlu0 %v1208
      %v1210 = vpop.xlane.xlu0 %1209
      %v1211 = vsub.f32 %v1203, %v1207
      %v1212 = vsub.f32 %v1204, %v1210
      %v1213 = vmul.f32 %v1211, 1.442695
      %v1214 = vpow.pop %v1213
      %v1215 = vmul.f32 %v1212, 1.442695
      %v1216 = vpow.pop %v1215
      %v1217 = vsel %vm876, %v1214, 0.0
      %1218 = vadd.xlane.f32.xlu0 %v1217
      %v1219 = vpop.xlane.xlu0 %1218
      %v1220 = vsel %vm876, %v1216, 0.0
      %1221 = vadd.xlane.f32.xlu0 %v1220
      %v1222 = vpop.xlane.xlu0 %1221
      %v1223 = vrcp.pop %v1219
      %v1224 = vmul.f32 %v1214, %v1223
      %v1225 = vrcp.pop %v1222
      %v1226 = vmul.f32 %v1216, %v1225
      %v1227 = vpack.c.bf16 %v1226, %v1224
      %1229 = vrot.lane.b32.xlu0 %v824, 96
      %v1230 = vpop.permute.xlu0 %1229
      %v1233 = vsel %vm876, %v1227, 0
      %1235 = vmatprep.subr.bf16.mxu0 0
      %1236 = vmatpush1.bf16.msra.mxu0 %v1230
      %1237 = vmatprep.subr.bf16.mxu0 0
      %1238 = vmatpush1.bf16.msra.mxu0 0
      %1239 = vmatprep.subr.bf16.mxu0 0
      %1240 = vmatpush1.bf16.msra.mxu0 0
      %1241 = vmatprep.subr.bf16.mxu0 0
      %1242 = vmatpush1.bf16.msra.mxu0 0
      %1243 = vmatprep.subr.bf16.mxu0 0
      %1244 = vmatpush1.bf16.msra.mxu0 0
      %1245 = vmatprep.subr.bf16.mxu0 0
      %1246 = vmatpush1.bf16.msra.mxu0 0
      %1247 = vmatprep.subr.bf16.mxu0 0
      %1248 = vmatpush1.bf16.msra.mxu0 0
      %1249 = vmatprep.subr.bf16.mxu0 0
      %1250 = vmatpush1.bf16.msra.mxu0 0
      %1251 = vmatprep.subr.bf16.mxu0 0
      %1252 = vmatpush1.bf16.msra.mxu0 0
      %1253 = vmatprep.subr.bf16.mxu0 0
      %1254 = vmatpush1.bf16.msra.mxu0 0
      %1255 = vmatprep.subr.bf16.mxu0 0
      %1256 = vmatpush1.bf16.msra.mxu0 0
      %1257 = vmatprep.subr.bf16.mxu0 0
      %1258 = vmatpush1.bf16.msra.mxu0 0
      %1259 = vmatprep.subr.bf16.mxu0 0
      %1260 = vmatpush1.bf16.msra.mxu0 0
      %1261 = vmatprep.subr.bf16.mxu0 0
      %1262 = vmatpush1.bf16.msra.mxu0 0
      %1263 = vmatprep.subr.bf16.mxu0 0
      %1264 = vmatpush1.bf16.msra.mxu0 0
      %1265 = vmatprep.subr.bf16.mxu0 0
      %1266 = vmatpush1.bf16.msra.mxu0 0
      %1267 = vmatprep.mubr.bf16.mxu0 0
      %1268 = vmatmul.mubr.bf16.gmra.mrb[0].mxu0 %v1233
      %v1269 = vpop.f32.mrb[0].mxu0
      %v1270 = vadd.f32 0.0, %v1269
      %v1271 = vpop.f32.mrb[0].mxu0
      %v1272 = vpop.f32.mrb[0].mxu0
      %v1273 = vadd.f32 0.0, %v1272
      %v1274 = vpop.f32.mrb[0].mxu0
      %1275 = vdwg.mxu0
      %1276 = vrot.lane.b32.xlu0 %v632, 64
      %v1277 = vpop.permute.xlu0 %1276
      %1278 = vrot.lane.b32.xlu0 %v633, 64
      %v1279 = vpop.permute.xlu0 %1278
      %v1282 = vmul.f32 %v583, %v1277
      %v1283 = vmul.f32 %v587, %v1279
      %1284 = vrot.lane.b32.xlu0 %v583, 64
      %v1285 = vpop.permute.xlu0 %1284
      %1286 = vrot.lane.b32.xlu0 %v587, 64
      %v1287 = vpop.permute.xlu0 %1286
      %v1288 = vsel %vm649, %v1285, 0
      %v1290 = vsel %vm649, %v1287, 0
      %1292 = vmatprep.subr.mxu0 0.0
      %1293 = vmatpush1.msra.mxu0 %v636
      %1294 = vmatprep.subr.mxu0 0.0
      %1295 = vmatpush1.msra.mxu0 %v637
      %1296 = vmatprep.subr.mxu0 0.0
      %1297 = vmatpush1.msra.mxu0 %v638
      %1298 = vmatprep.subr.mxu0 0.0
      %1299 = vmatpush1.msra.mxu0 %v639
      %1300 = vmatprep.subr.mxu0 0.0
      %1301 = vmatpush1.msra.mxu0 0.0
      %1302 = vmatprep.subr.mxu0 0.0
      %1303 = vmatpush1.msra.mxu0 0.0
      %1304 = vmatprep.subr.mxu0 0.0
      %1305 = vmatpush1.msra.mxu0 0.0
      %1306 = vmatprep.subr.mxu0 0.0
      %1307 = vmatpush1.msra.mxu0 0.0
      %1308 = vmatprep.subr.mxu0 0.0
      %1309 = vmatpush1.msra.mxu0 0.0
      %1310 = vmatprep.subr.mxu0 0.0
      %1311 = vmatpush1.msra.mxu0 0.0
      %1312 = vmatprep.subr.mxu0 0.0
      %1313 = vmatpush1.msra.mxu0 0.0
      %1314 = vmatprep.subr.mxu0 0.0
      %1315 = vmatpush1.msra.mxu0 0.0
      %1316 = vmatprep.subr.mxu0 0.0
      %1317 = vmatpush1.msra.mxu0 0.0
      %1318 = vmatprep.subr.mxu0 0.0
      %1319 = vmatpush1.msra.mxu0 0.0
      %1320 = vmatprep.subr.mxu0 0.0
      %1321 = vmatpush1.msra.mxu0 0.0
      %1322 = vmatprep.subr.mxu0 0.0
      %1323 = vmatpush1.msra.mxu0 0.0
      %1324 = vmatprep.subr.mxu0 0.0
      %1325 = vmatpush1.msra.mxu0 0.0
      %1326 = vmatprep.subr.mxu0 0.0
      %1327 = vmatpush1.msra.mxu0 0.0
      %1328 = vmatprep.subr.mxu0 0.0
      %1329 = vmatpush1.msra.mxu0 0.0
      %1330 = vmatprep.subr.mxu0 0.0
      %1331 = vmatpush1.msra.mxu0 0.0
      %1332 = vmatprep.subr.mxu0 0.0
      %1333 = vmatpush1.msra.mxu0 0.0
      %1334 = vmatprep.subr.mxu0 0.0
      %1335 = vmatpush1.msra.mxu0 0.0
      %1336 = vmatprep.subr.mxu0 0.0
      %1337 = vmatpush1.msra.mxu0 0.0
      %1338 = vmatprep.subr.mxu0 0.0
      %1339 = vmatpush1.msra.mxu0 0.0
      %1340 = vmatprep.subr.mxu0 0.0
      %1341 = vmatpush1.msra.mxu0 0.0
      %1342 = vmatprep.subr.mxu0 0.0
      %1343 = vmatpush1.msra.mxu0 0.0
      %1344 = vmatprep.subr.mxu0 0.0
      %1345 = vmatpush1.msra.mxu0 0.0
      %1346 = vmatprep.subr.mxu0 0.0
      %1347 = vmatpush1.msra.mxu0 0.0
      %1348 = vmatprep.subr.mxu0 0.0
      %1349 = vmatpush1.msra.mxu0 0.0
      %1350 = vmatprep.subr.mxu0 0.0
      %1351 = vmatpush1.msra.mxu0 0.0
      %1352 = vmatprep.subr.mxu0 0.0
      %1353 = vmatpush1.msra.mxu0 0.0
      %1354 = vmatprep.subr.mxu0 0.0
      %1355 = vmatpush1.msra.mxu0 0.0
      %1356 = vmatprep.mubr.f32.mxu0 0.0
      %1357 = vmatmul.mubr.f32.gmra.mrb[0].mxu0 %v1288
      %v1358 = vpop.f32.mrb[0].mxu0
      %v1359 = vadd.f32 0.0, %v1358
      %v1360 = vpop.f32.mrb[0].mxu0
      %1361 = vmatprep.mubr.f32.mxu0 0.0
      %1362 = vmatmul.mubr.f32.gmra.mrb[0].mxu0 %v1290
      %v1363 = vpop.f32.mrb[0].mxu0
      %v1364 = vadd.f32 0.0, %v1363
      %v1365 = vpop.f32.mrb[0].mxu0
      %1366 = vdwg.mxu0
      %v1367 = vmul.f32 %v1359, %v634
      %v1368 = vmul.f32 %v1364, %v635
      %1371 = vrot.lane.b32.xlu0 %v1367, 64
      %v1372 = vpop.permute.xlu0 %1371
      %1373 = vrot.lane.b32.xlu0 %v1368, 64
      %v1374 = vpop.permute.xlu0 %1373
      %v1377 = vadd.f32 %v1282, %v1372
      %v1378 = vadd.f32 %v1283, %v1374
      %v1379 = vmul.f32 %v585, %v1277
      %v1380 = vmul.f32 %v589, %v1279
      %1381 = vrot.lane.b32.xlu0 %v585, 64
      %v1382 = vpop.permute.xlu0 %1381
      %1383 = vrot.lane.b32.xlu0 %v589, 64
      %v1384 = vpop.permute.xlu0 %1383
      %v1385 = vsel %vm649, %v1382, 0
      %v1387 = vsel %vm649, %v1384, 0
      %1389 = vmatprep.subr.mxu0 0.0
      %1390 = vmatpush1.msra.mxu0 %v636
      %1391 = vmatprep.subr.mxu0 0.0
      %1392 = vmatpush1.msra.mxu0 %v637
      %1393 = vmatprep.subr.mxu0 0.0
      %1394 = vmatpush1.msra.mxu0 %v638
      %1395 = vmatprep.subr.mxu0 0.0
      %1396 = vmatpush1.msra.mxu0 %v639
      %1397 = vmatprep.subr.mxu0 0.0
      %1398 = vmatpush1.msra.mxu0 0.0
      %1399 = vmatprep.subr.mxu0 0.0
      %1400 = vmatpush1.msra.mxu0 0.0
      %1401 = vmatprep.subr.mxu0 0.0
      %1402 = vmatpush1.msra.mxu0 0.0
      %1403 = vmatprep.subr.mxu0 0.0
      %1404 = vmatpush1.msra.mxu0 0.0
      %1405 = vmatprep.subr.mxu0 0.0
      %1406 = vmatpush1.msra.mxu0 0.0
      %1407 = vmatprep.subr.mxu0 0.0
      %1408 = vmatpush1.msra.mxu0 0.0
      %1409 = vmatprep.subr.mxu0 0.0
      %1410 = vmatpush1.msra.mxu0 0.0
      %1411 = vmatprep.subr.mxu0 0.0
      %1412 = vmatpush1.msra.mxu0 0.0
      %1413 = vmatprep.subr.mxu0 0.0
      %1414 = vmatpush1.msra.mxu0 0.0
      %1415 = vmatprep.subr.mxu0 0.0
      %1416 = vmatpush1.msra.mxu0 0.0
      %1417 = vmatprep.subr.mxu0 0.0
      %1418 = vmatpush1.msra.mxu0 0.0
      %1419 = vmatprep.subr.mxu0 0.0
      %1420 = vmatpush1.msra.mxu0 0.0
      %1421 = vmatprep.subr.mxu0 0.0
      %1422 = vmatpush1.msra.mxu0 0.0
      %1423 = vmatprep.subr.mxu0 0.0
      %1424 = vmatpush1.msra.mxu0 0.0
      %1425 = vmatprep.subr.mxu0 0.0
      %1426 = vmatpush1.msra.mxu0 0.0
      %1427 = vmatprep.subr.mxu0 0.0
      %1428 = vmatpush1.msra.mxu0 0.0
      %1429 = vmatprep.subr.mxu0 0.0
      %1430 = vmatpush1.msra.mxu0 0.0
      %1431 = vmatprep.subr.mxu0 0.0
      %1432 = vmatpush1.msra.mxu0 0.0
      %1433 = vmatprep.subr.mxu0 0.0
      %1434 = vmatpush1.msra.mxu0 0.0
      %1435 = vmatprep.subr.mxu0 0.0
      %1436 = vmatpush1.msra.mxu0 0.0
      %1437 = vmatprep.subr.mxu0 0.0
      %1438 = vmatpush1.msra.mxu0 0.0
      %1439 = vmatprep.subr.mxu0 0.0
      %1440 = vmatpush1.msra.mxu0 0.0
      %1441 = vmatprep.subr.mxu0 0.0
      %1442 = vmatpush1.msra.mxu0 0.0
      %1443 = vmatprep.subr.mxu0 0.0
      %1444 = vmatpush1.msra.mxu0 0.0
      %1445 = vmatprep.subr.mxu0 0.0
      %1446 = vmatpush1.msra.mxu0 0.0
      %1447 = vmatprep.subr.mxu0 0.0
      %1448 = vmatpush1.msra.mxu0 0.0
      %1449 = vmatprep.subr.mxu0 0.0
      %1450 = vmatpush1.msra.mxu0 0.0
      %1451 = vmatprep.subr.mxu0 0.0
      %1452 = vmatpush1.msra.mxu0 0.0
      %1453 = vmatprep.mubr.f32.mxu0 0.0
      %1454 = vmatmul.mubr.f32.gmra.mrb[0].mxu0 %v1385
      %v1455 = vpop.f32.mrb[0].mxu0
      %v1456 = vadd.f32 0.0, %v1455
      %v1457 = vpop.f32.mrb[0].mxu0
      %1458 = vmatprep.mubr.f32.mxu0 0.0
      %1459 = vmatmul.mubr.f32.gmra.mrb[0].mxu0 %v1387
      %v1460 = vpop.f32.mrb[0].mxu0
      %v1461 = vadd.f32 0.0, %v1460
      %v1462 = vpop.f32.mrb[0].mxu0
      %1463 = vdwg.mxu0
      %v1464 = vmul.f32 %v1456, %v634
      %v1465 = vmul.f32 %v1461, %v635
      %1468 = vrot.lane.b32.xlu0 %v1464, 64
      %v1469 = vpop.permute.xlu0 %1468
      %1470 = vrot.lane.b32.xlu0 %v1465, 64
      %v1471 = vpop.permute.xlu0 %1470
      %v1474 = vadd.f32 %v1379, %v1469
      %v1475 = vadd.f32 %v1380, %v1471
      %v1476 = vpack.c.bf16 %v1378, %v1377
      %v1477 = vpack.c.bf16 %v1475, %v1474
      %1479 = vrot.lane.b32.xlu0 %v1476, 64
      %v1480 = vpop.permute.xlu0 %1479
      %1482 = vrot.lane.b32.xlu0 %v1477, 64
      %v1483 = vpop.permute.xlu0 %1482
      %v1485 = vsel %vm649, %v1480, 0
      %v1488 = vsel %vm649, %v1483, 0
      %1490 = vmatprep.subr.bf16.mxu0 0
      %1491 = vmatpush1.bf16.xpose.msra.mxu0 %v1488
      %1492 = vmatprep.subr.bf16.mxu0 0
      %1493 = vmatpush1.bf16.xpose.msra.mxu0 0
      %1494 = vmatprep.subr.bf16.mxu0 0
      %1495 = vmatpush1.bf16.xpose.msra.mxu0 0
      %1496 = vmatprep.subr.bf16.mxu0 0
      %1497 = vmatpush1.bf16.xpose.msra.mxu0 0
      %1498 = vmatprep.subr.bf16.mxu0 0
      %1499 = vmatpush1.bf16.xpose.msra.mxu0 0
      %1500 = vmatprep.subr.bf16.mxu0 0
      %1501 = vmatpush1.bf16.xpose.msra.mxu0 0
      %1502 = vmatprep.subr.bf16.mxu0 0
      %1503 = vmatpush1.bf16.xpose.msra.mxu0 0
      %1504 = vmatprep.subr.bf16.mxu0 0
      %1505 = vmatpush1.bf16.xpose.msra.mxu0 0
      %1506 = vmatprep.subr.bf16.mxu0 0
      %1507 = vmatpush1.bf16.xpose.msra.mxu0 0
      %1508 = vmatprep.subr.bf16.mxu0 0
      %1509 = vmatpush1.bf16.xpose.msra.mxu0 0
      %1510 = vmatprep.subr.bf16.mxu0 0
      %1511 = vmatpush1.bf16.xpose.msra.mxu0 0
      %1512 = vmatprep.subr.bf16.mxu0 0
      %1513 = vmatpush1.bf16.xpose.msra.mxu0 0
      %1514 = vmatprep.subr.bf16.mxu0 0
      %1515 = vmatpush1.bf16.xpose.msra.mxu0 0
      %1516 = vmatprep.subr.bf16.mxu0 0
      %1517 = vmatpush1.bf16.xpose.msra.mxu0 0
      %1518 = vmatprep.subr.bf16.mxu0 0
      %1519 = vmatpush1.bf16.xpose.msra.mxu0 0
      %1520 = vmatprep.subr.bf16.mxu0 0
      %1521 = vmatpush1.bf16.xpose.msra.mxu0 0
      %1522 = vmatprep.mubr.bf16.mxu0 0
      %1523 = vmatmul.mubr.bf16.gmra.mrb[0].mxu0 %v1485
      %v1524 = vpop.f32.mrb[0].mxu0
      %v1525 = vadd.f32 0.0, %v1524
      %v1526 = vpop.f32.mrb[0].mxu0
      %v1527 = vpop.f32.mrb[0].mxu0
      %v1528 = vadd.f32 0.0, %v1527
      %v1529 = vpop.f32.mrb[0].mxu0
      %1530 = vdwg.mxu0
      %v1531 = vmul.f32 %v1525, 0.17677669
      %v1532 = vmul.f32 %v1528, 0.17677669
      %v1533 = vsel %vm645, %v1531, -inf
      %v1534 = vsel %vm646, %v1532, -inf
      %v1535 = vsel %vm876, %v1533, -inf
      %1536 = vmax.xlane.f32.xlu0 %v1535
      %v1537 = vpop.xlane.xlu0 %1536
      %v1538 = vsel %vm876, %v1534, -inf
      %1539 = vmax.xlane.f32.xlu0 %v1538
      %v1540 = vpop.xlane.xlu0 %1539
      %v1541 = vsub.f32 %v1533, %v1537
      %v1542 = vsub.f32 %v1534, %v1540
      %v1543 = vmul.f32 %v1541, 1.442695
      %v1544 = vpow.pop %v1543
      %v1545 = vmul.f32 %v1542, 1.442695
      %v1546 = vpow.pop %v1545
      %v1547 = vsel %vm876, %v1544, 0.0
      %1548 = vadd.xlane.f32.xlu0 %v1547
      %v1549 = vpop.xlane.xlu0 %1548
      %v1550 = vsel %vm876, %v1546, 0.0
      %1551 = vadd.xlane.f32.xlu0 %v1550
      %v1552 = vpop.xlane.xlu0 %1551
      %v1553 = vrcp.pop %v1549
      %v1554 = vmul.f32 %v1544, %v1553
      %v1555 = vrcp.pop %v1552
      %v1556 = vmul.f32 %v1546, %v1555
      %v1557 = vpack.c.bf16 %v1556, %v1554
      %1558 = vrot.lane.b32.xlu0 %v824, 64
      %v1559 = vpop.permute.xlu0 %1558
      %v1562 = vsel %vm876, %v1557, 0
      %1564 = vmatprep.subr.bf16.mxu0 0
      %1565 = vmatpush1.bf16.msra.mxu0 %v1559
      %1566 = vmatprep.subr.bf16.mxu0 0
      %1567 = vmatpush1.bf16.msra.mxu0 0
      %1568 = vmatprep.subr.bf16.mxu0 0
      %1569 = vmatpush1.bf16.msra.mxu0 0
      %1570 = vmatprep.subr.bf16.mxu0 0
      %1571 = vmatpush1.bf16.msra.mxu0 0
      %1572 = vmatprep.subr.bf16.mxu0 0
      %1573 = vmatpush1.bf16.msra.mxu0 0
      %1574 = vmatprep.subr.bf16.mxu0 0
      %1575 = vmatpush1.bf16.msra.mxu0 0
      %1576 = vmatprep.subr.bf16.mxu0 0
      %1577 = vmatpush1.bf16.msra.mxu0 0
      %1578 = vmatprep.subr.bf16.mxu0 0
      %1579 = vmatpush1.bf16.msra.mxu0 0
      %1580 = vmatprep.subr.bf16.mxu0 0
      %1581 = vmatpush1.bf16.msra.mxu0 0
      %1582 = vmatprep.subr.bf16.mxu0 0
      %1583 = vmatpush1.bf16.msra.mxu0 0
      %1584 = vmatprep.subr.bf16.mxu0 0
      %1585 = vmatpush1.bf16.msra.mxu0 0
      %1586 = vmatprep.subr.bf16.mxu0 0
      %1587 = vmatpush1.bf16.msra.mxu0 0
      %1588 = vmatprep.subr.bf16.mxu0 0
      %1589 = vmatpush1.bf16.msra.mxu0 0
      %1590 = vmatprep.subr.bf16.mxu0 0
      %1591 = vmatpush1.bf16.msra.mxu0 0
      %1592 = vmatprep.subr.bf16.mxu0 0
      %1593 = vmatpush1.bf16.msra.mxu0 0
      %1594 = vmatprep.subr.bf16.mxu0 0
      %1595 = vmatpush1.bf16.msra.mxu0 0
      %1596 = vmatprep.mubr.bf16.mxu0 0
      %1597 = vmatmul.mubr.bf16.gmra.mrb[0].mxu0 %v1562
      %v1598 = vpop.f32.mrb[0].mxu0
      %v1599 = vadd.f32 0.0, %v1598
      %v1600 = vpop.f32.mrb[0].mxu0
      %v1601 = vpop.f32.mrb[0].mxu0
      %v1602 = vadd.f32 0.0, %v1601
      %v1603 = vpop.f32.mrb[0].mxu0
      %1604 = vdwg.mxu0
      %1605 = vrot.lane.b32.xlu0 %v632, 96
      %v1606 = vpop.permute.xlu0 %1605
      %1607 = vrot.lane.b32.xlu0 %v633, 96
      %v1608 = vpop.permute.xlu0 %1607
      %v1611 = vmul.f32 %v583, %v1606
      %v1612 = vmul.f32 %v587, %v1608
      %1613 = vrot.lane.b32.xlu0 %v583, 32
      %v1614 = vpop.permute.xlu0 %1613
      %1615 = vrot.lane.b32.xlu0 %v587, 32
      %v1616 = vpop.permute.xlu0 %1615
      %v1617 = vsel %vm649, %v1614, 0
      %v1619 = vsel %vm649, %v1616, 0
      %1621 = vmatprep.subr.mxu0 0.0
      %1622 = vmatpush1.msra.mxu0 %v636
      %1623 = vmatprep.subr.mxu0 0.0
      %1624 = vmatpush1.msra.mxu0 %v637
      %1625 = vmatprep.subr.mxu0 0.0
      %1626 = vmatpush1.msra.mxu0 %v638
      %1627 = vmatprep.subr.mxu0 0.0
      %1628 = vmatpush1.msra.mxu0 %v639
      %1629 = vmatprep.subr.mxu0 0.0
      %1630 = vmatpush1.msra.mxu0 0.0
      %1631 = vmatprep.subr.mxu0 0.0
      %1632 = vmatpush1.msra.mxu0 0.0
      %1633 = vmatprep.subr.mxu0 0.0
      %1634 = vmatpush1.msra.mxu0 0.0
      %1635 = vmatprep.subr.mxu0 0.0
      %1636 = vmatpush1.msra.mxu0 0.0
      %1637 = vmatprep.subr.mxu0 0.0
      %1638 = vmatpush1.msra.mxu0 0.0
      %1639 = vmatprep.subr.mxu0 0.0
      %1640 = vmatpush1.msra.mxu0 0.0
      %1641 = vmatprep.subr.mxu0 0.0
      %1642 = vmatpush1.msra.mxu0 0.0
      %1643 = vmatprep.subr.mxu0 0.0
      %1644 = vmatpush1.msra.mxu0 0.0
      %1645 = vmatprep.subr.mxu0 0.0
      %1646 = vmatpush1.msra.mxu0 0.0
      %1647 = vmatprep.subr.mxu0 0.0
      %1648 = vmatpush1.msra.mxu0 0.0
      %1649 = vmatprep.subr.mxu0 0.0
      %1650 = vmatpush1.msra.mxu0 0.0
      %1651 = vmatprep.subr.mxu0 0.0
      %1652 = vmatpush1.msra.mxu0 0.0
      %1653 = vmatprep.subr.mxu0 0.0
      %1654 = vmatpush1.msra.mxu0 0.0
      %1655 = vmatprep.subr.mxu0 0.0
      %1656 = vmatpush1.msra.mxu0 0.0
      %1657 = vmatprep.subr.mxu0 0.0
      %1658 = vmatpush1.msra.mxu0 0.0
      %1659 = vmatprep.subr.mxu0 0.0
      %1660 = vmatpush1.msra.mxu0 0.0
      %1661 = vmatprep.subr.mxu0 0.0
      %1662 = vmatpush1.msra.mxu0 0.0
      %1663 = vmatprep.subr.mxu0 0.0
      %1664 = vmatpush1.msra.mxu0 0.0
      %1665 = vmatprep.subr.mxu0 0.0
      %1666 = vmatpush1.msra.mxu0 0.0
      %1667 = vmatprep.subr.mxu0 0.0
      %1668 = vmatpush1.msra.mxu0 0.0
      %1669 = vmatprep.subr.mxu0 0.0
      %1670 = vmatpush1.msra.mxu0 0.0
      %1671 = vmatprep.subr.mxu0 0.0
      %1672 = vmatpush1.msra.mxu0 0.0
      %1673 = vmatprep.subr.mxu0 0.0
      %1674 = vmatpush1.msra.mxu0 0.0
      %1675 = vmatprep.subr.mxu0 0.0
      %1676 = vmatpush1.msra.mxu0 0.0
      %1677 = vmatprep.subr.mxu0 0.0
      %1678 = vmatpush1.msra.mxu0 0.0
      %1679 = vmatprep.subr.mxu0 0.0
      %1680 = vmatpush1.msra.mxu0 0.0
      %1681 = vmatprep.subr.mxu0 0.0
      %1682 = vmatpush1.msra.mxu0 0.0
      %1683 = vmatprep.subr.mxu0 0.0
      %1684 = vmatpush1.msra.mxu0 0.0
      %1685 = vmatprep.mubr.f32.mxu0 0.0
      %1686 = vmatmul.mubr.f32.gmra.mrb[0].mxu0 %v1617
      %v1687 = vpop.f32.mrb[0].mxu0
      %v1688 = vadd.f32 0.0, %v1687
      %v1689 = vpop.f32.mrb[0].mxu0
      %1690 = vmatprep.mubr.f32.mxu0 0.0
      %1691 = vmatmul.mubr.f32.gmra.mrb[0].mxu0 %v1619
      %v1692 = vpop.f32.mrb[0].mxu0
      %v1693 = vadd.f32 0.0, %v1692
      %v1694 = vpop.f32.mrb[0].mxu0
      %1695 = vdwg.mxu0
      %v1696 = vmul.f32 %v1688, %v634
      %v1697 = vmul.f32 %v1693, %v635
      %1700 = vrot.lane.b32.xlu0 %v1696, 96
      %v1701 = vpop.permute.xlu0 %1700
      %1702 = vrot.lane.b32.xlu0 %v1697, 96
      %v1703 = vpop.permute.xlu0 %1702
      %v1706 = vadd.f32 %v1611, %v1701
      %v1707 = vadd.f32 %v1612, %v1703
      %v1708 = vmul.f32 %v585, %v1606
      %v1709 = vmul.f32 %v589, %v1608
      %1710 = vrot.lane.b32.xlu0 %v585, 32
      %v1711 = vpop.permute.xlu0 %1710
      %1712 = vrot.lane.b32.xlu0 %v589, 32
      %v1713 = vpop.permute.xlu0 %1712
      %v1714 = vsel %vm649, %v1711, 0
      %v1716 = vsel %vm649, %v1713, 0
      %1718 = vmatprep.subr.mxu0 0.0
      %1719 = vmatpush1.msra.mxu0 %v636
      %1720 = vmatprep.subr.mxu0 0.0
      %1721 = vmatpush1.msra.mxu0 %v637
      %1722 = vmatprep.subr.mxu0 0.0
      %1723 = vmatpush1.msra.mxu0 %v638
      %1724 = vmatprep.subr.mxu0 0.0
      %1725 = vmatpush1.msra.mxu0 %v639
      %1726 = vmatprep.subr.mxu0 0.0
      %1727 = vmatpush1.msra.mxu0 0.0
      %1728 = vmatprep.subr.mxu0 0.0
      %1729 = vmatpush1.msra.mxu0 0.0
      %1730 = vmatprep.subr.mxu0 0.0
      %1731 = vmatpush1.msra.mxu0 0.0
      %1732 = vmatprep.subr.mxu0 0.0
      %1733 = vmatpush1.msra.mxu0 0.0
      %1734 = vmatprep.subr.mxu0 0.0
      %1735 = vmatpush1.msra.mxu0 0.0
      %1736 = vmatprep.subr.mxu0 0.0
      %1737 = vmatpush1.msra.mxu0 0.0
      %1738 = vmatprep.subr.mxu0 0.0
      %1739 = vmatpush1.msra.mxu0 0.0
      %1740 = vmatprep.subr.mxu0 0.0
      %1741 = vmatpush1.msra.mxu0 0.0
      %1742 = vmatprep.subr.mxu0 0.0
      %1743 = vmatpush1.msra.mxu0 0.0
      %1744 = vmatprep.subr.mxu0 0.0
      %1745 = vmatpush1.msra.mxu0 0.0
      %1746 = vmatprep.subr.mxu0 0.0
      %1747 = vmatpush1.msra.mxu0 0.0
      %1748 = vmatprep.subr.mxu0 0.0
      %1749 = vmatpush1.msra.mxu0 0.0
      %1750 = vmatprep.subr.mxu0 0.0
      %1751 = vmatpush1.msra.mxu0 0.0
      %1752 = vmatprep.subr.mxu0 0.0
      %1753 = vmatpush1.msra.mxu0 0.0
      %1754 = vmatprep.subr.mxu0 0.0
      %1755 = vmatpush1.msra.mxu0 0.0
      %1756 = vmatprep.subr.mxu0 0.0
      %1757 = vmatpush1.msra.mxu0 0.0
      %1758 = vmatprep.subr.mxu0 0.0
      %1759 = vmatpush1.msra.mxu0 0.0
      %1760 = vmatprep.subr.mxu0 0.0
      %1761 = vmatpush1.msra.mxu0 0.0
      %1762 = vmatprep.subr.mxu0 0.0
      %1763 = vmatpush1.msra.mxu0 0.0
      %1764 = vmatprep.subr.mxu0 0.0
      %1765 = vmatpush1.msra.mxu0 0.0
      %1766 = vmatprep.subr.mxu0 0.0
      %1767 = vmatpush1.msra.mxu0 0.0
      %1768 = vmatprep.subr.mxu0 0.0
      %1769 = vmatpush1.msra.mxu0 0.0
      %1770 = vmatprep.subr.mxu0 0.0
      %1771 = vmatpush1.msra.mxu0 0.0
      %1772 = vmatprep.subr.mxu0 0.0
      %1773 = vmatpush1.msra.mxu0 0.0
      %1774 = vmatprep.subr.mxu0 0.0
      %1775 = vmatpush1.msra.mxu0 0.0
      %1776 = vmatprep.subr.mxu0 0.0
      %1777 = vmatpush1.msra.mxu0 0.0
      %1778 = vmatprep.subr.mxu0 0.0
      %1779 = vmatpush1.msra.mxu0 0.0
      %1780 = vmatprep.subr.mxu0 0.0
      %1781 = vmatpush1.msra.mxu0 0.0
      %1782 = vmatprep.mubr.f32.mxu0 0.0
      %1783 = vmatmul.mubr.f32.gmra.mrb[0].mxu0 %v1714
      %v1784 = vpop.f32.mrb[0].mxu0
      %v1785 = vadd.f32 0.0, %v1784
      %v1786 = vpop.f32.mrb[0].mxu0
      %1787 = vmatprep.mubr.f32.mxu0 0.0
      %1788 = vmatmul.mubr.f32.gmra.mrb[0].mxu0 %v1716
      %v1789 = vpop.f32.mrb[0].mxu0
      %v1790 = vadd.f32 0.0, %v1789
      %v1791 = vpop.f32.mrb[0].mxu0
      %1792 = vdwg.mxu0
      %v1793 = vmul.f32 %v1785, %v634
      %v1794 = vmul.f32 %v1790, %v635
      %1797 = vrot.lane.b32.xlu0 %v1793, 96
      %v1798 = vpop.permute.xlu0 %1797
      %1799 = vrot.lane.b32.xlu0 %v1794, 96
      %v1800 = vpop.permute.xlu0 %1799
      %v1803 = vadd.f32 %v1708, %v1798
      %v1804 = vadd.f32 %v1709, %v1800
      %v1805 = vpack.c.bf16 %v1707, %v1706
      %v1806 = vpack.c.bf16 %v1804, %v1803
      %1808 = vrot.lane.b32.xlu0 %v1805, 32
      %v1809 = vpop.permute.xlu0 %1808
      %1811 = vrot.lane.b32.xlu0 %v1806, 32
      %v1812 = vpop.permute.xlu0 %1811
      %v1814 = vsel %vm649, %v1809, 0
      %v1817 = vsel %vm649, %v1812, 0
      %1819 = vmatprep.subr.bf16.mxu0 0
      %1820 = vmatpush1.bf16.xpose.msra.mxu0 %v1817
      %1821 = vmatprep.subr.bf16.mxu0 0
      %1822 = vmatpush1.bf16.xpose.msra.mxu0 0
      %1823 = vmatprep.subr.bf16.mxu0 0
      %1824 = vmatpush1.bf16.xpose.msra.mxu0 0
      %1825 = vmatprep.subr.bf16.mxu0 0
      %1826 = vmatpush1.bf16.xpose.msra.mxu0 0
      %1827 = vmatprep.subr.bf16.mxu0 0
      %1828 = vmatpush1.bf16.xpose.msra.mxu0 0
      %1829 = vmatprep.subr.bf16.mxu0 0
      %1830 = vmatpush1.bf16.xpose.msra.mxu0 0
      %1831 = vmatprep.subr.bf16.mxu0 0
      %1832 = vmatpush1.bf16.xpose.msra.mxu0 0
      %1833 = vmatprep.subr.bf16.mxu0 0
      %1834 = vmatpush1.bf16.xpose.msra.mxu0 0
      %1835 = vmatprep.subr.bf16.mxu0 0
      %1836 = vmatpush1.bf16.xpose.msra.mxu0 0
      %1837 = vmatprep.subr.bf16.mxu0 0
      %1838 = vmatpush1.bf16.xpose.msra.mxu0 0
      %1839 = vmatprep.subr.bf16.mxu0 0
      %1840 = vmatpush1.bf16.xpose.msra.mxu0 0
      %1841 = vmatprep.subr.bf16.mxu0 0
      %1842 = vmatpush1.bf16.xpose.msra.mxu0 0
      %1843 = vmatprep.subr.bf16.mxu0 0
      %1844 = vmatpush1.bf16.xpose.msra.mxu0 0
      %1845 = vmatprep.subr.bf16.mxu0 0
      %1846 = vmatpush1.bf16.xpose.msra.mxu0 0
      %1847 = vmatprep.subr.bf16.mxu0 0
      %1848 = vmatpush1.bf16.xpose.msra.mxu0 0
      %1849 = vmatprep.subr.bf16.mxu0 0
      %1850 = vmatpush1.bf16.xpose.msra.mxu0 0
      %1851 = vmatprep.mubr.bf16.mxu0 0
      %1852 = vmatmul.mubr.bf16.gmra.mrb[0].mxu0 %v1814
      %v1853 = vpop.f32.mrb[0].mxu0
      %v1854 = vadd.f32 0.0, %v1853
      %v1855 = vpop.f32.mrb[0].mxu0
      %v1856 = vpop.f32.mrb[0].mxu0
      %v1857 = vadd.f32 0.0, %v1856
      %v1858 = vpop.f32.mrb[0].mxu0
      %1859 = vdwg.mxu0
      %v1860 = vmul.f32 %v1854, 0.17677669
      %v1861 = vmul.f32 %v1857, 0.17677669
      %v1862 = vsel %vm645, %v1860, -inf
      %v1863 = vsel %vm646, %v1861, -inf
      %v1864 = vsel %vm876, %v1862, -inf
      %1865 = vmax.xlane.f32.xlu0 %v1864
      %v1866 = vpop.xlane.xlu0 %1865
      %v1867 = vsel %vm876, %v1863, -inf
      %1868 = vmax.xlane.f32.xlu0 %v1867
      %v1869 = vpop.xlane.xlu0 %1868
      %v1870 = vsub.f32 %v1862, %v1866
      %v1871 = vsub.f32 %v1863, %v1869
      %v1872 = vmul.f32 %v1870, 1.442695
      %v1873 = vpow.pop %v1872
      %v1874 = vmul.f32 %v1871, 1.442695
      %v1875 = vpow.pop %v1874
      %v1876 = vsel %vm876, %v1873, 0.0
      %1877 = vadd.xlane.f32.xlu0 %v1876
      %v1878 = vpop.xlane.xlu0 %1877
      %v1879 = vsel %vm876, %v1875, 0.0
      %1880 = vadd.xlane.f32.xlu0 %v1879
      %v1881 = vpop.xlane.xlu0 %1880
      %v1882 = vrcp.pop %v1878
      %v1883 = vmul.f32 %v1873, %v1882
      %v1884 = vrcp.pop %v1881
      %v1885 = vmul.f32 %v1875, %v1884
      %v1886 = vpack.c.bf16 %v1885, %v1883
      %1887 = vrot.lane.b32.xlu0 %v824, 32
      %v1888 = vpop.permute.xlu0 %1887
      %v1891 = vsel %vm876, %v1886, 0
      %1893 = vmatprep.subr.bf16.mxu0 0
      %1894 = vmatpush1.bf16.msra.mxu0 %v1888
      %1895 = vmatprep.subr.bf16.mxu0 0
      %1896 = vmatpush1.bf16.msra.mxu0 0
      %1897 = vmatprep.subr.bf16.mxu0 0
      %1898 = vmatpush1.bf16.msra.mxu0 0
      %1899 = vmatprep.subr.bf16.mxu0 0
      %1900 = vmatpush1.bf16.msra.mxu0 0
      %1901 = vmatprep.subr.bf16.mxu0 0
      %1902 = vmatpush1.bf16.msra.mxu0 0
      %1903 = vmatprep.subr.bf16.mxu0 0
      %1904 = vmatpush1.bf16.msra.mxu0 0
      %1905 = vmatprep.subr.bf16.mxu0 0
      %1906 = vmatpush1.bf16.msra.mxu0 0
      %1907 = vmatprep.subr.bf16.mxu0 0
      %1908 = vmatpush1.bf16.msra.mxu0 0
      %1909 = vmatprep.subr.bf16.mxu0 0
      %1910 = vmatpush1.bf16.msra.mxu0 0
      %1911 = vmatprep.subr.bf16.mxu0 0
      %1912 = vmatpush1.bf16.msra.mxu0 0
      %1913 = vmatprep.subr.bf16.mxu0 0
      %1914 = vmatpush1.bf16.msra.mxu0 0
      %1915 = vmatprep.subr.bf16.mxu0 0
      %1916 = vmatpush1.bf16.msra.mxu0 0
      %1917 = vmatprep.subr.bf16.mxu0 0
      %1918 = vmatpush1.bf16.msra.mxu0 0
      %1919 = vmatprep.subr.bf16.mxu0 0
      %1920 = vmatpush1.bf16.msra.mxu0 0
      %1921 = vmatprep.subr.bf16.mxu0 0
      %1922 = vmatpush1.bf16.msra.mxu0 0
      %1923 = vmatprep.subr.bf16.mxu0 0
      %1924 = vmatpush1.bf16.msra.mxu0 0
      %1925 = vmatprep.mubr.bf16.mxu0 0
      %1926 = vmatmul.mubr.bf16.gmra.mrb[0].mxu0 %v1891
      %v1927 = vpop.f32.mrb[0].mxu0
      %v1928 = vadd.f32 0.0, %v1927
      %v1929 = vpop.f32.mrb[0].mxu0
      %v1930 = vpop.f32.mrb[0].mxu0
      %v1931 = vadd.f32 0.0, %v1930
      %v1932 = vpop.f32.mrb[0].mxu0
      %1933 = vdwg.mxu0
      %1936 = vrot.lane.b32.xlu0 %v1270, 32
      %v1937 = vpop.permute.xlu0 %1936
      %1938 = vrot.lane.b32.xlu0 %v1273, 32
      %v1939 = vpop.permute.xlu0 %1938
      %1944 = vrot.lane.b32.xlu0 %v1599, 64
      %v1945 = vpop.permute.xlu0 %1944
      %1946 = vrot.lane.b32.xlu0 %v1602, 64
      %v1947 = vpop.permute.xlu0 %1946
      %1952 = vrot.lane.b32.xlu0 %v1928, 96
      %v1953 = vpop.permute.xlu0 %1952
      %1954 = vrot.lane.b32.xlu0 %v1931, 96
      %v1955 = vpop.permute.xlu0 %1954
      %v1958 = vsel %vm649, %v938, %v1937
      %v1959 = vsel %vm649, %v941, %v1939
      %vm1960 = vcmask 523264
      %v1961 = vsel %vm1960, %v1958, %v1945
      %v1962 = vsel %vm1960, %v1959, %v1947
      %vm1963 = vcmask 785408
      %v1964 = vsel %vm1963, %v1961, %v1953
      %v1965 = vsel %vm1963, %v1962, %v1955
      %v1966 = vpack.c.bf16 %v1965, %v1964
      %v1967 = vld [vmem:[%s3] sm:$0xf]
      %v1968 = vld [vmem:[%s3 + $0x4] sm:$0xf]
      %v1969 = vld [vmem:[%s3 + $0x8] sm:$0xf]
      %v1970 = vld [vmem:[%s3 + $0xc] sm:$0xf]
      %v1971 = vld [vmem:[%s3 + $0x10] sm:$0xf]
      %v1972 = vld [vmem:[%s3 + $0x14] sm:$0xf]
      %v1973 = vld [vmem:[%s3 + $0x18] sm:$0xf]
      %v1974 = vld [vmem:[%s3 + $0x1c] sm:$0xf]
      %v1975 = vld [vmem:[%s3 + $0x20] sm:$0xf]
      %v1976 = vld [vmem:[%s3 + $0x24] sm:$0xf]
      %v1977 = vld [vmem:[%s3 + $0x28] sm:$0xf]
      %v1978 = vld [vmem:[%s3 + $0x2c] sm:$0xf]
      %v1979 = vld [vmem:[%s3 + $0x30] sm:$0xf]
      %v1980 = vld [vmem:[%s3 + $0x34] sm:$0xf]
      %v1981 = vld [vmem:[%s3 + $0x38] sm:$0xf]
      %v1982 = vld [vmem:[%s3 + $0x3c] sm:$0xf]
      %v1999 = vunpack.c.l.b16 %v1967
      %v2000 = vunpack.c.l.b16 %v1968
      %v2001 = vunpack.c.l.b16 %v1969
      %v2002 = vunpack.c.l.b16 %v1970
      %v2003 = vunpack.c.l.b16 %v1971
      %v2004 = vunpack.c.l.b16 %v1972
      %v2005 = vunpack.c.l.b16 %v1973
      %v2006 = vunpack.c.l.b16 %v1974
      %v2007 = vunpack.c.l.b16 %v1975
      %v2008 = vunpack.c.l.b16 %v1976
      %v2009 = vunpack.c.l.b16 %v1977
      %v2010 = vunpack.c.l.b16 %v1978
      %v2011 = vunpack.c.l.b16 %v1979
      %v2012 = vunpack.c.l.b16 %v1980
      %v2013 = vunpack.c.l.b16 %v1981
      %v2014 = vunpack.c.l.b16 %v1982
      %v2015 = vpack.c.b16 %v2000, %v1999
      %v2016 = vpack.c.b16 %v2002, %v2001
      %v2017 = vpack.c.b16 %v2004, %v2003
      %v2018 = vpack.c.b16 %v2006, %v2005
      %v2019 = vpack.c.b16 %v2008, %v2007
      %v2020 = vpack.c.b16 %v2010, %v2009
      %v2021 = vpack.c.b16 %v2012, %v2011
      %v2022 = vpack.c.b16 %v2014, %v2013
      %2031 = vmatprep.subr.bf16.mxu0 0
      %2032 = vmatpush1.bf16.msra.mxu0 %v2015
      %2033 = vmatprep.subr.bf16.mxu0 0
      %2034 = vmatpush1.bf16.msra.mxu0 %v2016
      %2035 = vmatprep.subr.bf16.mxu0 0
      %2036 = vmatpush1.bf16.msra.mxu0 %v2017
      %2037 = vmatprep.subr.bf16.mxu0 0
      %2038 = vmatpush1.bf16.msra.mxu0 %v2018
      %2039 = vmatprep.subr.bf16.mxu0 0
      %2040 = vmatpush1.bf16.msra.mxu0 %v2019
      %2041 = vmatprep.subr.bf16.mxu0 0
      %2042 = vmatpush1.bf16.msra.mxu0 %v2020
      %2043 = vmatprep.subr.bf16.mxu0 0
      %2044 = vmatpush1.bf16.msra.mxu0 %v2021
      %2045 = vmatprep.subr.bf16.mxu0 0
      %2046 = vmatpush1.bf16.msra.mxu0 %v2022
      %2047 = vmatprep.subr.bf16.mxu0 0
      %2048 = vmatpush1.bf16.msra.mxu0 0
      %2049 = vmatprep.subr.bf16.mxu0 0
      %2050 = vmatpush1.bf16.msra.mxu0 0
      %2051 = vmatprep.subr.bf16.mxu0 0
      %2052 = vmatpush1.bf16.msra.mxu0 0
      %2053 = vmatprep.subr.bf16.mxu0 0
      %2054 = vmatpush1.bf16.msra.mxu0 0
      %2055 = vmatprep.subr.bf16.mxu0 0
      %2056 = vmatpush1.bf16.msra.mxu0 0
      %2057 = vmatprep.subr.bf16.mxu0 0
      %2058 = vmatpush1.bf16.msra.mxu0 0
      %2059 = vmatprep.subr.bf16.mxu0 0
      %2060 = vmatpush1.bf16.msra.mxu0 0
      %2061 = vmatprep.subr.bf16.mxu0 0
      %2062 = vmatpush1.bf16.msra.mxu0 0
      %2063 = vmatprep.mubr.bf16.mxu0 0
      %2064 = vmatmul.mubr.bf16.gmra.mrb[0].mxu0 %v1966
      %v2065 = vpop.f32.mrb[0].mxu0
      %v2066 = vadd.f32 0.0, %v2065
      %v2067 = vpop.f32.mrb[0].mxu0
      %v2068 = vpop.f32.mrb[0].mxu0
      %v2069 = vadd.f32 0.0, %v2068
      %v2070 = vpop.f32.mrb[0].mxu0
      %2071 = vdwg.mxu0
      %v2072 = vadd.f32 %v361, %v2066
      %v2073 = vadd.f32 %v362, %v2069
      %v2074 = vmul.f32 %v2072, %v2072
      %v2075 = vmul.f32 %v2073, %v2073
      %2076 = vadd.xlane.f32.xlu0 %v2074
      %v2077 = vpop.xlane.xlu0 %2076
      %2078 = vadd.xlane.f32.xlu0 %v2075
      %v2079 = vpop.xlane.xlu0 %2078
      %v2080 = vmul.f32 %v2077, %v369
      %v2081 = vmul.f32 %v2079, %v369
      %v2082 = vadd.f32 %v2080, 1e-05
      %v2083 = vadd.f32 %v2081, 1e-05
      %v2084 = vrsqrt.pop %v2082
      %v2085 = vrsqrt.pop %v2083
      %v2086 = vmul.f32 %v2072, %v2084
      %v2087 = vmul.f32 %v2073, %v2085
      %v2088 = vld [vmem:[%s4] sm:$0x1]
      %v2090 = vlaneseq
      %v2091 = vshrl.u32 %v2090, 7
      %v2092 = vsub.s32 0, %v2091
      %v2093 = vrot.slane %v2088, %v2092
      %v2095 = vmul.f32 %v2086, %v2093
      %v2096 = vmul.f32 %v2087, %v2093
      %v2097 = vpack.c.bf16 %v2096, %v2095
      %v2098 = vld [vmem:[%s5] sm:$0xff]
      %v2099 = vld [vmem:[%s5 + $0x8] sm:$0xff]
      %v2100 = vld [vmem:[%s5 + $0x10] sm:$0xff]
      %v2101 = vld [vmem:[%s5 + $0x18] sm:$0xff]
      %v2102 = vld [vmem:[%s5 + $0x20] sm:$0xff]
      %v2103 = vld [vmem:[%s5 + $0x28] sm:$0xff]
      %v2104 = vld [vmem:[%s5 + $0x30] sm:$0xff]
      %v2105 = vld [vmem:[%s5 + $0x38] sm:$0xff]
      %v2106 = vld [vmem:[%s5 + $0x40] sm:$0xff]
      %v2107 = vld [vmem:[%s5 + $0x48] sm:$0xff]
      %v2108 = vld [vmem:[%s5 + $0x50] sm:$0xff]
      %v2109 = vld [vmem:[%s5 + $0x58] sm:$0xff]
      %v2110 = vld [vmem:[%s5 + $0x60] sm:$0xff]
      %v2111 = vld [vmem:[%s5 + $0x68] sm:$0xff]
      %v2112 = vld [vmem:[%s5 + $0x70] sm:$0xff]
      %v2113 = vld [vmem:[%s5 + $0x78] sm:$0xff]
      %v2114 = vld [vmem:[%s5 + $0x80] sm:$0xff]
      %v2115 = vld [vmem:[%s5 + $0x88] sm:$0xff]
      %v2116 = vld [vmem:[%s5 + $0x90] sm:$0xff]
      %v2117 = vld [vmem:[%s5 + $0x98] sm:$0xff]
      %v2118 = vld [vmem:[%s5 + $0xa0] sm:$0xff]
      %v2119 = vld [vmem:[%s5 + $0xa8] sm:$0xff]
      %v2120 = vld [vmem:[%s5 + $0xb0] sm:$0xff]
      %v2121 = vld [vmem:[%s5 + $0xb8] sm:$0xff]
      %v2122 = vld [vmem:[%s5 + $0xc0] sm:$0xff]
      %v2123 = vld [vmem:[%s5 + $0xc8] sm:$0xff]
      %v2124 = vld [vmem:[%s5 + $0xd0] sm:$0xff]
      %v2125 = vld [vmem:[%s5 + $0xd8] sm:$0xff]
      %v2126 = vld [vmem:[%s5 + $0xe0] sm:$0xff]
      %v2127 = vld [vmem:[%s5 + $0xe8] sm:$0xff]
      %v2128 = vld [vmem:[%s5 + $0xf0] sm:$0xff]
      %v2129 = vld [vmem:[%s5 + $0xf8] sm:$0xff]
      %v2130 = vld [vmem:[%s5 + $0x100] sm:$0xff]
      %v2131 = vld [vmem:[%s5 + $0x108] sm:$0xff]
      %v2132 = vld [vmem:[%s5 + $0x110] sm:$0xff]
      %v2133 = vld [vmem:[%s5 + $0x118] sm:$0xff]
      %v2134 = vld [vmem:[%s5 + $0x120] sm:$0xff]
      %v2135 = vld [vmem:[%s5 + $0x128] sm:$0xff]
      %v2136 = vld [vmem:[%s5 + $0x130] sm:$0xff]
      %v2137 = vld [vmem:[%s5 + $0x138] sm:$0xff]
      %v2138 = vld [vmem:[%s5 + $0x140] sm:$0xff]
      %v2139 = vld [vmem:[%s5 + $0x148] sm:$0xff]
      %v2140 = vld [vmem:[%s5 + $0x150] sm:$0xff]
      %v2141 = vld [vmem:[%s5 + $0x158] sm:$0xff]
      %v2142 = vld [vmem:[%s5 + $0x160] sm:$0xff]
      %v2143 = vld [vmem:[%s5 + $0x168] sm:$0xff]
      %v2144 = vld [vmem:[%s5 + $0x170] sm:$0xff]
      %v2145 = vld [vmem:[%s5 + $0x178] sm:$0xff]
      %v2194 = vunpack.c.l.b16 %v2098
      %v2195 = vunpack.c.h.b16 %v2098
      %v2196 = vunpack.c.l.b16 %v2099
      %v2197 = vunpack.c.h.b16 %v2099
      %v2198 = vunpack.c.l.b16 %v2100
      %v2199 = vunpack.c.h.b16 %v2100
      %v2200 = vunpack.c.l.b16 %v2101
      %v2201 = vunpack.c.h.b16 %v2101
      %v2202 = vunpack.c.l.b16 %v2102
      %v2203 = vunpack.c.h.b16 %v2102
      %v2204 = vunpack.c.l.b16 %v2103
      %v2205 = vunpack.c.h.b16 %v2103
      %v2206 = vunpack.c.l.b16 %v2104
      %v2207 = vunpack.c.h.b16 %v2104
      %v2208 = vunpack.c.l.b16 %v2105
      %v2209 = vunpack.c.h.b16 %v2105
      %v2210 = vunpack.c.l.b16 %v2106
      %v2211 = vunpack.c.h.b16 %v2106
      %v2212 = vunpack.c.l.b16 %v2107
      %v2213 = vunpack.c.h.b16 %v2107
      %v2214 = vunpack.c.l.b16 %v2108
      %v2215 = vunpack.c.h.b16 %v2108
      %v2216 = vunpack.c.l.b16 %v2109
      %v2217 = vunpack.c.h.b16 %v2109
      %v2218 = vunpack.c.l.b16 %v2110
      %v2219 = vunpack.c.h.b16 %v2110
      %v2220 = vunpack.c.l.b16 %v2111
      %v2221 = vunpack.c.h.b16 %v2111
      %v2222 = vunpack.c.l.b16 %v2112
      %v2223 = vunpack.c.h.b16 %v2112
      %v2224 = vunpack.c.l.b16 %v2113
      %v2225 = vunpack.c.h.b16 %v2113
      %v2226 = vunpack.c.l.b16 %v2114
      %v2227 = vunpack.c.h.b16 %v2114
      %v2228 = vunpack.c.l.b16 %v2115
      %v2229 = vunpack.c.h.b16 %v2115
      %v2230 = vunpack.c.l.b16 %v2116
      %v2231 = vunpack.c.h.b16 %v2116
      %v2232 = vunpack.c.l.b16 %v2117
      %v2233 = vunpack.c.h.b16 %v2117
      %v2234 = vunpack.c.l.b16 %v2118
      %v2235 = vunpack.c.h.b16 %v2118
      %v2236 = vunpack.c.l.b16 %v2119
      %v2237 = vunpack.c.h.b16 %v2119
      %v2238 = vunpack.c.l.b16 %v2120
      %v2239 = vunpack.c.h.b16 %v2120
      %v2240 = vunpack.c.l.b16 %v2121
      %v2241 = vunpack.c.h.b16 %v2121
      %v2242 = vunpack.c.l.b16 %v2122
      %v2243 = vunpack.c.h.b16 %v2122
      %v2244 = vunpack.c.l.b16 %v2123
      %v2245 = vunpack.c.h.b16 %v2123
      %v2246 = vunpack.c.l.b16 %v2124
      %v2247 = vunpack.c.h.b16 %v2124
      %v2248 = vunpack.c.l.b16 %v2125
      %v2249 = vunpack.c.h.b16 %v2125
      %v2250 = vunpack.c.l.b16 %v2126
      %v2251 = vunpack.c.h.b16 %v2126
      %v2252 = vunpack.c.l.b16 %v2127
      %v2253 = vunpack.c.h.b16 %v2127
      %v2254 = vunpack.c.l.b16 %v2128
      %v2255 = vunpack.c.h.b16 %v2128
      %v2256 = vunpack.c.l.b16 %v2129
      %v2257 = vunpack.c.h.b16 %v2129
      %v2258 = vunpack.c.l.b16 %v2130
      %v2259 = vunpack.c.h.b16 %v2130
      %v2260 = vunpack.c.l.b16 %v2131
      %v2261 = vunpack.c.h.b16 %v2131
      %v2262 = vunpack.c.l.b16 %v2132
      %v2263 = vunpack.c.h.b16 %v2132
      %v2264 = vunpack.c.l.b16 %v2133
      %v2265 = vunpack.c.h.b16 %v2133
      %v2266 = vunpack.c.l.b16 %v2134
      %v2267 = vunpack.c.h.b16 %v2134
      %v2268 = vunpack.c.l.b16 %v2135
      %v2269 = vunpack.c.h.b16 %v2135
      %v2270 = vunpack.c.l.b16 %v2136
      %v2271 = vunpack.c.h.b16 %v2136
      %v2272 = vunpack.c.l.b16 %v2137
      %v2273 = vunpack.c.h.b16 %v2137
      %v2274 = vunpack.c.l.b16 %v2138
      %v2275 = vunpack.c.h.b16 %v2138
      %v2276 = vunpack.c.l.b16 %v2139
      %v2277 = vunpack.c.h.b16 %v2139
      %v2278 = vunpack.c.l.b16 %v2140
      %v2279 = vunpack.c.h.b16 %v2140
      %v2280 = vunpack.c.l.b16 %v2141
      %v2281 = vunpack.c.h.b16 %v2141
      %v2282 = vunpack.c.l.b16 %v2142
      %v2283 = vunpack.c.h.b16 %v2142
      %v2284 = vunpack.c.l.b16 %v2143
      %v2285 = vunpack.c.h.b16 %v2143
      %v2286 = vunpack.c.l.b16 %v2144
      %v2287 = vunpack.c.h.b16 %v2144
      %v2288 = vunpack.c.l.b16 %v2145
      %v2289 = vunpack.c.h.b16 %v2145
      %v2290 = vpack.c.b16 %v2200, %v2194
      %v2291 = vpack.c.b16 %v2201, %v2195
      %v2292 = vpack.c.b16 %v2202, %v2196
      %v2293 = vpack.c.b16 %v2203, %v2197
      %v2294 = vpack.c.b16 %v2204, %v2198
      %v2295 = vpack.c.b16 %v2205, %v2199
      %v2296 = vpack.c.b16 %v2212, %v2206
      %v2297 = vpack.c.b16 %v2213, %v2207
      %v2298 = vpack.c.b16 %v2214, %v2208
      %v2299 = vpack.c.b16 %v2215, %v2209
      %v2300 = vpack.c.b16 %v2216, %v2210
      %v2301 = vpack.c.b16 %v2217, %v2211
      %v2302 = vpack.c.b16 %v2224, %v2218
      %v2303 = vpack.c.b16 %v2225, %v2219
      %v2304 = vpack.c.b16 %v2226, %v2220
      %v2305 = vpack.c.b16 %v2227, %v2221
      %v2306 = vpack.c.b16 %v2228, %v2222
      %v2307 = vpack.c.b16 %v2229, %v2223
      %v2308 = vpack.c.b16 %v2236, %v2230
      %v2309 = vpack.c.b16 %v2237, %v2231
      %v2310 = vpack.c.b16 %v2238, %v2232
      %v2311 = vpack.c.b16 %v2239, %v2233
      %v2312 = vpack.c.b16 %v2240, %v2234
      %v2313 = vpack.c.b16 %v2241, %v2235
      %v2314 = vpack.c.b16 %v2248, %v2242
      %v2315 = vpack.c.b16 %v2249, %v2243
      %v2316 = vpack.c.b16 %v2250, %v2244
      %v2317 = vpack.c.b16 %v2251, %v2245
      %v2318 = vpack.c.b16 %v2252, %v2246
      %v2319 = vpack.c.b16 %v2253, %v2247
      %v2320 = vpack.c.b16 %v2260, %v2254
      %v2321 = vpack.c.b16 %v2261, %v2255
      %v2322 = vpack.c.b16 %v2262, %v2256
      %v2323 = vpack.c.b16 %v2263, %v2257
      %v2324 = vpack.c.b16 %v2264, %v2258
      %v2325 = vpack.c.b16 %v2265, %v2259
      %v2326 = vpack.c.b16 %v2272, %v2266
      %v2327 = vpack.c.b16 %v2273, %v2267
      %v2328 = vpack.c.b16 %v2274, %v2268
      %v2329 = vpack.c.b16 %v2275, %v2269
      %v2330 = vpack.c.b16 %v2276, %v2270
      %v2331 = vpack.c.b16 %v2277, %v2271
      %v2332 = vpack.c.b16 %v2284, %v2278
      %v2333 = vpack.c.b16 %v2285, %v2279
      %v2334 = vpack.c.b16 %v2286, %v2280
      %v2335 = vpack.c.b16 %v2287, %v2281
      %v2336 = vpack.c.b16 %v2288, %v2282
      %v2337 = vpack.c.b16 %v2289, %v2283
      %2386 = vmatprep.subr.bf16.mxu0 %v2291
      %2387 = vmatpush1.bf16.msra.mxu0 %v2290
      %2388 = vmatprep.subr.bf16.mxu0 %v2297
      %2389 = vmatpush1.bf16.msra.mxu0 %v2296
      %2390 = vmatprep.subr.bf16.mxu0 %v2303
      %2391 = vmatpush1.bf16.msra.mxu0 %v2302
      %2392 = vmatprep.subr.bf16.mxu0 %v2309
      %2393 = vmatpush1.bf16.msra.mxu0 %v2308
      %2394 = vmatprep.subr.bf16.mxu0 %v2315
      %2395 = vmatpush1.bf16.msra.mxu0 %v2314
      %2396 = vmatprep.subr.bf16.mxu0 %v2321
      %2397 = vmatpush1.bf16.msra.mxu0 %v2320
      %2398 = vmatprep.subr.bf16.mxu0 %v2327
      %2399 = vmatpush1.bf16.msra.mxu0 %v2326
      %2400 = vmatprep.subr.bf16.mxu0 %v2333
      %2401 = vmatpush1.bf16.msra.mxu0 %v2332
      %2402 = vmatprep.subr.bf16.mxu0 0
      %2403 = vmatpush1.bf16.msra.mxu0 0
      %2404 = vmatprep.subr.bf16.mxu0 0
      %2405 = vmatpush1.bf16.msra.mxu0 0
      %2406 = vmatprep.subr.bf16.mxu0 0
      %2407 = vmatpush1.bf16.msra.mxu0 0
      %2408 = vmatprep.subr.bf16.mxu0 0
      %2409 = vmatpush1.bf16.msra.mxu0 0
      %2410 = vmatprep.subr.bf16.mxu0 0
      %2411 = vmatpush1.bf16.msra.mxu0 0
      %2412 = vmatprep.subr.bf16.mxu0 0
      %2413 = vmatpush1.bf16.msra.mxu0 0
      %2414 = vmatprep.subr.bf16.mxu0 0
      %2415 = vmatpush1.bf16.msra.mxu0 0
      %2416 = vmatprep.subr.bf16.mxu0 0
      %2417 = vmatpush1.bf16.msra.mxu0 0
      %2418 = vmatprep.mubr.bf16.mxu0 0
      %2419 = vmatmul.mubr.bf16.gmra.mrb[0].mxu0 %v2097
      %v2420 = vpop.f32.mrb[0].mxu0
      %v2421 = vadd.f32 0.0, %v2420
      %v2422 = vpop.f32.mrb[0].mxu0
      %v2423 = vadd.f32 0.0, %v2422
      %v2424 = vpop.f32.mrb[0].mxu0
      %v2425 = vadd.f32 0.0, %v2424
      %v2426 = vpop.f32.mrb[0].mxu0
      %v2427 = vadd.f32 0.0, %v2426
      %2428 = vdwg.mxu0
      %2429 = vmatprep.subr.bf16.mxu0 %v2293
      %2430 = vmatpush1.bf16.msra.mxu0 %v2292
      %2431 = vmatprep.subr.bf16.mxu0 %v2299
      %2432 = vmatpush1.bf16.msra.mxu0 %v2298
      %2433 = vmatprep.subr.bf16.mxu0 %v2305
      %2434 = vmatpush1.bf16.msra.mxu0 %v2304
      %2435 = vmatprep.subr.bf16.mxu0 %v2311
      %2436 = vmatpush1.bf16.msra.mxu0 %v2310
      %2437 = vmatprep.subr.bf16.mxu0 %v2317
      %2438 = vmatpush1.bf16.msra.mxu0 %v2316
      %2439 = vmatprep.subr.bf16.mxu0 %v2323
      %2440 = vmatpush1.bf16.msra.mxu0 %v2322
      %2441 = vmatprep.subr.bf16.mxu0 %v2329
      %2442 = vmatpush1.bf16.msra.mxu0 %v2328
      %2443 = vmatprep.subr.bf16.mxu0 %v2335
      %2444 = vmatpush1.bf16.msra.mxu0 %v2334
      %2445 = vmatprep.subr.bf16.mxu0 0
      %2446 = vmatpush1.bf16.msra.mxu0 0
      %2447 = vmatprep.subr.bf16.mxu0 0
      %2448 = vmatpush1.bf16.msra.mxu0 0
      %2449 = vmatprep.subr.bf16.mxu0 0
      %2450 = vmatpush1.bf16.msra.mxu0 0
      %2451 = vmatprep.subr.bf16.mxu0 0
      %2452 = vmatpush1.bf16.msra.mxu0 0
      %2453 = vmatprep.subr.bf16.mxu0 0
      %2454 = vmatpush1.bf16.msra.mxu0 0
      %2455 = vmatprep.subr.bf16.mxu0 0
      %2456 = vmatpush1.bf16.msra.mxu0 0
      %2457 = vmatprep.subr.bf16.mxu0 0
      %2458 = vmatpush1.bf16.msra.mxu0 0
      %2459 = vmatprep.subr.bf16.mxu0 0
      %2460 = vmatpush1.bf16.msra.mxu0 0
      %2461 = vmatprep.mubr.bf16.mxu0 0
      %2462 = vmatmul.mubr.bf16.gmra.mrb[0].mxu0 %v2097
      %v2463 = vpop.f32.mrb[0].mxu0
      %v2464 = vadd.f32 0.0, %v2463
      %v2465 = vpop.f32.mrb[0].mxu0
      %v2466 = vadd.f32 0.0, %v2465
      %v2467 = vpop.f32.mrb[0].mxu0
      %v2468 = vadd.f32 0.0, %v2467
      %v2469 = vpop.f32.mrb[0].mxu0
      %v2470 = vadd.f32 0.0, %v2469
      %2471 = vdwg.mxu0
      %2472 = vmatprep.subr.bf16.mxu0 %v2295
      %2473 = vmatpush1.bf16.msra.mxu0 %v2294
      %2474 = vmatprep.subr.bf16.mxu0 %v2301
      %2475 = vmatpush1.bf16.msra.mxu0 %v2300
      %2476 = vmatprep.subr.bf16.mxu0 %v2307
      %2477 = vmatpush1.bf16.msra.mxu0 %v2306
      %2478 = vmatprep.subr.bf16.mxu0 %v2313
      %2479 = vmatpush1.bf16.msra.mxu0 %v2312
      %2480 = vmatprep.subr.bf16.mxu0 %v2319
      %2481 = vmatpush1.bf16.msra.mxu0 %v2318
      %2482 = vmatprep.subr.bf16.mxu0 %v2325
      %2483 = vmatpush1.bf16.msra.mxu0 %v2324
      %2484 = vmatprep.subr.bf16.mxu0 %v2331
      %2485 = vmatpush1.bf16.msra.mxu0 %v2330
      %2486 = vmatprep.subr.bf16.mxu0 %v2337
      %2487 = vmatpush1.bf16.msra.mxu0 %v2336
      %2488 = vmatprep.subr.bf16.mxu0 0
      %2489 = vmatpush1.bf16.msra.mxu0 0
      %2490 = vmatprep.subr.bf16.mxu0 0
      %2491 = vmatpush1.bf16.msra.mxu0 0
      %2492 = vmatprep.subr.bf16.mxu0 0
      %2493 = vmatpush1.bf16.msra.mxu0 0
      %2494 = vmatprep.subr.bf16.mxu0 0
      %2495 = vmatpush1.bf16.msra.mxu0 0
      %2496 = vmatprep.subr.bf16.mxu0 0
      %2497 = vmatpush1.bf16.msra.mxu0 0
      %2498 = vmatprep.subr.bf16.mxu0 0
      %2499 = vmatpush1.bf16.msra.mxu0 0
      %2500 = vmatprep.subr.bf16.mxu0 0
      %2501 = vmatpush1.bf16.msra.mxu0 0
      %2502 = vmatprep.subr.bf16.mxu0 0
      %2503 = vmatpush1.bf16.msra.mxu0 0
      %2504 = vmatprep.mubr.bf16.mxu0 0
      %2505 = vmatmul.mubr.bf16.gmra.mrb[0].mxu0 %v2097
      %v2506 = vpop.f32.mrb[0].mxu0
      %v2507 = vadd.f32 0.0, %v2506
      %v2508 = vpop.f32.mrb[0].mxu0
      %v2509 = vadd.f32 0.0, %v2508
      %v2510 = vpop.f32.mrb[0].mxu0
      %v2511 = vadd.f32 0.0, %v2510
      %v2512 = vpop.f32.mrb[0].mxu0
      %v2513 = vadd.f32 0.0, %v2512
      %2514 = vdwg.mxu0
      %v2515 = vxor.u32 %v2421, 2147483648
      %v2516 = vxor.u32 %v2423, 2147483648
      %v2517 = vxor.u32 %v2464, 2147483648
      %v2518 = vxor.u32 %v2425, 2147483648
      %v2519 = vxor.u32 %v2427, 2147483648
      %v2520 = vxor.u32 %v2468, 2147483648
      %v2521 = vmul.f32 %v2515, 1.442695
      %v2522 = vpow.pop %v2521
      %v2523 = vmul.f32 %v2516, 1.442695
      %v2524 = vpow.pop %v2523
      %v2525 = vmul.f32 %v2517, 1.442695
      %v2526 = vpow.pop %v2525
      %v2527 = vmul.f32 %v2518, 1.442695
      %v2528 = vpow.pop %v2527
      %v2529 = vmul.f32 %v2519, 1.442695
      %v2530 = vpow.pop %v2529
      %v2531 = vmul.f32 %v2520, 1.442695
      %v2532 = vpow.pop %v2531
      %v2533 = vadd.f32 %v2522, 1.0
      %v2534 = vadd.f32 %v2524, 1.0
      %v2535 = vadd.f32 %v2526, 1.0
      %v2536 = vadd.f32 %v2528, 1.0
      %v2537 = vadd.f32 %v2530, 1.0
      %v2538 = vadd.f32 %v2532, 1.0
      %v2539 = vrcp.pop %v2533
      %v2540 = vmul.f32 1.0, %v2539
      %v2541 = vrcp.pop %v2534
      %v2542 = vmul.f32 1.0, %v2541
      %v2543 = vrcp.pop %v2535
      %v2544 = vmul.f32 1.0, %v2543
      %v2545 = vrcp.pop %v2536
      %v2546 = vmul.f32 1.0, %v2545
      %v2547 = vrcp.pop %v2537
      %v2548 = vmul.f32 1.0, %v2547
      %v2549 = vrcp.pop %v2538
      %v2550 = vmul.f32 1.0, %v2549
      %v2551 = vmul.f32 %v2421, %v2540
      %v2552 = vmul.f32 %v2423, %v2542
      %v2553 = vmul.f32 %v2464, %v2544
      %v2554 = vmul.f32 %v2425, %v2546
      %v2555 = vmul.f32 %v2427, %v2548
      %v2556 = vmul.f32 %v2468, %v2550
      %v2557 = vmul.f32 %v2551, %v2466
      %v2558 = vmul.f32 %v2552, %v2507
      %v2559 = vmul.f32 %v2553, %v2509
      %v2560 = vmul.f32 %v2554, %v2470
      %v2561 = vmul.f32 %v2555, %v2511
      %v2562 = vmul.f32 %v2556, %v2513
      %v2563 = vpack.c.bf16 %v2560, %v2557
      %v2564 = vpack.c.bf16 %v2561, %v2558
      %v2565 = vpack.c.bf16 %v2562, %v2559
      %v2566 = vld [vmem:[%s6] sm:$0xf]
      %v2567 = vld [vmem:[%s6 + $0x4] sm:$0xf]
      %v2568 = vld [vmem:[%s6 + $0x8] sm:$0xf]
      %v2569 = vld [vmem:[%s6 + $0xc] sm:$0xf]
      %v2570 = vld [vmem:[%s6 + $0x10] sm:$0xf]
      %v2571 = vld [vmem:[%s6 + $0x14] sm:$0xf]
      %v2572 = vld [vmem:[%s6 + $0x18] sm:$0xf]
      %v2573 = vld [vmem:[%s6 + $0x1c] sm:$0xf]
      %v2574 = vld [vmem:[%s6 + $0x20] sm:$0xf]
      %v2575 = vld [vmem:[%s6 + $0x24] sm:$0xf]
      %v2576 = vld [vmem:[%s6 + $0x28] sm:$0xf]
      %v2577 = vld [vmem:[%s6 + $0x2c] sm:$0xf]
      %v2578 = vld [vmem:[%s6 + $0x30] sm:$0xf]
      %v2579 = vld [vmem:[%s6 + $0x34] sm:$0xf]
      %v2580 = vld [vmem:[%s6 + $0x38] sm:$0xf]
      %v2581 = vld [vmem:[%s6 + $0x3c] sm:$0xf]
      %v2582 = vld [vmem:[%s6 + $0x40] sm:$0xf]
      %v2583 = vld [vmem:[%s6 + $0x44] sm:$0xf]
      %v2584 = vld [vmem:[%s6 + $0x48] sm:$0xf]
      %v2585 = vld [vmem:[%s6 + $0x4c] sm:$0xf]
      %v2586 = vld [vmem:[%s6 + $0x50] sm:$0xf]
      %v2587 = vld [vmem:[%s6 + $0x54] sm:$0xf]
      %v2588 = vld [vmem:[%s6 + $0x58] sm:$0xf]
      %v2589 = vld [vmem:[%s6 + $0x5c] sm:$0xf]
      %v2590 = vld [vmem:[%s6 + $0x60] sm:$0xf]
      %v2591 = vld [vmem:[%s6 + $0x64] sm:$0xf]
      %v2592 = vld [vmem:[%s6 + $0x68] sm:$0xf]
      %v2593 = vld [vmem:[%s6 + $0x6c] sm:$0xf]
      %v2594 = vld [vmem:[%s6 + $0x70] sm:$0xf]
      %v2595 = vld [vmem:[%s6 + $0x74] sm:$0xf]
      %v2596 = vld [vmem:[%s6 + $0x78] sm:$0xf]
      %v2597 = vld [vmem:[%s6 + $0x7c] sm:$0xf]
      %v2598 = vld [vmem:[%s6 + $0x80] sm:$0xf]
      %v2599 = vld [vmem:[%s6 + $0x84] sm:$0xf]
      %v2600 = vld [vmem:[%s6 + $0x88] sm:$0xf]
      %v2601 = vld [vmem:[%s6 + $0x8c] sm:$0xf]
      %v2602 = vld [vmem:[%s6 + $0x90] sm:$0xf]
      %v2603 = vld [vmem:[%s6 + $0x94] sm:$0xf]
      %v2604 = vld [vmem:[%s6 + $0x98] sm:$0xf]
      %v2605 = vld [vmem:[%s6 + $0x9c] sm:$0xf]
      %v2606 = vld [vmem:[%s6 + $0xa0] sm:$0xf]
      %v2607 = vld [vmem:[%s6 + $0xa4] sm:$0xf]
      %v2608 = vld [vmem:[%s6 + $0xa8] sm:$0xf]
      %v2609 = vld [vmem:[%s6 + $0xac] sm:$0xf]
      %v2610 = vld [vmem:[%s6 + $0xb0] sm:$0xf]
      %v2611 = vld [vmem:[%s6 + $0xb4] sm:$0xf]
      %v2612 = vld [vmem:[%s6 + $0xb8] sm:$0xf]
      %v2613 = vld [vmem:[%s6 + $0xbc] sm:$0xf]
      %v2662 = vunpack.c.l.b16 %v2566
      %v2663 = vunpack.c.l.b16 %v2567
      %v2664 = vunpack.c.l.b16 %v2568
      %v2665 = vunpack.c.l.b16 %v2569
      %v2666 = vunpack.c.l.b16 %v2570
      %v2667 = vunpack.c.l.b16 %v2571
      %v2668 = vunpack.c.l.b16 %v2572
      %v2669 = vunpack.c.l.b16 %v2573
      %v2670 = vunpack.c.l.b16 %v2574
      %v2671 = vunpack.c.l.b16 %v2575
      %v2672 = vunpack.c.l.b16 %v2576
      %v2673 = vunpack.c.l.b16 %v2577
      %v2674 = vunpack.c.l.b16 %v2578
      %v2675 = vunpack.c.l.b16 %v2579
      %v2676 = vunpack.c.l.b16 %v2580
      %v2677 = vunpack.c.l.b16 %v2581
      %v2678 = vunpack.c.l.b16 %v2582
      %v2679 = vunpack.c.l.b16 %v2583
      %v2680 = vunpack.c.l.b16 %v2584
      %v2681 = vunpack.c.l.b16 %v2585
      %v2682 = vunpack.c.l.b16 %v2586
      %v2683 = vunpack.c.l.b16 %v2587
      %v2684 = vunpack.c.l.b16 %v2588
      %v2685 = vunpack.c.l.b16 %v2589
      %v2686 = vunpack.c.l.b16 %v2590
      %v2687 = vunpack.c.l.b16 %v2591
      %v2688 = vunpack.c.l.b16 %v2592
      %v2689 = vunpack.c.l.b16 %v2593
      %v2690 = vunpack.c.l.b16 %v2594
      %v2691 = vunpack.c.l.b16 %v2595
      %v2692 = vunpack.c.l.b16 %v2596
      %v2693 = vunpack.c.l.b16 %v2597
      %v2694 = vunpack.c.l.b16 %v2598
      %v2695 = vunpack.c.l.b16 %v2599
      %v2696 = vunpack.c.l.b16 %v2600
      %v2697 = vunpack.c.l.b16 %v2601
      %v2698 = vunpack.c.l.b16 %v2602
      %v2699 = vunpack.c.l.b16 %v2603
      %v2700 = vunpack.c.l.b16 %v2604
      %v2701 = vunpack.c.l.b16 %v2605
      %v2702 = vunpack.c.l.b16 %v2606
      %v2703 = vunpack.c.l.b16 %v2607
      %v2704 = vunpack.c.l.b16 %v2608
      %v2705 = vunpack.c.l.b16 %v2609
      %v2706 = vunpack.c.l.b16 %v2610
      %v2707 = vunpack.c.l.b16 %v2611
      %v2708 = vunpack.c.l.b16 %v2612
      %v2709 = vunpack.c.l.b16 %v2613
      %v2710 = vpack.c.b16 %v2663, %v2662
      %v2711 = vpack.c.b16 %v2665, %v2664
      %v2712 = vpack.c.b16 %v2667, %v2666
      %v2713 = vpack.c.b16 %v2669, %v2668
      %v2714 = vpack.c.b16 %v2671, %v2670
      %v2715 = vpack.c.b16 %v2673, %v2672
      %v2716 = vpack.c.b16 %v2675, %v2674
      %v2717 = vpack.c.b16 %v2677, %v2676
      %v2718 = vpack.c.b16 %v2679, %v2678
      %v2719 = vpack.c.b16 %v2681, %v2680
      %v2720 = vpack.c.b16 %v2683, %v2682
      %v2721 = vpack.c.b16 %v2685, %v2684
      %v2722 = vpack.c.b16 %v2687, %v2686
      %v2723 = vpack.c.b16 %v2689, %v2688
      %v2724 = vpack.c.b16 %v2691, %v2690
      %v2725 = vpack.c.b16 %v2693, %v2692
      %v2726 = vpack.c.b16 %v2695, %v2694
      %v2727 = vpack.c.b16 %v2697, %v2696
      %v2728 = vpack.c.b16 %v2699, %v2698
      %v2729 = vpack.c.b16 %v2701, %v2700
      %v2730 = vpack.c.b16 %v2703, %v2702
      %v2731 = vpack.c.b16 %v2705, %v2704
      %v2732 = vpack.c.b16 %v2707, %v2706
      %v2733 = vpack.c.b16 %v2709, %v2708
      %2758 = vmatprep.subr.bf16.mxu0 0
      %2759 = vmatpush1.bf16.msra.mxu0 %v2710
      %2760 = vmatprep.subr.bf16.mxu0 0
      %2761 = vmatpush1.bf16.msra.mxu0 %v2711
      %2762 = vmatprep.subr.bf16.mxu0 0
      %2763 = vmatpush1.bf16.msra.mxu0 %v2712
      %2764 = vmatprep.subr.bf16.mxu0 0
      %2765 = vmatpush1.bf16.msra.mxu0 %v2713
      %2766 = vmatprep.subr.bf16.mxu0 0
      %2767 = vmatpush1.bf16.msra.mxu0 %v2714
      %2768 = vmatprep.subr.bf16.mxu0 0
      %2769 = vmatpush1.bf16.msra.mxu0 %v2715
      %2770 = vmatprep.subr.bf16.mxu0 0
      %2771 = vmatpush1.bf16.msra.mxu0 %v2716
      %2772 = vmatprep.subr.bf16.mxu0 0
      %2773 = vmatpush1.bf16.msra.mxu0 %v2717
      %2774 = vmatprep.subr.bf16.mxu0 0
      %2775 = vmatpush1.bf16.msra.mxu0 %v2718
      %2776 = vmatprep.subr.bf16.mxu0 0
      %2777 = vmatpush1.bf16.msra.mxu0 %v2719
      %2778 = vmatprep.subr.bf16.mxu0 0
      %2779 = vmatpush1.bf16.msra.mxu0 %v2720
      %2780 = vmatprep.subr.bf16.mxu0 0
      %2781 = vmatpush1.bf16.msra.mxu0 %v2721
      %2782 = vmatprep.subr.bf16.mxu0 0
      %2783 = vmatpush1.bf16.msra.mxu0 %v2722
      %2784 = vmatprep.subr.bf16.mxu0 0
      %2785 = vmatpush1.bf16.msra.mxu0 %v2723
      %2786 = vmatprep.subr.bf16.mxu0 0
      %2787 = vmatpush1.bf16.msra.mxu0 %v2724
      %2788 = vmatprep.subr.bf16.mxu0 0
      %2789 = vmatpush1.bf16.msra.mxu0 %v2725
      %2790 = vmatprep.mubr.bf16.mxu0 %v2564
      %2791 = vmatmul.mubr.bf16.gmra.mrb[0].mxu0 %v2563
      %v2792 = vpop.f32.mrb[0].mxu0
      %v2793 = vadd.f32 0.0, %v2792
      %v2794 = vpop.f32.mrb[0].mxu0
      %v2795 = vpop.f32.mrb[0].mxu0
      %v2796 = vadd.f32 0.0, %v2795
      %v2797 = vpop.f32.mrb[0].mxu0
      %2798 = vdwg.mxu0
      %2799 = vmatprep.subr.bf16.mxu0 0
      %2800 = vmatpush1.bf16.msra.mxu0 %v2726
      %2801 = vmatprep.subr.bf16.mxu0 0
      %2802 = vmatpush1.bf16.msra.mxu0 %v2727
      %2803 = vmatprep.subr.bf16.mxu0 0
      %2804 = vmatpush1.bf16.msra.mxu0 %v2728
      %2805 = vmatprep.subr.bf16.mxu0 0
      %2806 = vmatpush1.bf16.msra.mxu0 %v2729
      %2807 = vmatprep.subr.bf16.mxu0 0
      %2808 = vmatpush1.bf16.msra.mxu0 %v2730
      %2809 = vmatprep.subr.bf16.mxu0 0
      %2810 = vmatpush1.bf16.msra.mxu0 %v2731
      %2811 = vmatprep.subr.bf16.mxu0 0
      %2812 = vmatpush1.bf16.msra.mxu0 %v2732
      %2813 = vmatprep.subr.bf16.mxu0 0
      %2814 = vmatpush1.bf16.msra.mxu0 %v2733
      %2815 = vmatprep.subr.bf16.mxu0 0
      %2816 = vmatpush1.bf16.msra.mxu0 0
      %2817 = vmatprep.subr.bf16.mxu0 0
      %2818 = vmatpush1.bf16.msra.mxu0 0
      %2819 = vmatprep.subr.bf16.mxu0 0
      %2820 = vmatpush1.bf16.msra.mxu0 0
      %2821 = vmatprep.subr.bf16.mxu0 0
      %2822 = vmatpush1.bf16.msra.mxu0 0
      %2823 = vmatprep.subr.bf16.mxu0 0
      %2824 = vmatpush1.bf16.msra.mxu0 0
      %2825 = vmatprep.subr.bf16.mxu0 0
      %2826 = vmatpush1.bf16.msra.mxu0 0
      %2827 = vmatprep.subr.bf16.mxu0 0
      %2828 = vmatpush1.bf16.msra.mxu0 0
      %2829 = vmatprep.subr.bf16.mxu0 0
      %2830 = vmatpush1.bf16.msra.mxu0 0
      %2831 = vmatprep.mubr.bf16.mxu0 0
      %2832 = vmatmul.mubr.bf16.gmra.mrb[0].mxu0 %v2565
      %v2833 = vpop.f32.mrb[0].mxu0
      %v2834 = vadd.f32 %v2793, %v2833
      %v2835 = vpop.f32.mrb[0].mxu0
      %v2836 = vpop.f32.mrb[0].mxu0
      %v2837 = vadd.f32 %v2796, %v2836
      %v2838 = vpop.f32.mrb[0].mxu0
      %2839 = vdwg.mxu0
      %v2840 = vadd.f32 %v2072, %v2834
      %v2841 = vadd.f32 %v2073, %v2837
      %2842 = vst [vmem:[%s359] sm:$0xff] %v2840
      %2843 = vst [vmem:[%s359 + $0x8] sm:$0xff] %v2841
      %p2844 = scmp.lt.s32.totalorder %s21, 1
      %s2845 = scalar_select %p2844, %s21, 1
      %s2846 = smul.addr %s2845, 2
      %s2847 = smul.addr %s2846, 8
      %s2848 = scalar_lea.vmem %s10, %s2847
      // Predicated region
      $region61: #{transformer_forward.3} parent=59 // pred_check
        %p2849 = pneg %p254
      $region62: #{transformer_forward.3} parent=59 // pred_check_branch
        %2851 = sbr.rel (%p2849) target = $region64
      $region63: #{transformer_forward.3} parent=59 // pred_region
        _
      $region64: #{transformer_forward.3} parent=59 // pred_fallthru
        _
    $region60: #{transformer_forward.3} parent=5 // pred_fallthru
      _
    %p2852 = scmp.le.s32.totalorder 2, %s16
    // Predicated region
    $region65: #{transformer_forward.3} parent=5 // pred_check
      %p2853 = pneg %p2852
    $region66: #{transformer_forward.3} parent=5 // pred_check_branch
      %2855 = sbr.rel (%p2853) target = $region68
    $region67: #{transformer_forward.3} parent=5 // pred_region
      %s2856 = ssub.s32 %s16, 2
      // Predicated region
      $region69: #{transformer_forward.3} parent=67 // pred_check
        %p2857 = pneg %p260
      $region70: #{transformer_forward.3} parent=67 // pred_check_branch
        %2859 = sbr.rel (%p2857) target = $region72
      $region71: #{transformer_forward.3} parent=67 // pred_region
        %p2860 = scmp.lt.s32.totalorder %s22, 1
        %s2861 = scalar_select %p2860, %s22, 1
        %s2862 = smul.addr %s2861, 2
        %s2863 = smul.addr %s2862, 8
        %s2864 = scalar_lea.vmem %s10, %s2863
      $region72: #{transformer_forward.3} parent=67 // pred_fallthru
        _
    $region68: #{transformer_forward.3} parent=5 // pred_fallthru
      _
  $region6: #{transformer_forward.3} parent=0 // loop_footer
    %s20 = sadd.s32 1, %s16
  $region7: #{transformer_forward.3} parent=0 // loop_footer_branch
    %15 = sbr.rel target = $region3
  $region8: #{transformer_forward.3} parent=0 // loop_exit
    _

</llo_original>
